<compile_context>
chip_gen: v6e
topology: v6e:2x2x1
jax: 0.10.0
libtpu: 0.0.40
codegen_flags: <defaults>
</compile_context>

<pallas_src>
import functools

import jax
import jax.numpy as jnp
from jax.experimental import pallas as pl
from jax.experimental.pallas import tpu as pltpu


# ---------------------------------------------------------------------------
# Tiled matmul + bias:  C = A @ B + bias
#   grid (M-tiles, N-tiles, K-tiles); K is last ("arbitrary"), M/N "parallel".
#   Accumulates into the resident output block; bias is the k==0 initializer.
# ---------------------------------------------------------------------------
def _matmul_bias_kernel(a_ref, b_ref, bias_ref, o_ref):
    @pl.when(pl.program_id(2) == 0)
    def _():
        o_ref[...] = jnp.broadcast_to(bias_ref[...], o_ref.shape)

    o_ref[...] += jnp.dot(a_ref[...], b_ref[...],
                          preferred_element_type=jnp.float32)


def _pick_tile(dim, candidates):
    for c in candidates:
        if dim % c == 0:
            return c
    return dim


def matmul_bias(a, b, bias):
    """a: (M, K) f32, b: (K, N) f32, bias: (N,) -> (M, N) f32."""
    M, K = a.shape
    K2, N = b.shape
    assert K == K2

    # Bounded K tile even for huge, divisor-unfriendly K: pad with zeros
    # (zero rows/cols contribute nothing to A @ B).
    if K <= 2048:
        tk = K
    else:
        tk = _pick_tile(K, (2048, 1536, 1024, 512, 256, 128))
        if tk == K:
            tk = 2048
            Kp = pl.cdiv(K, tk) * tk
            a = jnp.pad(a, ((0, 0), (0, Kp - K)))
            b = jnp.pad(b, ((0, Kp - K), (0, 0)))
            K = Kp
    tm = _pick_tile(M, (512, 256, 128))
    tn = _pick_tile(N, (512, 256, 128))

    bias2 = bias.reshape(1, N).astype(jnp.float32)

    return pl.pallas_call(
        _matmul_bias_kernel,
        out_shape=jax.ShapeDtypeStruct((M, N), jnp.float32),
        grid_spec=pltpu.PrefetchScalarGridSpec(
            num_scalar_prefetch=0,
            grid=(M // tm, N // tn, K // tk),
            in_specs=[
                pl.BlockSpec((tm, tk), lambda i, j, k: (i, k)),
                pl.BlockSpec((tk, tn), lambda i, j, k: (k, j)),
                pl.BlockSpec((1, tn), lambda i, j, k: (0, j)),
            ],
            out_specs=pl.BlockSpec((tm, tn), lambda i, j, k: (i, j)),
        ),
        compiler_params=pltpu.CompilerParams(
            dimension_semantics=("parallel", "parallel", "arbitrary"),
            vmem_limit_bytes=48 * 1024 * 1024),
    )(a, b, bias2)


# ---------------------------------------------------------------------------
# Conv2d(kernel=3, stride=1, valid) via im2col (glue) + Pallas matmul
# ---------------------------------------------------------------------------
def _im2col_3x3(x_nhwc):
    N, H, W, C = x_nhwc.shape
    Ho, Wo = H - 2, W - 2
    cols = [x_nhwc[:, i:i + Ho, j:j + Wo, :] for i in range(3) for j in range(3)]
    patches = jnp.concatenate(cols, axis=-1)        # (N, Ho, Wo, 9*C), (kh,kw,C)
    return patches.reshape(N * Ho * Wo, 9 * C), (N, Ho, Wo)


def conv2d_3x3(x_nhwc, w_mat, b):
    """w_mat: (9*Cin, Cout) with rows in (kh, kw, Cin) order."""
    patches, (N, Ho, Wo) = _im2col_3x3(x_nhwc)
    y = matmul_bias(patches, w_mat, b)
    return y.reshape(N, Ho, Wo, w_mat.shape[1])


# ---------------------------------------------------------------------------
# MaxPool2d(kernel=2, stride=2): one grid step per batch element ("parallel")
# ---------------------------------------------------------------------------
def _maxpool2x2_kernel(x_ref, o_ref):
    # x_ref block: (Hp, 2, Wp, 2, C)  -- H-pair on axis 1, W-pair on axis 3
    h = jnp.maximum(x_ref[:, 0, :, :, :], x_ref[:, 1, :, :, :])   # (Hp, Wp, 2, C)
    o_ref[...] = jnp.max(h, axis=2)                               # (Hp, Wp, C)


def maxpool2x2(x_nhwc):
    N, H, W, C = x_nhwc.shape
    Hp, Wp = H // 2, W // 2
    x = x_nhwc[:, :2 * Hp, :2 * Wp, :]              # floor mode (PyTorch) crop
    xr = x.reshape(N * Hp, 2, Wp, 2, C)             # free row-major view
    out = pl.pallas_call(
        _maxpool2x2_kernel,
        out_shape=jax.ShapeDtypeStruct((N * Hp, Wp, C), x.dtype),
        grid_spec=pltpu.PrefetchScalarGridSpec(
            num_scalar_prefetch=0,
            grid=(N,),
            in_specs=[pl.BlockSpec((Hp, 2, Wp, 2, C),
                                   lambda n: (n, 0, 0, 0, 0))],
            out_specs=pl.BlockSpec((Hp, Wp, C), lambda n: (n, 0, 0)),
        ),
        compiler_params=pltpu.CompilerParams(
            dimension_semantics=("parallel",)),
    )(xr)
    return out.reshape(N, Hp, Wp, C)


# ---------------------------------------------------------------------------
# Fused FC stage: both (in_feats -> 512) heads, both (512 -> cls) classifiers
# and both softmaxes in a single pallas_call.
#   grid = (head, K-tiles):  head "parallel" (megacore), K "arbitrary".
#   Each head's (N, 512) hidden accumulates in its resident output slab; the
#   tiny classifier matmul + masked softmax run in the last-K epilogue.
# ---------------------------------------------------------------------------
def _fc_heads_kernel(x_ref, w1_ref, b1_ref, w2_ref, b2_ref, h_ref, p_ref):
    k = pl.program_id(1)

    @pl.when(k == 0)
    def _():
        h_ref[0] = jnp.broadcast_to(b1_ref[...], h_ref.shape[1:])

    h_ref[0] += jnp.dot(x_ref[...], w1_ref[...],
                        preferred_element_type=jnp.float32)

    @pl.when(k == pl.num_programs(1) - 1)
    def _():
        h = h_ref[0]                                           # (N, 512)
        logits = jnp.dot(h, w2_ref[0],
                         preferred_element_type=jnp.float32) + b2_ref[0]
        m = jnp.max(logits, axis=-1, keepdims=True)
        e = jnp.exp(logits - m)                 # padded cols: bias -1e30 -> 0
        p_ref[0] = e / jnp.sum(e, axis=-1, keepdims=True)


def fc_heads(flat, w1, b1, w2, b2):
    """flat (M,K); w1 (K,1024); b1 (1,1024); w2 (2,512,Cpad); b2 (2,1,Cpad)."""
    M, K = flat.shape
    K2, H2 = w1.shape
    assert K == K2 and H2 % 2 == 0
    Hd = H2 // 2
    Cpad = w2.shape[-1]

    if K <= 2048:
        tk = K
    else:
        tk = _pick_tile(K, (2048, 1536, 1024, 512, 256, 128))
        if tk == K:
            tk = 2048
            Kp = pl.cdiv(K, tk) * tk
            flat = jnp.pad(flat, ((0, 0), (0, Kp - K)))
            w1 = jnp.pad(w1, ((0, Kp - K), (0, 0)))
            K = Kp
    nk = K // tk

    h_out, probs = pl.pallas_call(
        _fc_heads_kernel,
        out_shape=(jax.ShapeDtypeStruct((2, M, Hd), jnp.float32),
                   jax.ShapeDtypeStruct((2, M, Cpad), jnp.float32)),
        grid_spec=pltpu.PrefetchScalarGridSpec(
            num_scalar_prefetch=0,
            grid=(2, nk),
            in_specs=[
                pl.BlockSpec((M, tk), lambda j, k: (0, k)),
                pl.BlockSpec((tk, Hd), lambda j, k: (k, j)),
                pl.BlockSpec((1, Hd), lambda j, k: (0, j)),
                pl.BlockSpec((1, Hd, Cpad), lambda j, k: (j, 0, 0)),
                pl.BlockSpec((1, 1, Cpad), lambda j, k: (j, 0, 0)),
            ],
            out_specs=[
                pl.BlockSpec((1, M, Hd), lambda j, k: (j, 0, 0)),
                pl.BlockSpec((1, M, Cpad), lambda j, k: (j, 0, 0)),
            ],
        ),
        compiler_params=pltpu.CompilerParams(
            dimension_semantics=("parallel", "arbitrary"),
            vmem_limit_bytes=48 * 1024 * 1024),
    )(flat, w1, b1, w2, b2)
    return h_out, probs


# ---------------------------------------------------------------------------
# Full Net4HT forward
# ---------------------------------------------------------------------------
@functools.partial(jax.jit, static_argnums=(2, 3))
def net4ht_forward(x_nchw, params, num_C_cls, num_F_cls):
    N = x_nchw.shape[0]
    x = jnp.transpose(x_nchw, (0, 2, 3, 1))                       # NCHW -> NHWC

    y = conv2d_3x3(x, params["conv1_wm"], params["conv1_b"])      # (N,14,14, 64)
    y = maxpool2x2(y)                                             # (N, 7, 7, 64)
    y = conv2d_3x3(y, params["conv2_wm"], params["conv2_b"])      # (N, 5, 5,192)
    y = maxpool2x2(y)                                             # (N, 2, 2,192)

    # NHWC flatten; fc1 weight rows were pre-permuted (CHW -> HWC), so this
    # matches PyTorch's x.view(batch, -1) on NCHW without a runtime transpose.
    flat = y.reshape(N, -1)

    h_stacked, probs = fc_heads(flat, params["fc1_w"], params["fc1_b"],
                                params["fc2_w"], params["fc2_b"])
    x2_d = h_stacked[1]                       # dropout(p=0.5) == identity (eval)
    x1 = probs[0, :, :num_C_cls]
    x2 = probs[1, :, :num_F_cls]
    return x2_d, x1, x2


# ---------------------------------------------------------------------------
# Parameters: synthetic PyTorch-layout weights + one-time repacking
# ---------------------------------------------------------------------------
def init_params(key, in_feats, num_C_cls, num_F_cls):
    keys = jax.random.split(key, 12)

    def normal(k, shape, fan_in):
        return jax.random.normal(k, shape, jnp.float32) / jnp.sqrt(float(fan_in))

    p = {}
    p["conv1_w"] = normal(keys[0], (64, 1, 3, 3), 1 * 9)
    p["conv1_b"] = normal(keys[1], (64,), 1 * 9)
    p["conv2_w"] = normal(keys[2], (192, 64, 3, 3), 64 * 9)
    p["conv2_b"] = normal(keys[3], (192,), 64 * 9)
    p["fc_c1_w"] = normal(keys[4], (512, in_feats), in_feats)
    p["fc_c1_b"] = normal(keys[5], (512,), in_feats)
    p["fc_c2_w"] = normal(keys[6], (num_C_cls, 512), 512)
    p["fc_c2_b"] = normal(keys[7], (num_C_cls,), 512)
    p["fc_f1_w"] = normal(keys[8], (512, in_feats), in_feats)
    p["fc_f1_b"] = normal(keys[9], (512,), in_feats)
    p["fc_f2_w"] = normal(keys[10], (num_F_cls, 512), 512)
    p["fc_f2_b"] = normal(keys[11], (num_F_cls,), 512)
    return p


def prepare_params(p, pooled_hw, num_C_cls, num_F_cls):
    """One-time (offline) repacking of PyTorch-layout params for the kernels."""
    Hp, Wp = pooled_hw
    C2 = p["conv2_w"].shape[0]                      # 192
    in_feats = C2 * Hp * Wp
    assert p["fc_c1_w"].shape[1] == in_feats
    Hd = p["fc_c1_w"].shape[0]                      # 512

    def conv_w_mat(w):                              # (Cout,Cin,3,3) -> (9*Cin,Cout)
        cout, cin = w.shape[0], w.shape[1]
        return jnp.transpose(w, (2, 3, 1, 0)).reshape(9 * cin, cout)

    def fc1_rows_hwc(w):                            # CHW rows -> (H*W*C, 512)
        w4 = w.reshape(Hd, C2, Hp, Wp)
        return jnp.transpose(w4, (0, 2, 3, 1)).reshape(Hd, in_feats).T

    # Fuse both 512-wide heads along the output dim: (in_feats, 1024).
    fc1_w = jnp.concatenate([fc1_rows_hwc(p["fc_c1_w"]),
                             fc1_rows_hwc(p["fc_f1_w"])], axis=1)
    fc1_b = jnp.concatenate([p["fc_c1_b"], p["fc_f1_b"]]).reshape(1, 2 * Hd)

    # Pack the two classifier heads into a lane-dense (2, 512, Cpad) slab;
    # padded columns get weight 0 / bias -1e30 so they vanish under softmax.
    Cpad = ((max(num_C_cls, num_F_cls) + 127) // 128) * 128
    fc2_w = jnp.zeros((2, Hd, Cpad), jnp.float32)
    fc2_w = fc2_w.at[0, :, :num_C_cls].set(p["fc_c2_w"].T)
    fc2_w = fc2_w.at[1, :, :num_F_cls].set(p["fc_f2_w"].T)
    fc2_b = jnp.full((2, 1, Cpad), -1e30, jnp.float32)
    fc2_b = fc2_b.at[0, 0, :num_C_cls].set(p["fc_c2_b"])
    fc2_b = fc2_b.at[1, 0, :num_F_cls].set(p["fc_f2_b"])

    return {
        "conv1_wm": conv_w_mat(p["conv1_w"]), "conv1_b": p["conv1_b"],
        "conv2_wm": conv_w_mat(p["conv2_w"]), "conv2_b": p["conv2_b"],
        "fc1_w": fc1_w, "fc1_b": fc1_b, "fc2_w": fc2_w, "fc2_b": fc2_b,
    }


# ---------------------------------------------------------------------------
# Pure-JAX reference (PyTorch-faithful) for a numerical cross-check
# ---------------------------------------------------------------------------
def reference_forward(x_nchw, p):
    hi = jax.lax.Precision.HIGHEST
    x = jnp.transpose(x_nchw, (0, 2, 3, 1))

    def conv(x, w, b):
        N, H, W, C = x.shape
        Ho, Wo = H - 2, W - 2
        cols = [x[:, i:i + Ho, j:j + Wo, :] for i in range(3) for j in range(3)]
        patches = jnp.concatenate(cols, axis=-1).reshape(N * Ho * Wo, 9 * C)
        wm = jnp.transpose(w, (2, 3, 1, 0)).reshape(9 * C, -1)
        return (jnp.dot(patches, wm, precision=hi) + b).reshape(N, Ho, Wo, -1)

    def pool(x):
        N, H, W, C = x.shape
        Hp, Wp = H // 2, W // 2
        return x[:, :2 * Hp, :2 * Wp, :].reshape(N, Hp, 2, Wp, 2, C).max(axis=(2, 4))

    y = pool(conv(x, p["conv1_w"], p["conv1_b"]))
    y = pool(conv(y, p["conv2_w"], p["conv2_b"]))
    flat = jnp.transpose(y, (0, 3, 1, 2)).reshape(x_nchw.shape[0], -1)  # NCHW flatten
    x1_d = jnp.dot(flat, p["fc_c1_w"].T, precision=hi) + p["fc_c1_b"]
    x2_d = jnp.dot(flat, p["fc_f1_w"].T, precision=hi) + p["fc_f1_b"]
    x1 = jax.nn.softmax(jnp.dot(x1_d, p["fc_c2_w"].T, precision=hi) + p["fc_c2_b"], axis=1)
    x2 = jax.nn.softmax(jnp.dot(x2_d, p["fc_f2_w"].T, precision=hi) + p["fc_f2_b"], axis=1)
    return x2_d, x1, x2


if __name__ == "__main__":
    key = jax.random.PRNGKey(0)
    kx, kp = jax.random.split(key)

    N, H, W = 2, 16, 16
    num_C_cls, num_F_cls = 4, 3
    x = jax.random.normal(kx, (N, 1, H, W), jnp.float32)    # NCHW, like PyTorch

    # 16 -> conv3 -> 14 -> pool2 -> 7 -> conv3 -> 5 -> pool2 -> 2
    Hp = (((H - 2) // 2) - 2) // 2
    Wp = (((W - 2) // 2) - 2) // 2
    in_feats = 192 * Hp * Wp                                # 768 at demo size

    raw = init_params(kp, in_feats, num_C_cls, num_F_cls)
    params = prepare_params(raw, (Hp, Wp), num_C_cls, num_F_cls)

    x2_d, x1, x2 = net4ht_forward(x, params, num_C_cls, num_F_cls)
    jax.block_until_ready((x2_d, x1, x2))

    assert x2_d.shape == (N, 512)
    assert x1.shape == (N, num_C_cls)
    assert x2.shape == (N, num_F_cls)
    assert bool(jnp.all(jnp.isfinite(x2_d)))
    assert bool(jnp.allclose(jnp.sum(x1, axis=1), 1.0, atol=1e-5))
    assert bool(jnp.allclose(jnp.sum(x2, axis=1), 1.0, atol=1e-5))

    # Cross-check against the PyTorch-faithful pure-JAX reference.
    r_x2_d, r_x1, r_x2 = reference_forward(x, raw)
    assert bool(jnp.allclose(x2_d, r_x2_d, rtol=1e-2, atol=1e-3)), "x2_d mismatch"
    assert bool(jnp.allclose(x1, r_x1, rtol=1e-2, atol=1e-3)), "x1 mismatch"
    assert bool(jnp.allclose(x2, r_x2, rtol=1e-2, atol=1e-3)), "x2 mismatch"

    print("KERNEL_OK")
</pallas_src>

<mosaic_0001>
module attributes {stable_mosaic.version = 11 : i64} {
  func.func @_matmul_bias_kernel(%arg0: i32, %arg1: i32, %arg2: i32, %arg3: memref<392x9xf32, #tpu.memory_space<vmem>>, %arg4: memref<9x64xf32, #tpu.memory_space<vmem>>, %arg5: memref<1x64xf32, #tpu.memory_space<vmem>>, %arg6: memref<392x64xf32, #tpu.memory_space<vmem>>) attributes {dimension_semantics = [#tpu.dimension_semantics<parallel>, #tpu.dimension_semantics<parallel>, #tpu.dimension_semantics<arbitrary>], iteration_bounds = array<i64: 1, 1, 1>, scalar_prefetch = 0 : i64, scratch_operands = 0 : i64, tpu.core_type = #tpu.core_type<tc>, window_params = [{transform_indices = @transform_0, window_bounds = array<i64: 392, 9>}, {transform_indices = @transform_1, window_bounds = array<i64: 9, 64>}, {transform_indices = @transform_2, window_bounds = array<i64: 1, 64>}, {transform_indices = @transform_3, window_bounds = array<i64: 392, 64>}]} {
    %c0_i32 = arith.constant 0 : i32
    %0 = arith.cmpi eq, %arg2, %c0_i32 : i32
    %1 = arith.extui %0 : i1 to i32
    %c0_i32_0 = arith.constant 0 : i32
    %2 = arith.cmpi ne, %1, %c0_i32_0 : i32
    scf.if %2 {
      %c0_8 = arith.constant 0 : index
      %c0_9 = arith.constant 0 : index
      %9 = vector.load %arg5[%c0_8, %c0_9] : memref<1x64xf32, #tpu.memory_space<vmem>>, vector<1x64xf32>
      %10 = vector.shape_cast %9 : vector<1x64xf32> to vector<1x64xf32>
      %11 = vector.broadcast %10 : vector<1x64xf32> to vector<392x64xf32>
      %c0_10 = arith.constant 0 : index
      %c0_11 = arith.constant 0 : index
      %12 = vector.load %arg6[%c0_10, %c0_11] : memref<392x64xf32, #tpu.memory_space<vmem>>, vector<392x64xf32>
      tpu.vector_store %arg6[%c0_10, %c0_11], %11 {strides = array<i32>} : memref<392x64xf32, #tpu.memory_space<vmem>>, vector<392x64xf32>,
    } else {
    }
    %c0 = arith.constant 0 : index
    %c0_1 = arith.constant 0 : index
    %3 = vector.load %arg6[%c0, %c0_1] : memref<392x64xf32, #tpu.memory_space<vmem>>, vector<392x64xf32>
    %c0_2 = arith.constant 0 : index
    %c0_3 = arith.constant 0 : index
    %4 = vector.load %arg3[%c0_2, %c0_3] : memref<392x9xf32, #tpu.memory_space<vmem>>, vector<392x9xf32>
    %c0_4 = arith.constant 0 : index
    %c0_5 = arith.constant 0 : index
    %5 = vector.load %arg4[%c0_4, %c0_5] : memref<9x64xf32, #tpu.memory_space<vmem>>, vector<9x64xf32>
    %cst = arith.constant dense<0.000000e+00> : vector<392x64xf32>
    %6 = tpu.matmul %4, %5, %cst {dimension_numbers = #tpu.dot_dimension_numbers<[1], [0], [0], [1], [0, 0, 1, 1], [], []>} : vector<392x9xf32>, vector<9x64xf32>, vector<392x64xf32> -> vector<392x64xf32>
    %7 = arith.addf %3, %6 : vector<392x64xf32>
    %c0_6 = arith.constant 0 : index
    %c0_7 = arith.constant 0 : index
    %8 = vector.load %arg6[%c0_6, %c0_7] : memref<392x64xf32, #tpu.memory_space<vmem>>, vector<392x64xf32>
    tpu.vector_store %arg6[%c0_6, %c0_7], %7 {strides = array<i32>} : memref<392x64xf32, #tpu.memory_space<vmem>>, vector<392x64xf32>,
    return
  }
  func.func @transform_0(%arg0: i32, %arg1: i32, %arg2: i32) -> (i32, i32) {
    %c0_i32 = arith.constant 0 : i32
    return %arg0, %arg2 : i32, i32
  }
  func.func @transform_1(%arg0: i32, %arg1: i32, %arg2: i32) -> (i32, i32) {
    %c0_i32 = arith.constant 0 : i32
    return %arg2, %arg1 : i32, i32
  }
  func.func @transform_2(%arg0: i32, %arg1: i32, %arg2: i32) -> (i32, i32) {
    %c0_i32 = arith.constant 0 : i32
    %c0_i32_0 = arith.constant 0 : i32
    return %c0_i32, %arg1 : i32, i32
  }
  func.func @transform_3(%arg0: i32, %arg1: i32, %arg2: i32) -> (i32, i32) {
    %c0_i32 = arith.constant 0 : i32
    return %arg0, %arg1 : i32, i32
  }
}

module attributes {stable_mosaic.version = 11 : i64} {
  func.func @_maxpool2x2_kernel(%arg0: i32, %arg1: memref<7x2x7x2x64xf32, #tpu.memory_space<vmem>>, %arg2: memref<7x7x64xf32, #tpu.memory_space<vmem>>) attributes {dimension_semantics = [#tpu.dimension_semantics<parallel>], iteration_bounds = array<i64: 2>, scalar_prefetch = 0 : i64, scratch_operands = 0 : i64, tpu.core_type = #tpu.core_type<tc>, window_params = [{transform_indices = @transform_0, window_bounds = array<i64: 7, 2, 7, 2, 64>}, {transform_indices = @transform_1, window_bounds = array<i64: 7, 7, 64>}]} {
    %c0 = arith.constant 0 : index
    %c0_0 = arith.constant 0 : index
    %c0_1 = arith.constant 0 : index
    %c0_2 = arith.constant 0 : index
    %c0_3 = arith.constant 0 : index
    %0 = vector.load %arg1[%c0, %c0_0, %c0_1, %c0_2, %c0_3] : memref<7x2x7x2x64xf32, #tpu.memory_space<vmem>>, vector<7x1x7x2x64xf32>
    %1 = vector.shape_cast %0 : vector<7x1x7x2x64xf32> to vector<7x7x2x64xf32>
    %c0_4 = arith.constant 0 : index
    %c1 = arith.constant 1 : index
    %c0_5 = arith.constant 0 : index
    %c0_6 = arith.constant 0 : index
    %c0_7 = arith.constant 0 : index
    %2 = vector.load %arg1[%c0_4, %c1, %c0_5, %c0_6, %c0_7] : memref<7x2x7x2x64xf32, #tpu.memory_space<vmem>>, vector<7x1x7x2x64xf32>
    %3 = vector.shape_cast %2 : vector<7x1x7x2x64xf32> to vector<7x7x2x64xf32>
    %4 = arith.maximumf %1, %3 : vector<7x7x2x64xf32>
    %cst = arith.constant dense<0xFF800000> : vector<7x7x64xf32>
    %5 = vector.multi_reduction <maximumf>, %4, %cst [2] : vector<7x7x2x64xf32> to vector<7x7x64xf32>
    %c0_8 = arith.constant 0 : index
    %c0_9 = arith.constant 0 : index
    %c0_10 = arith.constant 0 : index
    %6 = vector.load %arg2[%c0_8, %c0_9, %c0_10] : memref<7x7x64xf32, #tpu.memory_space<vmem>>, vector<7x7x64xf32>
    tpu.vector_store %arg2[%c0_8, %c0_9, %c0_10], %5 {strides = array<i32>} : memref<7x7x64xf32, #tpu.memory_space<vmem>>, vector<7x7x64xf32>,
    return
  }
  func.func @transform_0(%arg0: i32) -> (i32, i32, i32, i32, i32) {
    %c0_i32 = arith.constant 0 : i32
    %c0_i32_0 = arith.constant 0 : i32
    %c0_i32_1 = arith.constant 0 : i32
    %c0_i32_2 = arith.constant 0 : i32
    %c0_i32_3 = arith.constant 0 : i32
    return %arg0, %c0_i32, %c0_i32_0, %c0_i32_1, %c0_i32_2 : i32, i32, i32, i32, i32
  }
  func.func @transform_1(%arg0: i32) -> (i32, i32, i32) {
    %c0_i32 = arith.constant 0 : i32
    %c0_i32_0 = arith.constant 0 : i32
    %c0_i32_1 = arith.constant 0 : i32
    return %arg0, %c0_i32, %c0_i32_0 : i32, i32, i32
  }
}

module attributes {stable_mosaic.version = 11 : i64} {
  func.func @_matmul_bias_kernel(%arg0: i32, %arg1: i32, %arg2: i32, %arg3: memref<50x576xf32, #tpu.memory_space<vmem>>, %arg4: memref<576x192xf32, #tpu.memory_space<vmem>>, %arg5: memref<1x192xf32, #tpu.memory_space<vmem>>, %arg6: memref<50x192xf32, #tpu.memory_space<vmem>>) attributes {dimension_semantics = [#tpu.dimension_semantics<parallel>, #tpu.dimension_semantics<parallel>, #tpu.dimension_semantics<arbitrary>], iteration_bounds = array<i64: 1, 1, 1>, scalar_prefetch = 0 : i64, scratch_operands = 0 : i64, tpu.core_type = #tpu.core_type<tc>, window_params = [{transform_indices = @transform_0, window_bounds = array<i64: 50, 576>}, {transform_indices = @transform_1, window_bounds = array<i64: 576, 192>}, {transform_indices = @transform_2, window_bounds = array<i64: 1, 192>}, {transform_indices = @transform_3, window_bounds = array<i64: 50, 192>}]} {
    %c0_i32 = arith.constant 0 : i32
    %0 = arith.cmpi eq, %arg2, %c0_i32 : i32
    %1 = arith.extui %0 : i1 to i32
    %c0_i32_0 = arith.constant 0 : i32
    %2 = arith.cmpi ne, %1, %c0_i32_0 : i32
    scf.if %2 {
      %c0_8 = arith.constant 0 : index
      %c0_9 = arith.constant 0 : index
      %9 = vector.load %arg5[%c0_8, %c0_9] : memref<1x192xf32, #tpu.memory_space<vmem>>, vector<1x192xf32>
      %10 = vector.shape_cast %9 : vector<1x192xf32> to vector<1x192xf32>
      %11 = vector.broadcast %10 : vector<1x192xf32> to vector<50x192xf32>
      %c0_10 = arith.constant 0 : index
      %c0_11 = arith.constant 0 : index
      %12 = vector.load %arg6[%c0_10, %c0_11] : memref<50x192xf32, #tpu.memory_space<vmem>>, vector<50x192xf32>
      tpu.vector_store %arg6[%c0_10, %c0_11], %11 {strides = array<i32>} : memref<50x192xf32, #tpu.memory_space<vmem>>, vector<50x192xf32>,
    } else {
    }
    %c0 = arith.constant 0 : index
    %c0_1 = arith.constant 0 : index
    %3 = vector.load %arg6[%c0, %c0_1] : memref<50x192xf32, #tpu.memory_space<vmem>>, vector<50x192xf32>
    %c0_2 = arith.constant 0 : index
    %c0_3 = arith.constant 0 : index
    %4 = vector.load %arg3[%c0_2, %c0_3] : memref<50x576xf32, #tpu.memory_space<vmem>>, vector<50x576xf32>
    %c0_4 = arith.constant 0 : index
    %c0_5 = arith.constant 0 : index
    %5 = vector.load %arg4[%c0_4, %c0_5] : memref<576x192xf32, #tpu.memory_space<vmem>>, vector<576x192xf32>
    %cst = arith.constant dense<0.000000e+00> : vector<50x192xf32>
    %6 = tpu.matmul %4, %5, %cst {dimension_numbers = #tpu.dot_dimension_numbers<[1], [0], [0], [1], [0, 0, 1, 1], [], []>} : vector<50x576xf32>, vector<576x192xf32>, vector<50x192xf32> -> vector<50x192xf32>
    %7 = arith.addf %3, %6 : vector<50x192xf32>
    %c0_6 = arith.constant 0 : index
    %c0_7 = arith.constant 0 : index
    %8 = vector.load %arg6[%c0_6, %c0_7] : memref<50x192xf32, #tpu.memory_space<vmem>>, vector<50x192xf32>
    tpu.vector_store %arg6[%c0_6, %c0_7], %7 {strides = array<i32>} : memref<50x192xf32, #tpu.memory_space<vmem>>, vector<50x192xf32>,
    return
  }
  func.func @transform_0(%arg0: i32, %arg1: i32, %arg2: i32) -> (i32, i32) {
    %c0_i32 = arith.constant 0 : i32
    return %arg0, %arg2 : i32, i32
  }
  func.func @transform_1(%arg0: i32, %arg1: i32, %arg2: i32) -> (i32, i32) {
    %c0_i32 = arith.constant 0 : i32
    return %arg2, %arg1 : i32, i32
  }
  func.func @transform_2(%arg0: i32, %arg1: i32, %arg2: i32) -> (i32, i32) {
    %c0_i32 = arith.constant 0 : i32
    %c0_i32_0 = arith.constant 0 : i32
    return %c0_i32, %arg1 : i32, i32
  }
  func.func @transform_3(%arg0: i32, %arg1: i32, %arg2: i32) -> (i32, i32) {
    %c0_i32 = arith.constant 0 : i32
    return %arg0, %arg1 : i32, i32
  }
}

module attributes {stable_mosaic.version = 11 : i64} {
  func.func @_maxpool2x2_kernel(%arg0: i32, %arg1: memref<2x2x2x2x192xf32, #tpu.memory_space<vmem>>, %arg2: memref<2x2x192xf32, #tpu.memory_space<vmem>>) attributes {dimension_semantics = [#tpu.dimension_semantics<parallel>], iteration_bounds = array<i64: 2>, scalar_prefetch = 0 : i64, scratch_operands = 0 : i64, tpu.core_type = #tpu.core_type<tc>, window_params = [{transform_indices = @transform_0, window_bounds = array<i64: 2, 2, 2, 2, 192>}, {transform_indices = @transform_1, window_bounds = array<i64: 2, 2, 192>}]} {
    %c0 = arith.constant 0 : index
    %c0_0 = arith.constant 0 : index
    %c0_1 = arith.constant 0 : index
    %c0_2 = arith.constant 0 : index
    %c0_3 = arith.constant 0 : index
    %0 = vector.load %arg1[%c0, %c0_0, %c0_1, %c0_2, %c0_3] : memref<2x2x2x2x192xf32, #tpu.memory_space<vmem>>, vector<2x1x2x2x192xf32>
    %1 = vector.shape_cast %0 : vector<2x1x2x2x192xf32> to vector<2x2x2x192xf32>
    %c0_4 = arith.constant 0 : index
    %c1 = arith.constant 1 : index
    %c0_5 = arith.constant 0 : index
    %c0_6 = arith.constant 0 : index
    %c0_7 = arith.constant 0 : index
    %2 = vector.load %arg1[%c0_4, %c1, %c0_5, %c0_6, %c0_7] : memref<2x2x2x2x192xf32, #tpu.memory_space<vmem>>, vector<2x1x2x2x192xf32>
    %3 = vector.shape_cast %2 : vector<2x1x2x2x192xf32> to vector<2x2x2x192xf32>
    %4 = arith.maximumf %1, %3 : vector<2x2x2x192xf32>
    %cst = arith.constant dense<0xFF800000> : vector<2x2x192xf32>
    %5 = vector.multi_reduction <maximumf>, %4, %cst [2] : vector<2x2x2x192xf32> to vector<2x2x192xf32>
    %c0_8 = arith.constant 0 : index
    %c0_9 = arith.constant 0 : index
    %c0_10 = arith.constant 0 : index
    %6 = vector.load %arg2[%c0_8, %c0_9, %c0_10] : memref<2x2x192xf32, #tpu.memory_space<vmem>>, vector<2x2x192xf32>
    tpu.vector_store %arg2[%c0_8, %c0_9, %c0_10], %5 {strides = array<i32>} : memref<2x2x192xf32, #tpu.memory_space<vmem>>, vector<2x2x192xf32>,
    return
  }
  func.func @transform_0(%arg0: i32) -> (i32, i32, i32, i32, i32) {
    %c0_i32 = arith.constant 0 : i32
    %c0_i32_0 = arith.constant 0 : i32
    %c0_i32_1 = arith.constant 0 : i32
    %c0_i32_2 = arith.constant 0 : i32
    %c0_i32_3 = arith.constant 0 : i32
    return %arg0, %c0_i32, %c0_i32_0, %c0_i32_1, %c0_i32_2 : i32, i32, i32, i32, i32
  }
  func.func @transform_1(%arg0: i32) -> (i32, i32, i32) {
    %c0_i32 = arith.constant 0 : i32
    %c0_i32_0 = arith.constant 0 : i32
    %c0_i32_1 = arith.constant 0 : i32
    return %arg0, %c0_i32, %c0_i32_0 : i32, i32, i32
  }
}

module attributes {stable_mosaic.version = 11 : i64} {
  func.func @_fc_heads_kernel(%arg0: i32, %arg1: i32, %arg2: memref<2x768xf32, #tpu.memory_space<vmem>>, %arg3: memref<768x512xf32, #tpu.memory_space<vmem>>, %arg4: memref<1x512xf32, #tpu.memory_space<vmem>>, %arg5: memref<1x512x128xf32, #tpu.memory_space<vmem>>, %arg6: memref<1x1x128xf32, #tpu.memory_space<vmem>>, %arg7: memref<1x2x512xf32, #tpu.memory_space<vmem>>, %arg8: memref<1x2x128xf32, #tpu.memory_space<vmem>>) attributes {dimension_semantics = [#tpu.dimension_semantics<parallel>, #tpu.dimension_semantics<arbitrary>], iteration_bounds = array<i64: 2, 1>, scalar_prefetch = 0 : i64, scratch_operands = 0 : i64, tpu.core_type = #tpu.core_type<tc>, window_params = [{transform_indices = @transform_0, window_bounds = array<i64: 2, 768>}, {transform_indices = @transform_1, window_bounds = array<i64: 768, 512>}, {transform_indices = @transform_2, window_bounds = array<i64: 1, 512>}, {transform_indices = @transform_3, window_bounds = array<i64: 1, 512, 128>}, {transform_indices = @transform_4, window_bounds = array<i64: 1, 1, 128>}, {transform_indices = @transform_5, window_bounds = array<i64: 1, 2, 512>}, {transform_indices = @transform_6, window_bounds = array<i64: 1, 2, 128>}]} {
    %c0_i32 = arith.constant 0 : i32
    %0 = arith.cmpi eq, %arg1, %c0_i32 : i32
    %1 = arith.extui %0 : i1 to i32
    %c0_i32_0 = arith.constant 0 : i32
    %2 = arith.cmpi ne, %1, %c0_i32_0 : i32
    scf.if %2 {
      %c0_12 = arith.constant 0 : index
      %c0_13 = arith.constant 0 : index
      %15 = vector.load %arg4[%c0_12, %c0_13] : memref<1x512xf32, #tpu.memory_space<vmem>>, vector<1x512xf32>
      %16 = vector.shape_cast %15 : vector<1x512xf32> to vector<1x512xf32>
      %17 = vector.broadcast %16 : vector<1x512xf32> to vector<2x512xf32>
      %c0_14 = arith.constant 0 : index
      %c0_15 = arith.constant 0 : index
      %c0_16 = arith.constant 0 : index
      %18 = vector.load %arg7[%c0_14, %c0_15, %c0_16] : memref<1x2x512xf32, #tpu.memory_space<vmem>>, vector<1x2x512xf32>
      %19 = vector.shape_cast %18 : vector<1x2x512xf32> to vector<2x512xf32>
      %20 = vector.shape_cast %17 : vector<2x512xf32> to vector<1x2x512xf32>
      tpu.vector_store %arg7[%c0_14, %c0_15, %c0_16], %20 {strides = array<i32>} : memref<1x2x512xf32, #tpu.memory_space<vmem>>, vector<1x2x512xf32>,
    } else {
    }
    %c0 = arith.constant 0 : index
    %c0_1 = arith.constant 0 : index
    %c0_2 = arith.constant 0 : index
    %3 = vector.load %arg7[%c0, %c0_1, %c0_2] : memref<1x2x512xf32, #tpu.memory_space<vmem>>, vector<1x2x512xf32>
    %4 = vector.shape_cast %3 : vector<1x2x512xf32> to vector<2x512xf32>
    %c0_3 = arith.constant 0 : index
    %c0_4 = arith.constant 0 : index
    %5 = vector.load %arg2[%c0_3, %c0_4] : memref<2x768xf32, #tpu.memory_space<vmem>>, vector<2x768xf32>
    %c0_5 = arith.constant 0 : index
    %c0_6 = arith.constant 0 : index
    %6 = vector.load %arg3[%c0_5, %c0_6] : memref<768x512xf32, #tpu.memory_space<vmem>>, vector<768x512xf32>
    %cst = arith.constant dense<0.000000e+00> : vector<2x512xf32>
    %7 = tpu.matmul %5, %6, %cst {dimension_numbers = #tpu.dot_dimension_numbers<[1], [0], [0], [1], [0, 0, 1, 1], [], []>} : vector<2x768xf32>, vector<768x512xf32>, vector<2x512xf32> -> vector<2x512xf32>
    %8 = arith.addf %4, %7 : vector<2x512xf32>
    %c0_7 = arith.constant 0 : index
    %c0_8 = arith.constant 0 : index
    %c0_9 = arith.constant 0 : index
    %9 = vector.load %arg7[%c0_7, %c0_8, %c0_9] : memref<1x2x512xf32, #tpu.memory_space<vmem>>, vector<1x2x512xf32>
    %10 = vector.shape_cast %9 : vector<1x2x512xf32> to vector<2x512xf32>
    %11 = vector.shape_cast %8 : vector<2x512xf32> to vector<1x2x512xf32>
    tpu.vector_store %arg7[%c0_7, %c0_8, %c0_9], %11 {strides = array<i32>} : memref<1x2x512xf32, #tpu.memory_space<vmem>>, vector<1x2x512xf32>,
    %c0_i32_10 = arith.constant 0 : i32
    %12 = arith.cmpi eq, %arg1, %c0_i32_10 : i32
    %13 = arith.extui %12 : i1 to i32
    %c0_i32_11 = arith.constant 0 : i32
    %14 = arith.cmpi ne, %13, %c0_i32_11 : i32
    scf.if %14 {
      %c0_12 = arith.constant 0 : index
      %c0_13 = arith.constant 0 : index
      %c0_14 = arith.constant 0 : index
      %15 = vector.load %arg7[%c0_12, %c0_13, %c0_14] : memref<1x2x512xf32, #tpu.memory_space<vmem>>, vector<1x2x512xf32>
      %16 = vector.shape_cast %15 : vector<1x2x512xf32> to vector<2x512xf32>
      %c0_15 = arith.constant 0 : index
      %c0_16 = arith.constant 0 : index
      %c0_17 = arith.constant 0 : index
      %17 = vector.load %arg5[%c0_15, %c0_16, %c0_17] : memref<1x512x128xf32, #tpu.memory_space<vmem>>, vector<1x512x128xf32>
      %18 = vector.shape_cast %17 : vector<1x512x128xf32> to vector<512x128xf32>
      %cst_18 = arith.constant dense<0.000000e+00> : vector<2x128xf32>
      %19 = tpu.matmul %16, %18, %cst_18 {dimension_numbers = #tpu.dot_dimension_numbers<[1], [0], [0], [1], [0, 0, 1, 1], [], []>} : vector<2x512xf32>, vector<512x128xf32>, vector<2x128xf32> -> vector<2x128xf32>
      %c0_19 = arith.constant 0 : index
      %c0_20 = arith.constant 0 : index
      %c0_21 = arith.constant 0 : index
      %20 = vector.load %arg6[%c0_19, %c0_20, %c0_21] : memref<1x1x128xf32, #tpu.memory_space<vmem>>, vector<1x1x128xf32>
      %21 = vector.shape_cast %20 : vector<1x1x128xf32> to vector<1x128xf32>
      %22 = vector.broadcast %21 : vector<1x128xf32> to vector<2x128xf32>
      %23 = arith.addf %19, %22 : vector<2x128xf32>
      %cst_22 = arith.constant dense<0xFF800000> : vector<2xf32>
      %24 = vector.multi_reduction <maximumf>, %23, %cst_22 [1] : vector<2x128xf32> to vector<2xf32>
      %25 = vector.shape_cast %24 : vector<2xf32> to vector<2x1xf32>
      %26 = vector.broadcast %25 : vector<2x1xf32> to vector<2x128xf32>
      %27 = arith.subf %23, %26 : vector<2x128xf32>
      %28 = math.exp %27 : vector<2x128xf32>
      %cst_23 = arith.constant dense<0.000000e+00> : vector<2xf32>
      %29 = vector.multi_reduction <add>, %28, %cst_23 [1] : vector<2x128xf32> to vector<2xf32>
      %30 = vector.shape_cast %29 : vector<2xf32> to vector<2x1xf32>
      %31 = vector.broadcast %30 : vector<2x1xf32> to vector<2x128xf32>
      %32 = arith.divf %28, %31 : vector<2x128xf32>
      %c0_24 = arith.constant 0 : index
      %c0_25 = arith.constant 0 : index
      %c0_26 = arith.constant 0 : index
      %33 = vector.load %arg8[%c0_24, %c0_25, %c0_26] : memref<1x2x128xf32, #tpu.memory_space<vmem>>, vector<1x2x128xf32>
      %34 = vector.shape_cast %33 : vector<1x2x128xf32> to vector<2x128xf32>
      %35 = vector.shape_cast %32 : vector<2x128xf32> to vector<1x2x128xf32>
      tpu.vector_store %arg8[%c0_24, %c0_25, %c0_26], %35 {strides = array<i32>} : memref<1x2x128xf32, #tpu.memory_space<vmem>>, vector<1x2x128xf32>,
    } else {
    }
    return
  }
  func.func @transform_0(%arg0: i32, %arg1: i32) -> (i32, i32) {
    %c0_i32 = arith.constant 0 : i32
    %c0_i32_0 = arith.constant 0 : i32
    return %c0_i32, %arg1 : i32, i32
  }
  func.func @transform_1(%arg0: i32, %arg1: i32) -> (i32, i32) {
    %c0_i32 = arith.constant 0 : i32
    return %arg1, %arg0 : i32, i32
  }
  func.func @transform_2(%arg0: i32, %arg1: i32) -> (i32, i32) {
    %c0_i32 = arith.constant 0 : i32
    %c0_i32_0 = arith.constant 0 : i32
    return %c0_i32, %arg0 : i32, i32
  }
  func.func @transform_3(%arg0: i32, %arg1: i32) -> (i32, i32, i32) {
    %c0_i32 = arith.constant 0 : i32
    %c0_i32_0 = arith.constant 0 : i32
    %c0_i32_1 = arith.constant 0 : i32
    return %arg0, %c0_i32, %c0_i32_0 : i32, i32, i32
  }
  func.func @transform_4(%arg0: i32, %arg1: i32) -> (i32, i32, i32) {
    %c0_i32 = arith.constant 0 : i32
    %c0_i32_0 = arith.constant 0 : i32
    %c0_i32_1 = arith.constant 0 : i32
    return %arg0, %c0_i32, %c0_i32_0 : i32, i32, i32
  }
  func.func @transform_5(%arg0: i32, %arg1: i32) -> (i32, i32, i32) {
    %c0_i32 = arith.constant 0 : i32
    %c0_i32_0 = arith.constant 0 : i32
    %c0_i32_1 = arith.constant 0 : i32
    return %arg0, %c0_i32, %c0_i32_0 : i32, i32, i32
  }
  func.func @transform_6(%arg0: i32, %arg1: i32) -> (i32, i32, i32) {
    %c0_i32 = arith.constant 0 : i32
    %c0_i32_0 = arith.constant 0 : i32
    %c0_i32_1 = arith.constant 0 : i32
    return %arg0, %c0_i32, %c0_i32_0 : i32, i32, i32
  }
}

</mosaic_0001>

<llo_original>
// kernel: net4ht_forward.6
$region0: #{net4ht_forward.6}
  #allocation0 [shape = 'u32[]', space=smem, size = 0x4, offset = 0x4, fixed_abs, tag = 'smem constant byte address 0x4 - core index']
  #allocation1 [shape = 'u32[144,128]{1,0:T(1,128)}', space=vmem, size = 0x12000, scoped, tag = 'internal scratch']
  %s0 = inlined_call_operand.vmem [shape: f32[14,2,7,2,64], index: 0, kind: input, shape index: {}]
  %s1 = inlined_call_operand.vmem [shape: f32[14,7,64], index: 1, kind: output, shape index: {}]
  %s2 = sld [smem:[#allocation0]]
  $region37: #{net4ht_forward.6} parent=0
    _
  %s4 = ssub.s32 1, %s2
  %s5 = scalar_select 0, %s4, %s2
  loop: start=0, step=1, limit=4
  $region2: #{net4ht_forward.6} parent=0 // loop_pre_header
    _
  $region3: #{net4ht_forward.6} parent=0 // loop_header
    %s7 = sphi 0, %s11
    %p8 = scmp.ge.s32.totalorder %s7, 4
    %s17 = sphi 0, %s19
    %s20 = sphi 0, %s17
    %s21 = sphi 0, %s20
    %s37 = sphi 0, %s21
    %s43 = sphi 0, %s45
    %s46 = sphi 0, %s43
    %s47 = sphi 0, %s46
    %s63 = sphi 0, %s47
  $region4: #{net4ht_forward.6} parent=0 // loop_header_branch
    %10 = sbr.rel (%p8) target = $region8
  $region5: #{net4ht_forward.6} parent=0 // loop_body
    %s12 = ssub.s32 %s7, 1
    %s13 = ssub.s32 %s7, 2
    %s14 = sadd.s32 %s7, 1
    %s15 = ssub.s32 %s7, %s14
    %p16 = scmp.eq.s32.totalorder %s15, 0
    %s18 = sadd.s32 %s17, 1
    %s19 = scalar_select %p16, %s17, %s18
    %p22 = pneg %p16
    %p23 = scmp.eq.s32.totalorder %s7, 1
    %p24 = por %p22, %p23
    %p25 = scmp.ne.s32.totalorder %s17, %s20
    %p26 = scmp.eq.s32.totalorder %s7, 0
    %p27 = por %p25, %p26
    %p28 = scmp.ne.s32.totalorder %s17, %s20
    %p29 = scmp.eq.s32.totalorder %s12, 1
    %p30 = por %p28, %p29
    %p31 = scmp.ne.s32.totalorder %s20, %s21
    %p32 = scmp.eq.s32.totalorder %s12, 0
    %p33 = por %p31, %p32
    %p34 = scmp.ne.s32.totalorder %s20, %s21
    %p35 = scmp.eq.s32.totalorder %s13, 1
    %p36 = por %p34, %p35
    %p38 = scmp.ne.s32.totalorder %s21, %s37
    %p39 = scmp.eq.s32.totalorder %s13, 0
    %p40 = por %p38, %p39
    %s41 = ssub.s32 %s7, %s14
    %p42 = scmp.eq.s32.totalorder %s41, 0
    %s44 = sadd.s32 %s43, 1
    %s45 = scalar_select %p42, %s43, %s44
    %p48 = pneg %p42
    %p49 = scmp.eq.s32.totalorder %s7, 1
    %p50 = por %p48, %p49
    %p51 = scmp.ne.s32.totalorder %s43, %s46
    %p52 = scmp.eq.s32.totalorder %s7, 0
    %p53 = por %p51, %p52
    %p54 = scmp.ne.s32.totalorder %s43, %s46
    %p55 = scmp.eq.s32.totalorder %s12, 1
    %p56 = por %p54, %p55
    %p57 = scmp.ne.s32.totalorder %s46, %s47
    %p58 = scmp.eq.s32.totalorder %s12, 0
    %p59 = por %p57, %p58
    %p60 = scmp.ne.s32.totalorder %s46, %s47
    %p61 = scmp.eq.s32.totalorder %s13, 1
    %p62 = por %p60, %p61
    %p64 = scmp.ne.s32.totalorder %s47, %s63
    %p65 = scmp.eq.s32.totalorder %s13, 0
    %p66 = por %p64, %p65
    %p67 = scmp.le.s32.totalorder 1, %s7
    %p68 = scmp.lt.s32.totalorder %s7, 3
    %p69 = pnand %p67, %p68
    %p70 = pneg %p69
    // Predicated region
    $region9: #{net4ht_forward.6} parent=5 // pred_check
      _
    $region10: #{net4ht_forward.6} parent=5 // pred_check_branch
      %72 = sbr.rel (%p69) target = $region12
    $region11: #{net4ht_forward.6} parent=5 // pred_region
      %s73 = ssub.s32 %s7, 1
    $region12: #{net4ht_forward.6} parent=5 // pred_fallthru
      _
    %p74 = scmp.lt.s32.totalorder %s7, 2
    // Predicated region
    $region13: #{net4ht_forward.6} parent=5 // pred_check
      %p75 = pneg %p74
    $region14: #{net4ht_forward.6} parent=5 // pred_check_branch
      %77 = sbr.rel (%p75) target = $region16
    $region15: #{net4ht_forward.6} parent=5 // pred_region
      // Predicated region
      $region17: #{net4ht_forward.6} parent=15 // pred_check
        %p78 = pneg %p27
      $region18: #{net4ht_forward.6} parent=15 // pred_check_branch
        %80 = sbr.rel (%p78) target = $region20
      $region19: #{net4ht_forward.6} parent=15 // pred_region
        %s81 = smul.u32 7, %s7
        %p82 = scmp.lt.s32.totalorder %s81, 13
        %s83 = scalar_select %p82, %s81, 13
        %s84 = smul.addr %s83, 14
        %s85 = smul.addr %s84, 2
        %s86 = scalar_lea.vmem %s0, %s85
        %s87 = smul.u32 7, %s7
      $region20: #{net4ht_forward.6} parent=15 // pred_fallthru
        _
    $region16: #{net4ht_forward.6} parent=5 // pred_fallthru
      _
    %p88 = scmp.le.s32.totalorder 1, %s7
    %p89 = scmp.lt.s32.totalorder %s7, 3
    %p90 = pnand %p88, %p89
    %p91 = pneg %p90
    // Predicated region
    $region21: #{net4ht_forward.6} parent=5 // pred_check
      _
    $region22: #{net4ht_forward.6} parent=5 // pred_check_branch
      %93 = sbr.rel (%p90) target = $region24
    $region23: #{net4ht_forward.6} parent=5 // pred_region
      %s94 = ssub.s32 %s7, 1
      %s95 = smul.u32 7, %s12
      %p96 = scmp.lt.s32.totalorder %s95, 13
      %s97 = scalar_select %p96, %s95, 13
      %s98 = smul.addr %s97, 14
      %s99 = smul.addr %s98, 2
      %s100 = scalar_lea.vmem %s0, %s99
      %p101 = pneg %p33
      %p102 = pneg %p30
      %p103 = pneg %p59
      %p104 = pneg %p56
      %s105 = smul.u32 7, %s12
      %p106 = scmp.lt.s32.totalorder %s105, 13
      %s107 = scalar_select %p106, %s105, 13
      %s108 = smul.addr %s107, 8
      %s109 = scalar_lea.vmem %s1, %s108
      %s110 = smul.u32 7, %s12
      %p111 = scmp.lt.s32.totalorder %s110, 13
      %s112 = scalar_select %p111, %s110, 13
      %s113 = smul.addr %s112, 14
      %s114 = smul.addr %s113, 2
      %s115 = scalar_lea.vmem %s0, %s114
      %s116 = smul.u32 7, %s12
      %s117 = smul.u32 7, %s12
      %p118 = scmp.lt.s32.totalorder %s117, 13
      %s119 = scalar_select %p118, %s117, 13
      %s120 = smul.addr %s119, 8
      %s121 = scalar_lea.vmem %s1, %s120
      %s122 = smul.u32 7, %s12
      %v123 = vld [vmem:[%s115] sm:$0x3]
      %v124 = vld [vmem:[%s115 + $0x2] sm:$0x3]
      %v125 = vld [vmem:[%s115 + $0x4] sm:$0x3]
      %v126 = vld [vmem:[%s115 + $0x6] sm:$0x3]
      %v127 = vld [vmem:[%s115 + $0x8] sm:$0x3]
      %v128 = vld [vmem:[%s115 + $0xa] sm:$0x3]
      %v129 = vld [vmem:[%s115 + $0xc] sm:$0x3]
      %v130 = vld [vmem:[%s115 + $0x1c] sm:$0x3]
      %v131 = vld [vmem:[%s115 + $0x1e] sm:$0x3]
      %v132 = vld [vmem:[%s115 + $0x20] sm:$0x3]
      %v133 = vld [vmem:[%s115 + $0x22] sm:$0x3]
      %v134 = vld [vmem:[%s115 + $0x24] sm:$0x3]
      %v135 = vld [vmem:[%s115 + $0x26] sm:$0x3]
      %v136 = vld [vmem:[%s115 + $0x28] sm:$0x3]
      %v137 = vld [vmem:[%s115 + $0x38] sm:$0x3]
      %v138 = vld [vmem:[%s115 + $0x3a] sm:$0x3]
      %v139 = vld [vmem:[%s115 + $0x3c] sm:$0x3]
      %v140 = vld [vmem:[%s115 + $0x3e] sm:$0x3]
      %v141 = vld [vmem:[%s115 + $0x40] sm:$0x3]
      %v142 = vld [vmem:[%s115 + $0x42] sm:$0x3]
      %v143 = vld [vmem:[%s115 + $0x44] sm:$0x3]
      %v144 = vld [vmem:[%s115 + $0x54] sm:$0x3]
      %v145 = vld [vmem:[%s115 + $0x56] sm:$0x3]
      %v146 = vld [vmem:[%s115 + $0x58] sm:$0x3]
      %v147 = vld [vmem:[%s115 + $0x5a] sm:$0x3]
      %v148 = vld [vmem:[%s115 + $0x5c] sm:$0x3]
      %v149 = vld [vmem:[%s115 + $0x5e] sm:$0x3]
      %v150 = vld [vmem:[%s115 + $0x60] sm:$0x3]
      %v151 = vld [vmem:[%s115 + $0x70] sm:$0x3]
      %v152 = vld [vmem:[%s115 + $0x72] sm:$0x3]
      %v153 = vld [vmem:[%s115 + $0x74] sm:$0x3]
      %v154 = vld [vmem:[%s115 + $0x76] sm:$0x3]
      %v155 = vld [vmem:[%s115 + $0x78] sm:$0x3]
      %v156 = vld [vmem:[%s115 + $0x7a] sm:$0x3]
      %v157 = vld [vmem:[%s115 + $0x7c] sm:$0x3]
      %v158 = vld [vmem:[%s115 + $0x8c] sm:$0x3]
      %v159 = vld [vmem:[%s115 + $0x8e] sm:$0x3]
      %v160 = vld [vmem:[%s115 + $0x90] sm:$0x3]
      %v161 = vld [vmem:[%s115 + $0x92] sm:$0x3]
      %v162 = vld [vmem:[%s115 + $0x94] sm:$0x3]
      %v163 = vld [vmem:[%s115 + $0x96] sm:$0x3]
      %v164 = vld [vmem:[%s115 + $0x98] sm:$0x3]
      %v165 = vld [vmem:[%s115 + $0xa8] sm:$0x3]
      %v166 = vld [vmem:[%s115 + $0xaa] sm:$0x3]
      %v167 = vld [vmem:[%s115 + $0xac] sm:$0x3]
      %v168 = vld [vmem:[%s115 + $0xae] sm:$0x3]
      %v169 = vld [vmem:[%s115 + $0xb0] sm:$0x3]
      %v170 = vld [vmem:[%s115 + $0xb2] sm:$0x3]
      %v171 = vld [vmem:[%s115 + $0xb4] sm:$0x3]
      %s172 = scalar_lea.vmem %s115, 14
      %v173 = vld [vmem:[%s172] sm:$0x3]
      %v174 = vld [vmem:[%s172 + $0x2] sm:$0x3]
      %v175 = vld [vmem:[%s172 + $0x4] sm:$0x3]
      %v176 = vld [vmem:[%s172 + $0x6] sm:$0x3]
      %v177 = vld [vmem:[%s172 + $0x8] sm:$0x3]
      %v178 = vld [vmem:[%s172 + $0xa] sm:$0x3]
      %v179 = vld [vmem:[%s172 + $0xc] sm:$0x3]
      %v180 = vld [vmem:[%s172 + $0x1c] sm:$0x3]
      %v181 = vld [vmem:[%s172 + $0x1e] sm:$0x3]
      %v182 = vld [vmem:[%s172 + $0x20] sm:$0x3]
      %v183 = vld [vmem:[%s172 + $0x22] sm:$0x3]
      %v184 = vld [vmem:[%s172 + $0x24] sm:$0x3]
      %v185 = vld [vmem:[%s172 + $0x26] sm:$0x3]
      %v186 = vld [vmem:[%s172 + $0x28] sm:$0x3]
      %v187 = vld [vmem:[%s172 + $0x38] sm:$0x3]
      %v188 = vld [vmem:[%s172 + $0x3a] sm:$0x3]
      %v189 = vld [vmem:[%s172 + $0x3c] sm:$0x3]
      %v190 = vld [vmem:[%s172 + $0x3e] sm:$0x3]
      %v191 = vld [vmem:[%s172 + $0x40] sm:$0x3]
      %v192 = vld [vmem:[%s172 + $0x42] sm:$0x3]
      %v193 = vld [vmem:[%s172 + $0x44] sm:$0x3]
      %v194 = vld [vmem:[%s172 + $0x54] sm:$0x3]
      %v195 = vld [vmem:[%s172 + $0x56] sm:$0x3]
      %v196 = vld [vmem:[%s172 + $0x58] sm:$0x3]
      %v197 = vld [vmem:[%s172 + $0x5a] sm:$0x3]
      %v198 = vld [vmem:[%s172 + $0x5c] sm:$0x3]
      %v199 = vld [vmem:[%s172 + $0x5e] sm:$0x3]
      %v200 = vld [vmem:[%s172 + $0x60] sm:$0x3]
      %v201 = vld [vmem:[%s172 + $0x70] sm:$0x3]
      %v202 = vld [vmem:[%s172 + $0x72] sm:$0x3]
      %v203 = vld [vmem:[%s172 + $0x74] sm:$0x3]
      %v204 = vld [vmem:[%s172 + $0x76] sm:$0x3]
      %v205 = vld [vmem:[%s172 + $0x78] sm:$0x3]
      %v206 = vld [vmem:[%s172 + $0x7a] sm:$0x3]
      %v207 = vld [vmem:[%s172 + $0x7c] sm:$0x3]
      %v208 = vld [vmem:[%s172 + $0x8c] sm:$0x3]
      %v209 = vld [vmem:[%s172 + $0x8e] sm:$0x3]
      %v210 = vld [vmem:[%s172 + $0x90] sm:$0x3]
      %v211 = vld [vmem:[%s172 + $0x92] sm:$0x3]
      %v212 = vld [vmem:[%s172 + $0x94] sm:$0x3]
      %v213 = vld [vmem:[%s172 + $0x96] sm:$0x3]
      %v214 = vld [vmem:[%s172 + $0x98] sm:$0x3]
      %v215 = vld [vmem:[%s172 + $0xa8] sm:$0x3]
      %v216 = vld [vmem:[%s172 + $0xaa] sm:$0x3]
      %v217 = vld [vmem:[%s172 + $0xac] sm:$0x3]
      %v218 = vld [vmem:[%s172 + $0xae] sm:$0x3]
      %v219 = vld [vmem:[%s172 + $0xb0] sm:$0x3]
      %v220 = vld [vmem:[%s172 + $0xb2] sm:$0x3]
      %v221 = vld [vmem:[%s172 + $0xb4] sm:$0x3]
      %v222 = vmax.f32 %v123, %v173
      %v223 = vmax.f32 %v124, %v174
      %v224 = vmax.f32 %v125, %v175
      %v225 = vmax.f32 %v126, %v176
      %v226 = vmax.f32 %v127, %v177
      %v227 = vmax.f32 %v128, %v178
      %v228 = vmax.f32 %v129, %v179
      %v229 = vmax.f32 %v130, %v180
      %v230 = vmax.f32 %v131, %v181
      %v231 = vmax.f32 %v132, %v182
      %v232 = vmax.f32 %v133, %v183
      %v233 = vmax.f32 %v134, %v184
      %v234 = vmax.f32 %v135, %v185
      %v235 = vmax.f32 %v136, %v186
      %v236 = vmax.f32 %v137, %v187
      %v237 = vmax.f32 %v138, %v188
      %v238 = vmax.f32 %v139, %v189
      %v239 = vmax.f32 %v140, %v190
      %v240 = vmax.f32 %v141, %v191
      %v241 = vmax.f32 %v142, %v192
      %v242 = vmax.f32 %v143, %v193
      %v243 = vmax.f32 %v144, %v194
      %v244 = vmax.f32 %v145, %v195
      %v245 = vmax.f32 %v146, %v196
      %v246 = vmax.f32 %v147, %v197
      %v247 = vmax.f32 %v148, %v198
      %v248 = vmax.f32 %v149, %v199
      %v249 = vmax.f32 %v150, %v200
      %v250 = vmax.f32 %v151, %v201
      %v251 = vmax.f32 %v152, %v202
      %v252 = vmax.f32 %v153, %v203
      %v253 = vmax.f32 %v154, %v204
      %v254 = vmax.f32 %v155, %v205
      %v255 = vmax.f32 %v156, %v206
      %v256 = vmax.f32 %v157, %v207
      %v257 = vmax.f32 %v158, %v208
      %v258 = vmax.f32 %v159, %v209
      %v259 = vmax.f32 %v160, %v210
      %v260 = vmax.f32 %v161, %v211
      %v261 = vmax.f32 %v162, %v212
      %v262 = vmax.f32 %v163, %v213
      %v263 = vmax.f32 %v164, %v214
      %v264 = vmax.f32 %v165, %v215
      %v265 = vmax.f32 %v166, %v216
      %v266 = vmax.f32 %v167, %v217
      %v267 = vmax.f32 %v168, %v218
      %v268 = vmax.f32 %v169, %v219
      %v269 = vmax.f32 %v170, %v220
      %v270 = vmax.f32 %v171, %v221
      %vm271 = vcmask 517120
      %v272 = vsel %vm271, %v222, -inf
      %v273 = vrot.slane %v272, 4
      %v274 = vmax.f32 %v272, %v273
      %v275 = vrot.slane %v274, 2
      %v276 = vmax.f32 %v274, %v275
      %v277 = vrot.slane %v276, 1
      %v278 = vmax.f32 %v276, %v277
      %v279 = vsel %vm271, %v223, -inf
      %v280 = vrot.slane %v279, 4
      %v281 = vmax.f32 %v279, %v280
      %v282 = vrot.slane %v281, 2
      %v283 = vmax.f32 %v281, %v282
      %v284 = vrot.slane %v283, 1
      %v285 = vmax.f32 %v283, %v284
      %v286 = vsel %vm271, %v224, -inf
      %v287 = vrot.slane %v286, 4
      %v288 = vmax.f32 %v286, %v287
      %v289 = vrot.slane %v288, 2
      %v290 = vmax.f32 %v288, %v289
      %v291 = vrot.slane %v290, 1
      %v292 = vmax.f32 %v290, %v291
      %v293 = vsel %vm271, %v225, -inf
      %v294 = vrot.slane %v293, 4
      %v295 = vmax.f32 %v293, %v294
      %v296 = vrot.slane %v295, 2
      %v297 = vmax.f32 %v295, %v296
      %v298 = vrot.slane %v297, 1
      %v299 = vmax.f32 %v297, %v298
      %v300 = vsel %vm271, %v226, -inf
      %v301 = vrot.slane %v300, 4
      %v302 = vmax.f32 %v300, %v301
      %v303 = vrot.slane %v302, 2
      %v304 = vmax.f32 %v302, %v303
      %v305 = vrot.slane %v304, 1
      %v306 = vmax.f32 %v304, %v305
      %v307 = vsel %vm271, %v227, -inf
      %v308 = vrot.slane %v307, 4
      %v309 = vmax.f32 %v307, %v308
      %v310 = vrot.slane %v309, 2
      %v311 = vmax.f32 %v309, %v310
      %v312 = vrot.slane %v311, 1
      %v313 = vmax.f32 %v311, %v312
      %v314 = vsel %vm271, %v228, -inf
      %v315 = vrot.slane %v314, 4
      %v316 = vmax.f32 %v314, %v315
      %v317 = vrot.slane %v316, 2
      %v318 = vmax.f32 %v316, %v317
      %v319 = vrot.slane %v318, 1
      %v320 = vmax.f32 %v318, %v319
      %v321 = vsel %vm271, %v229, -inf
      %v322 = vrot.slane %v321, 4
      %v323 = vmax.f32 %v321, %v322
      %v324 = vrot.slane %v323, 2
      %v325 = vmax.f32 %v323, %v324
      %v326 = vrot.slane %v325, 1
      %v327 = vmax.f32 %v325, %v326
      %v328 = vsel %vm271, %v230, -inf
      %v329 = vrot.slane %v328, 4
      %v330 = vmax.f32 %v328, %v329
      %v331 = vrot.slane %v330, 2
      %v332 = vmax.f32 %v330, %v331
      %v333 = vrot.slane %v332, 1
      %v334 = vmax.f32 %v332, %v333
      %v335 = vsel %vm271, %v231, -inf
      %v336 = vrot.slane %v335, 4
      %v337 = vmax.f32 %v335, %v336
      %v338 = vrot.slane %v337, 2
      %v339 = vmax.f32 %v337, %v338
      %v340 = vrot.slane %v339, 1
      %v341 = vmax.f32 %v339, %v340
      %v342 = vsel %vm271, %v232, -inf
      %v343 = vrot.slane %v342, 4
      %v344 = vmax.f32 %v342, %v343
      %v345 = vrot.slane %v344, 2
      %v346 = vmax.f32 %v344, %v345
      %v347 = vrot.slane %v346, 1
      %v348 = vmax.f32 %v346, %v347
      %v349 = vsel %vm271, %v233, -inf
      %v350 = vrot.slane %v349, 4
      %v351 = vmax.f32 %v349, %v350
      %v352 = vrot.slane %v351, 2
      %v353 = vmax.f32 %v351, %v352
      %v354 = vrot.slane %v353, 1
      %v355 = vmax.f32 %v353, %v354
      %v356 = vsel %vm271, %v234, -inf
      %v357 = vrot.slane %v356, 4
      %v358 = vmax.f32 %v356, %v357
      %v359 = vrot.slane %v358, 2
      %v360 = vmax.f32 %v358, %v359
      %v361 = vrot.slane %v360, 1
      %v362 = vmax.f32 %v360, %v361
      %v363 = vsel %vm271, %v235, -inf
      %v364 = vrot.slane %v363, 4
      %v365 = vmax.f32 %v363, %v364
      %v366 = vrot.slane %v365, 2
      %v367 = vmax.f32 %v365, %v366
      %v368 = vrot.slane %v367, 1
      %v369 = vmax.f32 %v367, %v368
      %v370 = vsel %vm271, %v236, -inf
      %v371 = vrot.slane %v370, 4
      %v372 = vmax.f32 %v370, %v371
      %v373 = vrot.slane %v372, 2
      %v374 = vmax.f32 %v372, %v373
      %v375 = vrot.slane %v374, 1
      %v376 = vmax.f32 %v374, %v375
      %v377 = vsel %vm271, %v237, -inf
      %v378 = vrot.slane %v377, 4
      %v379 = vmax.f32 %v377, %v378
      %v380 = vrot.slane %v379, 2
      %v381 = vmax.f32 %v379, %v380
      %v382 = vrot.slane %v381, 1
      %v383 = vmax.f32 %v381, %v382
      %v384 = vsel %vm271, %v238, -inf
      %v385 = vrot.slane %v384, 4
      %v386 = vmax.f32 %v384, %v385
      %v387 = vrot.slane %v386, 2
      %v388 = vmax.f32 %v386, %v387
      %v389 = vrot.slane %v388, 1
      %v390 = vmax.f32 %v388, %v389
      %v391 = vsel %vm271, %v239, -inf
      %v392 = vrot.slane %v391, 4
      %v393 = vmax.f32 %v391, %v392
      %v394 = vrot.slane %v393, 2
      %v395 = vmax.f32 %v393, %v394
      %v396 = vrot.slane %v395, 1
      %v397 = vmax.f32 %v395, %v396
      %v398 = vsel %vm271, %v240, -inf
      %v399 = vrot.slane %v398, 4
      %v400 = vmax.f32 %v398, %v399
      %v401 = vrot.slane %v400, 2
      %v402 = vmax.f32 %v400, %v401
      %v403 = vrot.slane %v402, 1
      %v404 = vmax.f32 %v402, %v403
      %v405 = vsel %vm271, %v241, -inf
      %v406 = vrot.slane %v405, 4
      %v407 = vmax.f32 %v405, %v406
      %v408 = vrot.slane %v407, 2
      %v409 = vmax.f32 %v407, %v408
      %v410 = vrot.slane %v409, 1
      %v411 = vmax.f32 %v409, %v410
      %v412 = vsel %vm271, %v242, -inf
      %v413 = vrot.slane %v412, 4
      %v414 = vmax.f32 %v412, %v413
      %v415 = vrot.slane %v414, 2
      %v416 = vmax.f32 %v414, %v415
      %v417 = vrot.slane %v416, 1
      %v418 = vmax.f32 %v416, %v417
      %v419 = vsel %vm271, %v243, -inf
      %v420 = vrot.slane %v419, 4
      %v421 = vmax.f32 %v419, %v420
      %v422 = vrot.slane %v421, 2
      %v423 = vmax.f32 %v421, %v422
      %v424 = vrot.slane %v423, 1
      %v425 = vmax.f32 %v423, %v424
      %v426 = vsel %vm271, %v244, -inf
      %v427 = vrot.slane %v426, 4
      %v428 = vmax.f32 %v426, %v427
      %v429 = vrot.slane %v428, 2
      %v430 = vmax.f32 %v428, %v429
      %v431 = vrot.slane %v430, 1
      %v432 = vmax.f32 %v430, %v431
      %v433 = vsel %vm271, %v245, -inf
      %v434 = vrot.slane %v433, 4
      %v435 = vmax.f32 %v433, %v434
      %v436 = vrot.slane %v435, 2
      %v437 = vmax.f32 %v435, %v436
      %v438 = vrot.slane %v437, 1
      %v439 = vmax.f32 %v437, %v438
      %v440 = vsel %vm271, %v246, -inf
      %v441 = vrot.slane %v440, 4
      %v442 = vmax.f32 %v440, %v441
      %v443 = vrot.slane %v442, 2
      %v444 = vmax.f32 %v442, %v443
      %v445 = vrot.slane %v444, 1
      %v446 = vmax.f32 %v444, %v445
      %v447 = vsel %vm271, %v247, -inf
      %v448 = vrot.slane %v447, 4
      %v449 = vmax.f32 %v447, %v448
      %v450 = vrot.slane %v449, 2
      %v451 = vmax.f32 %v449, %v450
      %v452 = vrot.slane %v451, 1
      %v453 = vmax.f32 %v451, %v452
      %v454 = vsel %vm271, %v248, -inf
      %v455 = vrot.slane %v454, 4
      %v456 = vmax.f32 %v454, %v455
      %v457 = vrot.slane %v456, 2
      %v458 = vmax.f32 %v456, %v457
      %v459 = vrot.slane %v458, 1
      %v460 = vmax.f32 %v458, %v459
      %v461 = vsel %vm271, %v249, -inf
      %v462 = vrot.slane %v461, 4
      %v463 = vmax.f32 %v461, %v462
      %v464 = vrot.slane %v463, 2
      %v465 = vmax.f32 %v463, %v464
      %v466 = vrot.slane %v465, 1
      %v467 = vmax.f32 %v465, %v466
      %v468 = vsel %vm271, %v250, -inf
      %v469 = vrot.slane %v468, 4
      %v470 = vmax.f32 %v468, %v469
      %v471 = vrot.slane %v470, 2
      %v472 = vmax.f32 %v470, %v471
      %v473 = vrot.slane %v472, 1
      %v474 = vmax.f32 %v472, %v473
      %v475 = vsel %vm271, %v251, -inf
      %v476 = vrot.slane %v475, 4
      %v477 = vmax.f32 %v475, %v476
      %v478 = vrot.slane %v477, 2
      %v479 = vmax.f32 %v477, %v478
      %v480 = vrot.slane %v479, 1
      %v481 = vmax.f32 %v479, %v480
      %v482 = vsel %vm271, %v252, -inf
      %v483 = vrot.slane %v482, 4
      %v484 = vmax.f32 %v482, %v483
      %v485 = vrot.slane %v484, 2
      %v486 = vmax.f32 %v484, %v485
      %v487 = vrot.slane %v486, 1
      %v488 = vmax.f32 %v486, %v487
      %v489 = vsel %vm271, %v253, -inf
      %v490 = vrot.slane %v489, 4
      %v491 = vmax.f32 %v489, %v490
      %v492 = vrot.slane %v491, 2
      %v493 = vmax.f32 %v491, %v492
      %v494 = vrot.slane %v493, 1
      %v495 = vmax.f32 %v493, %v494
      %v496 = vsel %vm271, %v254, -inf
      %v497 = vrot.slane %v496, 4
      %v498 = vmax.f32 %v496, %v497
      %v499 = vrot.slane %v498, 2
      %v500 = vmax.f32 %v498, %v499
      %v501 = vrot.slane %v500, 1
      %v502 = vmax.f32 %v500, %v501
      %v503 = vsel %vm271, %v255, -inf
      %v504 = vrot.slane %v503, 4
      %v505 = vmax.f32 %v503, %v504
      %v506 = vrot.slane %v505, 2
      %v507 = vmax.f32 %v505, %v506
      %v508 = vrot.slane %v507, 1
      %v509 = vmax.f32 %v507, %v508
      %v510 = vsel %vm271, %v256, -inf
      %v511 = vrot.slane %v510, 4
      %v512 = vmax.f32 %v510, %v511
      %v513 = vrot.slane %v512, 2
      %v514 = vmax.f32 %v512, %v513
      %v515 = vrot.slane %v514, 1
      %v516 = vmax.f32 %v514, %v515
      %v517 = vsel %vm271, %v257, -inf
      %v518 = vrot.slane %v517, 4
      %v519 = vmax.f32 %v517, %v518
      %v520 = vrot.slane %v519, 2
      %v521 = vmax.f32 %v519, %v520
      %v522 = vrot.slane %v521, 1
      %v523 = vmax.f32 %v521, %v522
      %v524 = vsel %vm271, %v258, -inf
      %v525 = vrot.slane %v524, 4
      %v526 = vmax.f32 %v524, %v525
      %v527 = vrot.slane %v526, 2
      %v528 = vmax.f32 %v526, %v527
      %v529 = vrot.slane %v528, 1
      %v530 = vmax.f32 %v528, %v529
      %v531 = vsel %vm271, %v259, -inf
      %v532 = vrot.slane %v531, 4
      %v533 = vmax.f32 %v531, %v532
      %v534 = vrot.slane %v533, 2
      %v535 = vmax.f32 %v533, %v534
      %v536 = vrot.slane %v535, 1
      %v537 = vmax.f32 %v535, %v536
      %v538 = vsel %vm271, %v260, -inf
      %v539 = vrot.slane %v538, 4
      %v540 = vmax.f32 %v538, %v539
      %v541 = vrot.slane %v540, 2
      %v542 = vmax.f32 %v540, %v541
      %v543 = vrot.slane %v542, 1
      %v544 = vmax.f32 %v542, %v543
      %v545 = vsel %vm271, %v261, -inf
      %v546 = vrot.slane %v545, 4
      %v547 = vmax.f32 %v545, %v546
      %v548 = vrot.slane %v547, 2
      %v549 = vmax.f32 %v547, %v548
      %v550 = vrot.slane %v549, 1
      %v551 = vmax.f32 %v549, %v550
      %v552 = vsel %vm271, %v262, -inf
      %v553 = vrot.slane %v552, 4
      %v554 = vmax.f32 %v552, %v553
      %v555 = vrot.slane %v554, 2
      %v556 = vmax.f32 %v554, %v555
      %v557 = vrot.slane %v556, 1
      %v558 = vmax.f32 %v556, %v557
      %v559 = vsel %vm271, %v263, -inf
      %v560 = vrot.slane %v559, 4
      %v561 = vmax.f32 %v559, %v560
      %v562 = vrot.slane %v561, 2
      %v563 = vmax.f32 %v561, %v562
      %v564 = vrot.slane %v563, 1
      %v565 = vmax.f32 %v563, %v564
      %v566 = vsel %vm271, %v264, -inf
      %v567 = vrot.slane %v566, 4
      %v568 = vmax.f32 %v566, %v567
      %v569 = vrot.slane %v568, 2
      %v570 = vmax.f32 %v568, %v569
      %v571 = vrot.slane %v570, 1
      %v572 = vmax.f32 %v570, %v571
      %v573 = vsel %vm271, %v265, -inf
      %v574 = vrot.slane %v573, 4
      %v575 = vmax.f32 %v573, %v574
      %v576 = vrot.slane %v575, 2
      %v577 = vmax.f32 %v575, %v576
      %v578 = vrot.slane %v577, 1
      %v579 = vmax.f32 %v577, %v578
      %v580 = vsel %vm271, %v266, -inf
      %v581 = vrot.slane %v580, 4
      %v582 = vmax.f32 %v580, %v581
      %v583 = vrot.slane %v582, 2
      %v584 = vmax.f32 %v582, %v583
      %v585 = vrot.slane %v584, 1
      %v586 = vmax.f32 %v584, %v585
      %v587 = vsel %vm271, %v267, -inf
      %v588 = vrot.slane %v587, 4
      %v589 = vmax.f32 %v587, %v588
      %v590 = vrot.slane %v589, 2
      %v591 = vmax.f32 %v589, %v590
      %v592 = vrot.slane %v591, 1
      %v593 = vmax.f32 %v591, %v592
      %v594 = vsel %vm271, %v268, -inf
      %v595 = vrot.slane %v594, 4
      %v596 = vmax.f32 %v594, %v595
      %v597 = vrot.slane %v596, 2
      %v598 = vmax.f32 %v596, %v597
      %v599 = vrot.slane %v598, 1
      %v600 = vmax.f32 %v598, %v599
      %v601 = vsel %vm271, %v269, -inf
      %v602 = vrot.slane %v601, 4
      %v603 = vmax.f32 %v601, %v602
      %v604 = vrot.slane %v603, 2
      %v605 = vmax.f32 %v603, %v604
      %v606 = vrot.slane %v605, 1
      %v607 = vmax.f32 %v605, %v606
      %v608 = vsel %vm271, %v270, -inf
      %v609 = vrot.slane %v608, 4
      %v610 = vmax.f32 %v608, %v609
      %v611 = vrot.slane %v610, 2
      %v612 = vmax.f32 %v610, %v611
      %v613 = vrot.slane %v612, 1
      %v614 = vmax.f32 %v612, %v613
      %vm664 = vcmask 1041409
      %v665 = vsel %vm664, %v285, %v278
      %vm666 = vcmask 1042434
      %v667 = vsel %vm666, %v292, %v665
      %vm668 = vcmask 1043459
      %v669 = vsel %vm668, %v299, %v667
      %vm670 = vcmask 1044484
      %v671 = vsel %vm670, %v306, %v669
      %vm672 = vcmask 1045509
      %v673 = vsel %vm672, %v313, %v671
      %vm674 = vcmask 1046534
      %v675 = vsel %vm674, %v320, %v673
      %v676 = vsel %vm664, %v334, %v327
      %v677 = vsel %vm666, %v341, %v676
      %v678 = vsel %vm668, %v348, %v677
      %v679 = vsel %vm670, %v355, %v678
      %v680 = vsel %vm672, %v362, %v679
      %v681 = vsel %vm674, %v369, %v680
      %v682 = vsel %vm664, %v383, %v376
      %v683 = vsel %vm666, %v390, %v682
      %v684 = vsel %vm668, %v397, %v683
      %v685 = vsel %vm670, %v404, %v684
      %v686 = vsel %vm672, %v411, %v685
      %v687 = vsel %vm674, %v418, %v686
      %v688 = vsel %vm664, %v432, %v425
      %v689 = vsel %vm666, %v439, %v688
      %v690 = vsel %vm668, %v446, %v689
      %v691 = vsel %vm670, %v453, %v690
      %v692 = vsel %vm672, %v460, %v691
      %v693 = vsel %vm674, %v467, %v692
      %v694 = vsel %vm664, %v481, %v474
      %v695 = vsel %vm666, %v488, %v694
      %v696 = vsel %vm668, %v495, %v695
      %v697 = vsel %vm670, %v502, %v696
      %v698 = vsel %vm672, %v509, %v697
      %v699 = vsel %vm674, %v516, %v698
      %v700 = vsel %vm664, %v530, %v523
      %v701 = vsel %vm666, %v537, %v700
      %v702 = vsel %vm668, %v544, %v701
      %v703 = vsel %vm670, %v551, %v702
      %v704 = vsel %vm672, %v558, %v703
      %v705 = vsel %vm674, %v565, %v704
      %v706 = vsel %vm664, %v579, %v572
      %v707 = vsel %vm666, %v586, %v706
      %v708 = vsel %vm668, %v593, %v707
      %v709 = vsel %vm670, %v600, %v708
      %v710 = vsel %vm672, %v607, %v709
      %v711 = vsel %vm674, %v614, %v710
      %vm719 = vcmask 522240
      %720 = vst.msk [vmem:[%s121] sm:$0x7f] %vm719, %v675
      %721 = vst.msk [vmem:[%s121 + $0x8] sm:$0x7f] %vm719, %v681
      %722 = vst.msk [vmem:[%s121 + $0x10] sm:$0x7f] %vm719, %v687
      %723 = vst.msk [vmem:[%s121 + $0x18] sm:$0x7f] %vm719, %v693
      %724 = vst.msk [vmem:[%s121 + $0x20] sm:$0x7f] %vm719, %v699
      %725 = vst.msk [vmem:[%s121 + $0x28] sm:$0x7f] %vm719, %v705
      %726 = vst.msk [vmem:[%s121 + $0x30] sm:$0x7f] %vm719, %v711
      %s727 = smul.u32 7, %s12
      %p728 = scmp.lt.s32.totalorder %s727, 13
      %s729 = scalar_select %p728, %s727, 13
      %s730 = smul.addr %s729, 8
      %s731 = scalar_lea.vmem %s1, %s730
      // Predicated region
      $region25: #{net4ht_forward.6} parent=23 // pred_check
        %p732 = pneg %p56
      $region26: #{net4ht_forward.6} parent=23 // pred_check_branch
        %734 = sbr.rel (%p732) target = $region28
      $region27: #{net4ht_forward.6} parent=23 // pred_region
        %s735 = smul.u32 7, %s12
      $region28: #{net4ht_forward.6} parent=23 // pred_fallthru
        _
    $region24: #{net4ht_forward.6} parent=5 // pred_fallthru
      _
    %p736 = scmp.le.s32.totalorder 2, %s7
    // Predicated region
    $region29: #{net4ht_forward.6} parent=5 // pred_check
      %p737 = pneg %p736
    $region30: #{net4ht_forward.6} parent=5 // pred_check_branch
      %739 = sbr.rel (%p737) target = $region32
    $region31: #{net4ht_forward.6} parent=5 // pred_region
      %s740 = ssub.s32 %s7, 2
      // Predicated region
      $region33: #{net4ht_forward.6} parent=31 // pred_check
        %p741 = pneg %p62
      $region34: #{net4ht_forward.6} parent=31 // pred_check_branch
        %743 = sbr.rel (%p741) target = $region36
      $region35: #{net4ht_forward.6} parent=31 // pred_region
        %s744 = smul.u32 7, %s13
        %p745 = scmp.lt.s32.totalorder %s744, 13
        %s746 = scalar_select %p745, %s744, 13
        %s747 = smul.addr %s746, 8
        %s748 = scalar_lea.vmem %s1, %s747
      $region36: #{net4ht_forward.6} parent=31 // pred_fallthru
        _
    $region32: #{net4ht_forward.6} parent=5 // pred_fallthru
      _
  $region6: #{net4ht_forward.6} parent=0 // loop_footer
    %s11 = sadd.s32 1, %s7
  $region7: #{net4ht_forward.6} parent=0 // loop_footer_branch
    %6 = sbr.rel target = $region3
  $region8: #{net4ht_forward.6} parent=0 // loop_exit
    _

// kernel: net4ht_forward.5
$region0: #{net4ht_forward.5}
  #allocation0 [shape = 'u32[]', space=smem, size = 0x4, offset = 0x4, fixed_abs, tag = 'smem constant byte address 0x4 - core index']
  #allocation1 [shape = 'u32[144,128]{1,0:T(1,128)}', space=vmem, size = 0x12000, scoped, tag = 'internal scratch']
  %s0 = inlined_call_operand.vmem [shape: f32[392,9], index: 0, kind: input, shape index: {}]
  %s1 = inlined_call_operand.hbm [shape: f32[9,64], index: 1, kind: input, shape index: {}]
  %s2 = inlined_call_operand.hbm [shape: f32[1,64], index: 2, kind: input, shape index: {}]
  %s3 = inlined_call_operand.vmem [shape: f32[392,64], index: 3, kind: output, shape index: {}]
  %s4 = sld [smem:[#allocation0]]
  $region34: #{net4ht_forward.5} parent=0
    _
  %s6 = ssub.s32 1, %s4
  %s7 = scalar_select 0, %s6, %s4
  $region1: #{net4ht_forward.5} parent=0
    #allocation2 [shape = 'u8[8192]{0}', space=vmem, size = 0x2000, scoped, tag = 'input window, operand 1, single buffered']
    #allocation3 [shape = 's32[1]{0}', space=sflag, size = 0x4, scoped, tag = 'scoped memory for net4ht_forward.5']
    #allocation4 [shape = 'u8[512]{0}', space=vmem, size = 0x400, scoped, tag = 'input window, operand 2, single buffered']
    #allocation5 [shape = 's32[1]{0}', space=sflag, size = 0x4, scoped, tag = 'scoped memory for net4ht_forward.5']
    %8 = vsyncpa [#allocation3], 0
    %9 = vsyncpa [#allocation5], 0
    // Predicated region
    $region2: #{net4ht_forward.5} parent=1 // pred_check
      _
    $region3: #{net4ht_forward.5} parent=1 // pred_check_branch
      %11 = sbr.rel (0) target = $region5
    $region4: #{net4ht_forward.5} parent=1 // pred_region
      _
    $region5: #{net4ht_forward.5} parent=1 // pred_fallthru
      _
    // Predicated region
    $region6: #{net4ht_forward.5} parent=1 // pred_check
      _
    $region7: #{net4ht_forward.5} parent=1 // pred_check_branch
      %13 = sbr.rel (0) target = $region9
    $region8: #{net4ht_forward.5} parent=1 // pred_region
      %s15 = ssub.s32 256, 256
      %16 = vsyncadd [#allocation3], %s15
      %s17 = sshll.u32 [#allocation2], 4
      %s18 = int_to_ptr.vmem [resolvable:$true] %s17
      %23 = dma.hbm_to_vmem [thread:$0]  %s1, 256, %s18, [#allocation3], 128, 128, 8
    $region9: #{net4ht_forward.5} parent=1 // pred_fallthru
      _
    // Predicated region
    $region10: #{net4ht_forward.5} parent=1 // pred_check
      _
    $region11: #{net4ht_forward.5} parent=1 // pred_check_branch
      %25 = sbr.rel (0) target = $region13
    $region12: #{net4ht_forward.5} parent=1 // pred_region
      %s27 = ssub.s32 16, 16
      %28 = vsyncadd [#allocation5], %s27
      %s30 = sshll.u32 [#allocation4], 4
      %s31 = int_to_ptr.vmem [resolvable:$true] %s30
      %33 = dma.hbm_to_vmem [thread:$0]  %s2, 16, %s31, [#allocation5]
    $region13: #{net4ht_forward.5} parent=1 // pred_fallthru
      _
    // Predicated region
    $region14: #{net4ht_forward.5} parent=1 // pred_check
      _
    $region15: #{net4ht_forward.5} parent=1 // pred_check_branch
      %35 = sbr.rel (0) target = $region17
    $region16: #{net4ht_forward.5} parent=1 // pred_region
      %36 = dma.done [#allocation3], 256
    $region17: #{net4ht_forward.5} parent=1 // pred_fallthru
      _
    // Predicated region
    $region18: #{net4ht_forward.5} parent=1 // pred_check
      _
    $region19: #{net4ht_forward.5} parent=1 // pred_check_branch
      %38 = sbr.rel (0) target = $region21
    $region20: #{net4ht_forward.5} parent=1 // pred_region
      %39 = dma.done [#allocation5], 16
    $region21: #{net4ht_forward.5} parent=1 // pred_fallthru
      _
    %p40 = scmp.eq.s32.totalorder 0, 0
    // Predicated region
    $region22: #{net4ht_forward.5} parent=1 // pred_check
      %p41 = pneg %p40
    $region23: #{net4ht_forward.5} parent=1 // pred_check_branch
      %43 = sbr.rel (%p41) target = $region25
    $region24: #{net4ht_forward.5} parent=1 // pred_region
      %v44 = vld [vmem:[#allocation4] sm:$0x1]
      %v46 = vlaneseq
      %v47 = vshrl.u32 %v46, 7
      %v48 = vsub.s32 0, %v47
      %v49 = vrot.slane %v44, %v48
      %vm51 = vcmask 523264
      %52 = vst.msk [vmem:[%s3] sm:$0xff] %vm51, %v49
      %53 = vst.msk [vmem:[%s3 + $0x8] sm:$0xff] %vm51, %v49
      %54 = vst.msk [vmem:[%s3 + $0x10] sm:$0xff] %vm51, %v49
      %55 = vst.msk [vmem:[%s3 + $0x18] sm:$0xff] %vm51, %v49
      %56 = vst.msk [vmem:[%s3 + $0x20] sm:$0xff] %vm51, %v49
      %57 = vst.msk [vmem:[%s3 + $0x28] sm:$0xff] %vm51, %v49
      %58 = vst.msk [vmem:[%s3 + $0x30] sm:$0xff] %vm51, %v49
      %59 = vst.msk [vmem:[%s3 + $0x38] sm:$0xff] %vm51, %v49
      %60 = vst.msk [vmem:[%s3 + $0x40] sm:$0xff] %vm51, %v49
      %61 = vst.msk [vmem:[%s3 + $0x48] sm:$0xff] %vm51, %v49
      %62 = vst.msk [vmem:[%s3 + $0x50] sm:$0xff] %vm51, %v49
      %63 = vst.msk [vmem:[%s3 + $0x58] sm:$0xff] %vm51, %v49
      %64 = vst.msk [vmem:[%s3 + $0x60] sm:$0xff] %vm51, %v49
      %65 = vst.msk [vmem:[%s3 + $0x68] sm:$0xff] %vm51, %v49
      %66 = vst.msk [vmem:[%s3 + $0x70] sm:$0xff] %vm51, %v49
      %67 = vst.msk [vmem:[%s3 + $0x78] sm:$0xff] %vm51, %v49
      %68 = vst.msk [vmem:[%s3 + $0x80] sm:$0xff] %vm51, %v49
      %69 = vst.msk [vmem:[%s3 + $0x88] sm:$0xff] %vm51, %v49
      %70 = vst.msk [vmem:[%s3 + $0x90] sm:$0xff] %vm51, %v49
      %71 = vst.msk [vmem:[%s3 + $0x98] sm:$0xff] %vm51, %v49
      %72 = vst.msk [vmem:[%s3 + $0xa0] sm:$0xff] %vm51, %v49
      %73 = vst.msk [vmem:[%s3 + $0xa8] sm:$0xff] %vm51, %v49
      %74 = vst.msk [vmem:[%s3 + $0xb0] sm:$0xff] %vm51, %v49
      %75 = vst.msk [vmem:[%s3 + $0xb8] sm:$0xff] %vm51, %v49
      %76 = vst.msk [vmem:[%s3 + $0xc0] sm:$0xff] %vm51, %v49
      %77 = vst.msk [vmem:[%s3 + $0xc8] sm:$0xff] %vm51, %v49
      %78 = vst.msk [vmem:[%s3 + $0xd0] sm:$0xff] %vm51, %v49
      %79 = vst.msk [vmem:[%s3 + $0xd8] sm:$0xff] %vm51, %v49
      %80 = vst.msk [vmem:[%s3 + $0xe0] sm:$0xff] %vm51, %v49
      %81 = vst.msk [vmem:[%s3 + $0xe8] sm:$0xff] %vm51, %v49
      %82 = vst.msk [vmem:[%s3 + $0xf0] sm:$0xff] %vm51, %v49
      %83 = vst.msk [vmem:[%s3 + $0xf8] sm:$0xff] %vm51, %v49
      %84 = vst.msk [vmem:[%s3 + $0x100] sm:$0xff] %vm51, %v49
      %85 = vst.msk [vmem:[%s3 + $0x108] sm:$0xff] %vm51, %v49
      %86 = vst.msk [vmem:[%s3 + $0x110] sm:$0xff] %vm51, %v49
      %87 = vst.msk [vmem:[%s3 + $0x118] sm:$0xff] %vm51, %v49
      %88 = vst.msk [vmem:[%s3 + $0x120] sm:$0xff] %vm51, %v49
      %89 = vst.msk [vmem:[%s3 + $0x128] sm:$0xff] %vm51, %v49
      %90 = vst.msk [vmem:[%s3 + $0x130] sm:$0xff] %vm51, %v49
      %91 = vst.msk [vmem:[%s3 + $0x138] sm:$0xff] %vm51, %v49
      %92 = vst.msk [vmem:[%s3 + $0x140] sm:$0xff] %vm51, %v49
      %93 = vst.msk [vmem:[%s3 + $0x148] sm:$0xff] %vm51, %v49
      %94 = vst.msk [vmem:[%s3 + $0x150] sm:$0xff] %vm51, %v49
      %95 = vst.msk [vmem:[%s3 + $0x158] sm:$0xff] %vm51, %v49
      %96 = vst.msk [vmem:[%s3 + $0x160] sm:$0xff] %vm51, %v49
      %97 = vst.msk [vmem:[%s3 + $0x168] sm:$0xff] %vm51, %v49
      %98 = vst.msk [vmem:[%s3 + $0x170] sm:$0xff] %vm51, %v49
      %99 = vst.msk [vmem:[%s3 + $0x178] sm:$0xff] %vm51, %v49
      %100 = vst.msk [vmem:[%s3 + $0x180] sm:$0xff] %vm51, %v49
    $region25: #{net4ht_forward.5} parent=1 // pred_fallthru
      _
    %v101 = vld [vmem:[%s3] sm:$0xff]
    %v102 = vld [vmem:[%s3 + $0x8] sm:$0xff]
    %v103 = vld [vmem:[%s3 + $0x10] sm:$0xff]
    %v104 = vld [vmem:[%s3 + $0x18] sm:$0xff]
    %v105 = vld [vmem:[%s3 + $0x20] sm:$0xff]
    %v106 = vld [vmem:[%s3 + $0x28] sm:$0xff]
    %v107 = vld [vmem:[%s3 + $0x30] sm:$0xff]
    %v108 = vld [vmem:[%s3 + $0x38] sm:$0xff]
    %v109 = vld [vmem:[%s3 + $0x40] sm:$0xff]
    %v110 = vld [vmem:[%s3 + $0x48] sm:$0xff]
    %v111 = vld [vmem:[%s3 + $0x50] sm:$0xff]
    %v112 = vld [vmem:[%s3 + $0x58] sm:$0xff]
    %v113 = vld [vmem:[%s3 + $0x60] sm:$0xff]
    %v114 = vld [vmem:[%s3 + $0x68] sm:$0xff]
    %v115 = vld [vmem:[%s3 + $0x70] sm:$0xff]
    %v116 = vld [vmem:[%s3 + $0x78] sm:$0xff]
    %v117 = vld [vmem:[%s3 + $0x80] sm:$0xff]
    %v118 = vld [vmem:[%s3 + $0x88] sm:$0xff]
    %v119 = vld [vmem:[%s3 + $0x90] sm:$0xff]
    %v120 = vld [vmem:[%s3 + $0x98] sm:$0xff]
    %v121 = vld [vmem:[%s3 + $0xa0] sm:$0xff]
    %v122 = vld [vmem:[%s3 + $0xa8] sm:$0xff]
    %v123 = vld [vmem:[%s3 + $0xb0] sm:$0xff]
    %v124 = vld [vmem:[%s3 + $0xb8] sm:$0xff]
    %v125 = vld [vmem:[%s3 + $0xc0] sm:$0xff]
    %v126 = vld [vmem:[%s3 + $0xc8] sm:$0xff]
    %v127 = vld [vmem:[%s3 + $0xd0] sm:$0xff]
    %v128 = vld [vmem:[%s3 + $0xd8] sm:$0xff]
    %v129 = vld [vmem:[%s3 + $0xe0] sm:$0xff]
    %v130 = vld [vmem:[%s3 + $0xe8] sm:$0xff]
    %v131 = vld [vmem:[%s3 + $0xf0] sm:$0xff]
    %v132 = vld [vmem:[%s3 + $0xf8] sm:$0xff]
    %v133 = vld [vmem:[%s3 + $0x100] sm:$0xff]
    %v134 = vld [vmem:[%s3 + $0x108] sm:$0xff]
    %v135 = vld [vmem:[%s3 + $0x110] sm:$0xff]
    %v136 = vld [vmem:[%s3 + $0x118] sm:$0xff]
    %v137 = vld [vmem:[%s3 + $0x120] sm:$0xff]
    %v138 = vld [vmem:[%s3 + $0x128] sm:$0xff]
    %v139 = vld [vmem:[%s3 + $0x130] sm:$0xff]
    %v140 = vld [vmem:[%s3 + $0x138] sm:$0xff]
    %v141 = vld [vmem:[%s3 + $0x140] sm:$0xff]
    %v142 = vld [vmem:[%s3 + $0x148] sm:$0xff]
    %v143 = vld [vmem:[%s3 + $0x150] sm:$0xff]
    %v144 = vld [vmem:[%s3 + $0x158] sm:$0xff]
    %v145 = vld [vmem:[%s3 + $0x160] sm:$0xff]
    %v146 = vld [vmem:[%s3 + $0x168] sm:$0xff]
    %v147 = vld [vmem:[%s3 + $0x170] sm:$0xff]
    %v148 = vld [vmem:[%s3 + $0x178] sm:$0xff]
    %v149 = vld [vmem:[%s3 + $0x180] sm:$0xff]
    %v150 = vld [vmem:[%s0] sm:$0xff]
    %v151 = vld [vmem:[%s0 + $0x8] sm:$0xff]
    %v152 = vld [vmem:[%s0 + $0x10] sm:$0xff]
    %v153 = vld [vmem:[%s0 + $0x18] sm:$0xff]
    %v154 = vld [vmem:[%s0 + $0x20] sm:$0xff]
    %v155 = vld [vmem:[%s0 + $0x28] sm:$0xff]
    %v156 = vld [vmem:[%s0 + $0x30] sm:$0xff]
    %v157 = vld [vmem:[%s0 + $0x38] sm:$0xff]
    %v158 = vld [vmem:[%s0 + $0x40] sm:$0xff]
    %v159 = vld [vmem:[%s0 + $0x48] sm:$0xff]
    %v160 = vld [vmem:[%s0 + $0x50] sm:$0xff]
    %v161 = vld [vmem:[%s0 + $0x58] sm:$0xff]
    %v162 = vld [vmem:[%s0 + $0x60] sm:$0xff]
    %v163 = vld [vmem:[%s0 + $0x68] sm:$0xff]
    %v164 = vld [vmem:[%s0 + $0x70] sm:$0xff]
    %v165 = vld [vmem:[%s0 + $0x78] sm:$0xff]
    %v166 = vld [vmem:[%s0 + $0x80] sm:$0xff]
    %v167 = vld [vmem:[%s0 + $0x88] sm:$0xff]
    %v168 = vld [vmem:[%s0 + $0x90] sm:$0xff]
    %v169 = vld [vmem:[%s0 + $0x98] sm:$0xff]
    %v170 = vld [vmem:[%s0 + $0xa0] sm:$0xff]
    %v171 = vld [vmem:[%s0 + $0xa8] sm:$0xff]
    %v172 = vld [vmem:[%s0 + $0xb0] sm:$0xff]
    %v173 = vld [vmem:[%s0 + $0xb8] sm:$0xff]
    %v174 = vld [vmem:[%s0 + $0xc0] sm:$0xff]
    %v175 = vld [vmem:[%s0 + $0xc8] sm:$0xff]
    %v176 = vld [vmem:[%s0 + $0xd0] sm:$0xff]
    %v177 = vld [vmem:[%s0 + $0xd8] sm:$0xff]
    %v178 = vld [vmem:[%s0 + $0xe0] sm:$0xff]
    %v179 = vld [vmem:[%s0 + $0xe8] sm:$0xff]
    %v180 = vld [vmem:[%s0 + $0xf0] sm:$0xff]
    %v181 = vld [vmem:[%s0 + $0xf8] sm:$0xff]
    %v182 = vld [vmem:[%s0 + $0x100] sm:$0xff]
    %v183 = vld [vmem:[%s0 + $0x108] sm:$0xff]
    %v184 = vld [vmem:[%s0 + $0x110] sm:$0xff]
    %v185 = vld [vmem:[%s0 + $0x118] sm:$0xff]
    %v186 = vld [vmem:[%s0 + $0x120] sm:$0xff]
    %v187 = vld [vmem:[%s0 + $0x128] sm:$0xff]
    %v188 = vld [vmem:[%s0 + $0x130] sm:$0xff]
    %v189 = vld [vmem:[%s0 + $0x138] sm:$0xff]
    %v190 = vld [vmem:[%s0 + $0x140] sm:$0xff]
    %v191 = vld [vmem:[%s0 + $0x148] sm:$0xff]
    %v192 = vld [vmem:[%s0 + $0x150] sm:$0xff]
    %v193 = vld [vmem:[%s0 + $0x158] sm:$0xff]
    %v194 = vld [vmem:[%s0 + $0x160] sm:$0xff]
    %v195 = vld [vmem:[%s0 + $0x168] sm:$0xff]
    %v196 = vld [vmem:[%s0 + $0x170] sm:$0xff]
    %v197 = vld [vmem:[%s0 + $0x178] sm:$0xff]
    %v198 = vld [vmem:[%s0 + $0x180] sm:$0xff]
    %v199 = vld [vmem:[#allocation2] sm:$0xff]
    %v200 = vld [vmem:[#allocation2 + $0x8] sm:$0x1]
    %vm201 = vcmask 72704
    %v203 = vsel %vm201, %v150, 0
    %v206 = vsel %vm201, %v151, 0
    %v209 = vsel %vm201, %v152, 0
    %v212 = vsel %vm201, %v153, 0
    %v215 = vsel %vm201, %v154, 0
    %v218 = vsel %vm201, %v155, 0
    %v221 = vsel %vm201, %v156, 0
    %v224 = vsel %vm201, %v157, 0
    %v227 = vsel %vm201, %v158, 0
    %v230 = vsel %vm201, %v159, 0
    %v233 = vsel %vm201, %v160, 0
    %v236 = vsel %vm201, %v161, 0
    %v239 = vsel %vm201, %v162, 0
    %v242 = vsel %vm201, %v163, 0
    %v245 = vsel %vm201, %v164, 0
    %v248 = vsel %vm201, %v165, 0
    %v251 = vsel %vm201, %v166, 0
    %v254 = vsel %vm201, %v167, 0
    %v257 = vsel %vm201, %v168, 0
    %v260 = vsel %vm201, %v169, 0
    %v263 = vsel %vm201, %v170, 0
    %v266 = vsel %vm201, %v171, 0
    %v269 = vsel %vm201, %v172, 0
    %v272 = vsel %vm201, %v173, 0
    %v275 = vsel %vm201, %v174, 0
    %v278 = vsel %vm201, %v175, 0
    %v281 = vsel %vm201, %v176, 0
    %v284 = vsel %vm201, %v177, 0
    %v287 = vsel %vm201, %v178, 0
    %v290 = vsel %vm201, %v179, 0
    %v293 = vsel %vm201, %v180, 0
    %v296 = vsel %vm201, %v181, 0
    %v299 = vsel %vm201, %v182, 0
    %v302 = vsel %vm201, %v183, 0
    %v305 = vsel %vm201, %v184, 0
    %v308 = vsel %vm201, %v185, 0
    %v311 = vsel %vm201, %v186, 0
    %v314 = vsel %vm201, %v187, 0
    %v317 = vsel %vm201, %v188, 0
    %v320 = vsel %vm201, %v189, 0
    %v323 = vsel %vm201, %v190, 0
    %v326 = vsel %vm201, %v191, 0
    %v329 = vsel %vm201, %v192, 0
    %v332 = vsel %vm201, %v193, 0
    %v335 = vsel %vm201, %v194, 0
    %v338 = vsel %vm201, %v195, 0
    %v341 = vsel %vm201, %v196, 0
    %v344 = vsel %vm201, %v197, 0
    %v347 = vsel %vm201, %v198, 0
    %vm349 = vcmask 1040384
    %v351 = vsel %vm349, %v200, 0
    %353 = vmatprep.subr.mxu0 0.0
    %354 = vmatpush1.msra.mxu0 0.0
    %355 = vmatprep.subr.mxu0 0.0
    %356 = vmatpush1.msra.mxu0 0.0
    %357 = vmatprep.subr.mxu0 0.0
    %358 = vmatpush1.msra.mxu0 0.0
    %359 = vmatprep.subr.mxu0 0.0
    %360 = vmatpush1.msra.mxu0 0.0
    %361 = vmatprep.subr.mxu0 0.0
    %362 = vmatpush1.msra.mxu0 0.0
    %363 = vmatprep.subr.mxu0 0.0
    %364 = vmatpush1.msra.mxu0 0.0
    %365 = vmatprep.subr.mxu0 0.0
    %366 = vmatpush1.msra.mxu0 0.0
    %367 = vmatprep.subr.mxu0 0.0
    %368 = vmatpush1.msra.mxu0 0.0
    %369 = vmatprep.subr.mxu0 0.0
    %370 = vmatpush1.msra.mxu0 0.0
    %371 = vmatprep.subr.mxu0 0.0
    %372 = vmatpush1.msra.mxu0 0.0
    %373 = vmatprep.subr.mxu0 0.0
    %374 = vmatpush1.msra.mxu0 0.0
    %375 = vmatprep.subr.mxu0 0.0
    %376 = vmatpush1.msra.mxu0 0.0
    %377 = vmatprep.subr.mxu0 0.0
    %378 = vmatpush1.msra.mxu0 0.0
    %379 = vmatprep.subr.mxu0 0.0
    %380 = vmatpush1.msra.mxu0 0.0
    %381 = vmatprep.subr.mxu0 0.0
    %382 = vmatpush1.msra.mxu0 %v351
    %383 = vmatprep.subr.mxu0 0.0
    %384 = vmatpush1.msra.mxu0 %v199
    %385 = vmatprep.subr.mxu0 0.0
    %386 = vmatpush2.msra.mxu0 0.0
    %387 = vmatprep.subr.mxu0 0.0
    %388 = vmatpush2.msra.mxu0 0.0
    %389 = vmatprep.subr.mxu0 0.0
    %390 = vmatpush2.msra.mxu0 0.0
    %391 = vmatprep.subr.mxu0 0.0
    %392 = vmatpush2.msra.mxu0 0.0
    %393 = vmatprep.subr.mxu0 0.0
    %394 = vmatpush2.msra.mxu0 0.0
    %395 = vmatprep.subr.mxu0 0.0
    %396 = vmatpush2.msra.mxu0 0.0
    %397 = vmatprep.subr.mxu0 0.0
    %398 = vmatpush2.msra.mxu0 0.0
    %399 = vmatprep.subr.mxu0 0.0
    %400 = vmatpush2.msra.mxu0 0.0
    %401 = vmatprep.subr.mxu0 0.0
    %402 = vmatpush2.msra.mxu0 0.0
    %403 = vmatprep.subr.mxu0 0.0
    %404 = vmatpush2.msra.mxu0 0.0
    %405 = vmatprep.subr.mxu0 0.0
    %406 = vmatpush2.msra.mxu0 0.0
    %407 = vmatprep.subr.mxu0 0.0
    %408 = vmatpush2.msra.mxu0 0.0
    %409 = vmatprep.subr.mxu0 0.0
    %410 = vmatpush2.msra.mxu0 0.0
    %411 = vmatprep.subr.mxu0 0.0
    %412 = vmatpush2.msra.mxu0 0.0
    %413 = vmatprep.subr.mxu0 0.0
    %414 = vmatpush2.msra.mxu0 0.0
    %415 = vmatprep.subr.mxu0 0.0
    %416 = vmatpush2.msra.mxu0 0.0
    %417 = vmatprep.mubr.f32.mxu0 0.0
    %418 = vmatmul.mubr.f32.gmra.mxu0 %v203
    %v419 = vpop.f32.mrf.mxu0
    %v420 = vadd.f32 0.0, %v419
    %v421 = vpop.f32.mrf.mxu0
    %422 = vmatprep.mubr.f32.mxu0 0.0
    %423 = vmatmul.mubr.f32.gmra.mxu0 %v206
    %v424 = vpop.f32.mrf.mxu0
    %v425 = vadd.f32 0.0, %v424
    %v426 = vpop.f32.mrf.mxu0
    %427 = vmatprep.mubr.f32.mxu0 0.0
    %428 = vmatmul.mubr.f32.gmra.mxu0 %v209
    %v429 = vpop.f32.mrf.mxu0
    %v430 = vadd.f32 0.0, %v429
    %v431 = vpop.f32.mrf.mxu0
    %432 = vmatprep.mubr.f32.mxu0 0.0
    %433 = vmatmul.mubr.f32.gmra.mxu0 %v212
    %v434 = vpop.f32.mrf.mxu0
    %v435 = vadd.f32 0.0, %v434
    %v436 = vpop.f32.mrf.mxu0
    %437 = vmatprep.mubr.f32.mxu0 0.0
    %438 = vmatmul.mubr.f32.gmra.mxu0 %v215
    %v439 = vpop.f32.mrf.mxu0
    %v440 = vadd.f32 0.0, %v439
    %v441 = vpop.f32.mrf.mxu0
    %442 = vmatprep.mubr.f32.mxu0 0.0
    %443 = vmatmul.mubr.f32.gmra.mxu0 %v218
    %v444 = vpop.f32.mrf.mxu0
    %v445 = vadd.f32 0.0, %v444
    %v446 = vpop.f32.mrf.mxu0
    %447 = vmatprep.mubr.f32.mxu0 0.0
    %448 = vmatmul.mubr.f32.gmra.mxu0 %v221
    %v449 = vpop.f32.mrf.mxu0
    %v450 = vadd.f32 0.0, %v449
    %v451 = vpop.f32.mrf.mxu0
    %452 = vmatprep.mubr.f32.mxu0 0.0
    %453 = vmatmul.mubr.f32.gmra.mxu0 %v224
    %v454 = vpop.f32.mrf.mxu0
    %v455 = vadd.f32 0.0, %v454
    %v456 = vpop.f32.mrf.mxu0
    %457 = vmatprep.mubr.f32.mxu0 0.0
    %458 = vmatmul.mubr.f32.gmra.mxu0 %v227
    %v459 = vpop.f32.mrf.mxu0
    %v460 = vadd.f32 0.0, %v459
    %v461 = vpop.f32.mrf.mxu0
    %462 = vmatprep.mubr.f32.mxu0 0.0
    %463 = vmatmul.mubr.f32.gmra.mxu0 %v230
    %v464 = vpop.f32.mrf.mxu0
    %v465 = vadd.f32 0.0, %v464
    %v466 = vpop.f32.mrf.mxu0
    %467 = vmatprep.mubr.f32.mxu0 0.0
    %468 = vmatmul.mubr.f32.gmra.mxu0 %v233
    %v469 = vpop.f32.mrf.mxu0
    %v470 = vadd.f32 0.0, %v469
    %v471 = vpop.f32.mrf.mxu0
    %472 = vmatprep.mubr.f32.mxu0 0.0
    %473 = vmatmul.mubr.f32.gmra.mxu0 %v236
    %v474 = vpop.f32.mrf.mxu0
    %v475 = vadd.f32 0.0, %v474
    %v476 = vpop.f32.mrf.mxu0
    %477 = vmatprep.mubr.f32.mxu0 0.0
    %478 = vmatmul.mubr.f32.gmra.mxu0 %v239
    %v479 = vpop.f32.mrf.mxu0
    %v480 = vadd.f32 0.0, %v479
    %v481 = vpop.f32.mrf.mxu0
    %482 = vmatprep.mubr.f32.mxu0 0.0
    %483 = vmatmul.mubr.f32.gmra.mxu0 %v242
    %v484 = vpop.f32.mrf.mxu0
    %v485 = vadd.f32 0.0, %v484
    %v486 = vpop.f32.mrf.mxu0
    %487 = vmatprep.mubr.f32.mxu0 0.0
    %488 = vmatmul.mubr.f32.gmra.mxu0 %v245
    %v489 = vpop.f32.mrf.mxu0
    %v490 = vadd.f32 0.0, %v489
    %v491 = vpop.f32.mrf.mxu0
    %492 = vmatprep.mubr.f32.mxu0 0.0
    %493 = vmatmul.mubr.f32.gmra.mxu0 %v248
    %v494 = vpop.f32.mrf.mxu0
    %v495 = vadd.f32 0.0, %v494
    %v496 = vpop.f32.mrf.mxu0
    %497 = vmatprep.mubr.f32.mxu0 0.0
    %498 = vmatmul.mubr.f32.gmra.mxu0 %v251
    %v499 = vpop.f32.mrf.mxu0
    %v500 = vadd.f32 0.0, %v499
    %v501 = vpop.f32.mrf.mxu0
    %502 = vmatprep.mubr.f32.mxu0 0.0
    %503 = vmatmul.mubr.f32.gmra.mxu0 %v254
    %v504 = vpop.f32.mrf.mxu0
    %v505 = vadd.f32 0.0, %v504
    %v506 = vpop.f32.mrf.mxu0
    %507 = vmatprep.mubr.f32.mxu0 0.0
    %508 = vmatmul.mubr.f32.gmra.mxu0 %v257
    %v509 = vpop.f32.mrf.mxu0
    %v510 = vadd.f32 0.0, %v509
    %v511 = vpop.f32.mrf.mxu0
    %512 = vmatprep.mubr.f32.mxu0 0.0
    %513 = vmatmul.mubr.f32.gmra.mxu0 %v260
    %v514 = vpop.f32.mrf.mxu0
    %v515 = vadd.f32 0.0, %v514
    %v516 = vpop.f32.mrf.mxu0
    %517 = vmatprep.mubr.f32.mxu0 0.0
    %518 = vmatmul.mubr.f32.gmra.mxu0 %v263
    %v519 = vpop.f32.mrf.mxu0
    %v520 = vadd.f32 0.0, %v519
    %v521 = vpop.f32.mrf.mxu0
    %522 = vmatprep.mubr.f32.mxu0 0.0
    %523 = vmatmul.mubr.f32.gmra.mxu0 %v266
    %v524 = vpop.f32.mrf.mxu0
    %v525 = vadd.f32 0.0, %v524
    %v526 = vpop.f32.mrf.mxu0
    %527 = vmatprep.mubr.f32.mxu0 0.0
    %528 = vmatmul.mubr.f32.gmra.mxu0 %v269
    %v529 = vpop.f32.mrf.mxu0
    %v530 = vadd.f32 0.0, %v529
    %v531 = vpop.f32.mrf.mxu0
    %532 = vmatprep.mubr.f32.mxu0 0.0
    %533 = vmatmul.mubr.f32.gmra.mxu0 %v272
    %v534 = vpop.f32.mrf.mxu0
    %v535 = vadd.f32 0.0, %v534
    %v536 = vpop.f32.mrf.mxu0
    %537 = vmatprep.mubr.f32.mxu0 0.0
    %538 = vmatmul.mubr.f32.gmra.mxu0 %v275
    %v539 = vpop.f32.mrf.mxu0
    %v540 = vadd.f32 0.0, %v539
    %v541 = vpop.f32.mrf.mxu0
    %542 = vmatprep.mubr.f32.mxu0 0.0
    %543 = vmatmul.mubr.f32.gmra.mxu0 %v278
    %v544 = vpop.f32.mrf.mxu0
    %v545 = vadd.f32 0.0, %v544
    %v546 = vpop.f32.mrf.mxu0
    %547 = vmatprep.mubr.f32.mxu0 0.0
    %548 = vmatmul.mubr.f32.gmra.mxu0 %v281
    %v549 = vpop.f32.mrf.mxu0
    %v550 = vadd.f32 0.0, %v549
    %v551 = vpop.f32.mrf.mxu0
    %552 = vmatprep.mubr.f32.mxu0 0.0
    %553 = vmatmul.mubr.f32.gmra.mxu0 %v284
    %v554 = vpop.f32.mrf.mxu0
    %v555 = vadd.f32 0.0, %v554
    %v556 = vpop.f32.mrf.mxu0
    %557 = vmatprep.mubr.f32.mxu0 0.0
    %558 = vmatmul.mubr.f32.gmra.mxu0 %v287
    %v559 = vpop.f32.mrf.mxu0
    %v560 = vadd.f32 0.0, %v559
    %v561 = vpop.f32.mrf.mxu0
    %562 = vmatprep.mubr.f32.mxu0 0.0
    %563 = vmatmul.mubr.f32.gmra.mxu0 %v290
    %v564 = vpop.f32.mrf.mxu0
    %v565 = vadd.f32 0.0, %v564
    %v566 = vpop.f32.mrf.mxu0
    %567 = vmatprep.mubr.f32.mxu0 0.0
    %568 = vmatmul.mubr.f32.gmra.mxu0 %v293
    %v569 = vpop.f32.mrf.mxu0
    %v570 = vadd.f32 0.0, %v569
    %v571 = vpop.f32.mrf.mxu0
    %572 = vmatprep.mubr.f32.mxu0 0.0
    %573 = vmatmul.mubr.f32.gmra.mxu0 %v296
    %v574 = vpop.f32.mrf.mxu0
    %v575 = vadd.f32 0.0, %v574
    %v576 = vpop.f32.mrf.mxu0
    %577 = vmatprep.mubr.f32.mxu0 0.0
    %578 = vmatmul.mubr.f32.gmra.mxu0 %v299
    %v579 = vpop.f32.mrf.mxu0
    %v580 = vadd.f32 0.0, %v579
    %v581 = vpop.f32.mrf.mxu0
    %582 = vmatprep.mubr.f32.mxu0 0.0
    %583 = vmatmul.mubr.f32.gmra.mxu0 %v302
    %v584 = vpop.f32.mrf.mxu0
    %v585 = vadd.f32 0.0, %v584
    %v586 = vpop.f32.mrf.mxu0
    %587 = vmatprep.mubr.f32.mxu0 0.0
    %588 = vmatmul.mubr.f32.gmra.mxu0 %v305
    %v589 = vpop.f32.mrf.mxu0
    %v590 = vadd.f32 0.0, %v589
    %v591 = vpop.f32.mrf.mxu0
    %592 = vmatprep.mubr.f32.mxu0 0.0
    %593 = vmatmul.mubr.f32.gmra.mxu0 %v308
    %v594 = vpop.f32.mrf.mxu0
    %v595 = vadd.f32 0.0, %v594
    %v596 = vpop.f32.mrf.mxu0
    %597 = vmatprep.mubr.f32.mxu0 0.0
    %598 = vmatmul.mubr.f32.gmra.mxu0 %v311
    %v599 = vpop.f32.mrf.mxu0
    %v600 = vadd.f32 0.0, %v599
    %v601 = vpop.f32.mrf.mxu0
    %602 = vmatprep.mubr.f32.mxu0 0.0
    %603 = vmatmul.mubr.f32.gmra.mxu0 %v314
    %v604 = vpop.f32.mrf.mxu0
    %v605 = vadd.f32 0.0, %v604
    %v606 = vpop.f32.mrf.mxu0
    %607 = vmatprep.mubr.f32.mxu0 0.0
    %608 = vmatmul.mubr.f32.gmra.mxu0 %v317
    %v609 = vpop.f32.mrf.mxu0
    %v610 = vadd.f32 0.0, %v609
    %v611 = vpop.f32.mrf.mxu0
    %612 = vmatprep.mubr.f32.mxu0 0.0
    %613 = vmatmul.mubr.f32.gmra.mxu0 %v320
    %v614 = vpop.f32.mrf.mxu0
    %v615 = vadd.f32 0.0, %v614
    %v616 = vpop.f32.mrf.mxu0
    %617 = vmatprep.mubr.f32.mxu0 0.0
    %618 = vmatmul.mubr.f32.gmra.mxu0 %v323
    %v619 = vpop.f32.mrf.mxu0
    %v620 = vadd.f32 0.0, %v619
    %v621 = vpop.f32.mrf.mxu0
    %622 = vmatprep.mubr.f32.mxu0 0.0
    %623 = vmatmul.mubr.f32.gmra.mxu0 %v326
    %v624 = vpop.f32.mrf.mxu0
    %v625 = vadd.f32 0.0, %v624
    %v626 = vpop.f32.mrf.mxu0
    %627 = vmatprep.mubr.f32.mxu0 0.0
    %628 = vmatmul.mubr.f32.gmra.mxu0 %v329
    %v629 = vpop.f32.mrf.mxu0
    %v630 = vadd.f32 0.0, %v629
    %v631 = vpop.f32.mrf.mxu0
    %632 = vmatprep.mubr.f32.mxu0 0.0
    %633 = vmatmul.mubr.f32.gmra.mxu0 %v332
    %v634 = vpop.f32.mrf.mxu0
    %v635 = vadd.f32 0.0, %v634
    %v636 = vpop.f32.mrf.mxu0
    %637 = vmatprep.mubr.f32.mxu0 0.0
    %638 = vmatmul.mubr.f32.gmra.mxu0 %v335
    %v639 = vpop.f32.mrf.mxu0
    %v640 = vadd.f32 0.0, %v639
    %v641 = vpop.f32.mrf.mxu0
    %642 = vmatprep.mubr.f32.mxu0 0.0
    %643 = vmatmul.mubr.f32.gmra.mxu0 %v338
    %v644 = vpop.f32.mrf.mxu0
    %v645 = vadd.f32 0.0, %v644
    %v646 = vpop.f32.mrf.mxu0
    %647 = vmatprep.mubr.f32.mxu0 0.0
    %648 = vmatmul.mubr.f32.gmra.mxu0 %v341
    %v649 = vpop.f32.mrf.mxu0
    %v650 = vadd.f32 0.0, %v649
    %v651 = vpop.f32.mrf.mxu0
    %652 = vmatprep.mubr.f32.mxu0 0.0
    %653 = vmatmul.mubr.f32.gmra.mxu0 %v344
    %v654 = vpop.f32.mrf.mxu0
    %v655 = vadd.f32 0.0, %v654
    %v656 = vpop.f32.mrf.mxu0
    %657 = vmatprep.mubr.f32.mxu0 0.0
    %658 = vmatmul.mubr.f32.gmra.mxu0 %v347
    %v659 = vpop.f32.mrf.mxu0
    %v660 = vadd.f32 0.0, %v659
    %v661 = vpop.f32.mrf.mxu0
    %662 = vdwg.mxu0
    %v663 = vadd.f32 %v101, %v420
    %v664 = vadd.f32 %v102, %v425
    %v665 = vadd.f32 %v103, %v430
    %v666 = vadd.f32 %v104, %v435
    %v667 = vadd.f32 %v105, %v440
    %v668 = vadd.f32 %v106, %v445
    %v669 = vadd.f32 %v107, %v450
    %v670 = vadd.f32 %v108, %v455
    %v671 = vadd.f32 %v109, %v460
    %v672 = vadd.f32 %v110, %v465
    %v673 = vadd.f32 %v111, %v470
    %v674 = vadd.f32 %v112, %v475
    %v675 = vadd.f32 %v113, %v480
    %v676 = vadd.f32 %v114, %v485
    %v677 = vadd.f32 %v115, %v490
    %v678 = vadd.f32 %v116, %v495
    %v679 = vadd.f32 %v117, %v500
    %v680 = vadd.f32 %v118, %v505
    %v681 = vadd.f32 %v119, %v510
    %v682 = vadd.f32 %v120, %v515
    %v683 = vadd.f32 %v121, %v520
    %v684 = vadd.f32 %v122, %v525
    %v685 = vadd.f32 %v123, %v530
    %v686 = vadd.f32 %v124, %v535
    %v687 = vadd.f32 %v125, %v540
    %v688 = vadd.f32 %v126, %v545
    %v689 = vadd.f32 %v127, %v550
    %v690 = vadd.f32 %v128, %v555
    %v691 = vadd.f32 %v129, %v560
    %v692 = vadd.f32 %v130, %v565
    %v693 = vadd.f32 %v131, %v570
    %v694 = vadd.f32 %v132, %v575
    %v695 = vadd.f32 %v133, %v580
    %v696 = vadd.f32 %v134, %v585
    %v697 = vadd.f32 %v135, %v590
    %v698 = vadd.f32 %v136, %v595
    %v699 = vadd.f32 %v137, %v600
    %v700 = vadd.f32 %v138, %v605
    %v701 = vadd.f32 %v139, %v610
    %v702 = vadd.f32 %v140, %v615
    %v703 = vadd.f32 %v141, %v620
    %v704 = vadd.f32 %v142, %v625
    %v705 = vadd.f32 %v143, %v630
    %v706 = vadd.f32 %v144, %v635
    %v707 = vadd.f32 %v145, %v640
    %v708 = vadd.f32 %v146, %v645
    %v709 = vadd.f32 %v147, %v650
    %v710 = vadd.f32 %v148, %v655
    %v711 = vadd.f32 %v149, %v660
    %vm712 = vcmask 523264
    %713 = vst.msk [vmem:[%s3] sm:$0xff] %vm712, %v663
    %714 = vst.msk [vmem:[%s3 + $0x8] sm:$0xff] %vm712, %v664
    %715 = vst.msk [vmem:[%s3 + $0x10] sm:$0xff] %vm712, %v665
    %716 = vst.msk [vmem:[%s3 + $0x18] sm:$0xff] %vm712, %v666
    %717 = vst.msk [vmem:[%s3 + $0x20] sm:$0xff] %vm712, %v667
    %718 = vst.msk [vmem:[%s3 + $0x28] sm:$0xff] %vm712, %v668
    %719 = vst.msk [vmem:[%s3 + $0x30] sm:$0xff] %vm712, %v669
    %720 = vst.msk [vmem:[%s3 + $0x38] sm:$0xff] %vm712, %v670
    %721 = vst.msk [vmem:[%s3 + $0x40] sm:$0xff] %vm712, %v671
    %722 = vst.msk [vmem:[%s3 + $0x48] sm:$0xff] %vm712, %v672
    %723 = vst.msk [vmem:[%s3 + $0x50] sm:$0xff] %vm712, %v673
    %724 = vst.msk [vmem:[%s3 + $0x58] sm:$0xff] %vm712, %v674
    %725 = vst.msk [vmem:[%s3 + $0x60] sm:$0xff] %vm712, %v675
    %726 = vst.msk [vmem:[%s3 + $0x68] sm:$0xff] %vm712, %v676
    %727 = vst.msk [vmem:[%s3 + $0x70] sm:$0xff] %vm712, %v677
    %728 = vst.msk [vmem:[%s3 + $0x78] sm:$0xff] %vm712, %v678
    %729 = vst.msk [vmem:[%s3 + $0x80] sm:$0xff] %vm712, %v679
    %730 = vst.msk [vmem:[%s3 + $0x88] sm:$0xff] %vm712, %v680
    %731 = vst.msk [vmem:[%s3 + $0x90] sm:$0xff] %vm712, %v681
    %732 = vst.msk [vmem:[%s3 + $0x98] sm:$0xff] %vm712, %v682
    %733 = vst.msk [vmem:[%s3 + $0xa0] sm:$0xff] %vm712, %v683
    %734 = vst.msk [vmem:[%s3 + $0xa8] sm:$0xff] %vm712, %v684
    %735 = vst.msk [vmem:[%s3 + $0xb0] sm:$0xff] %vm712, %v685
    %736 = vst.msk [vmem:[%s3 + $0xb8] sm:$0xff] %vm712, %v686
    %737 = vst.msk [vmem:[%s3 + $0xc0] sm:$0xff] %vm712, %v687
    %738 = vst.msk [vmem:[%s3 + $0xc8] sm:$0xff] %vm712, %v688
    %739 = vst.msk [vmem:[%s3 + $0xd0] sm:$0xff] %vm712, %v689
    %740 = vst.msk [vmem:[%s3 + $0xd8] sm:$0xff] %vm712, %v690
    %741 = vst.msk [vmem:[%s3 + $0xe0] sm:$0xff] %vm712, %v691
    %742 = vst.msk [vmem:[%s3 + $0xe8] sm:$0xff] %vm712, %v692
    %743 = vst.msk [vmem:[%s3 + $0xf0] sm:$0xff] %vm712, %v693
    %744 = vst.msk [vmem:[%s3 + $0xf8] sm:$0xff] %vm712, %v694
    %745 = vst.msk [vmem:[%s3 + $0x100] sm:$0xff] %vm712, %v695
    %746 = vst.msk [vmem:[%s3 + $0x108] sm:$0xff] %vm712, %v696
    %747 = vst.msk [vmem:[%s3 + $0x110] sm:$0xff] %vm712, %v697
    %748 = vst.msk [vmem:[%s3 + $0x118] sm:$0xff] %vm712, %v698
    %749 = vst.msk [vmem:[%s3 + $0x120] sm:$0xff] %vm712, %v699
    %750 = vst.msk [vmem:[%s3 + $0x128] sm:$0xff] %vm712, %v700
    %751 = vst.msk [vmem:[%s3 + $0x130] sm:$0xff] %vm712, %v701
    %752 = vst.msk [vmem:[%s3 + $0x138] sm:$0xff] %vm712, %v702
    %753 = vst.msk [vmem:[%s3 + $0x140] sm:$0xff] %vm712, %v703
    %754 = vst.msk [vmem:[%s3 + $0x148] sm:$0xff] %vm712, %v704
    %755 = vst.msk [vmem:[%s3 + $0x150] sm:$0xff] %vm712, %v705
    %756 = vst.msk [vmem:[%s3 + $0x158] sm:$0xff] %vm712, %v706
    %757 = vst.msk [vmem:[%s3 + $0x160] sm:$0xff] %vm712, %v707
    %758 = vst.msk [vmem:[%s3 + $0x168] sm:$0xff] %vm712, %v708
    %759 = vst.msk [vmem:[%s3 + $0x170] sm:$0xff] %vm712, %v709
    %760 = vst.msk [vmem:[%s3 + $0x178] sm:$0xff] %vm712, %v710
    %761 = vst.msk [vmem:[%s3 + $0x180] sm:$0xff] %vm712, %v711
    // Predicated region
    $region26: #{net4ht_forward.5} parent=1 // pred_check
      _
    $region27: #{net4ht_forward.5} parent=1 // pred_check_branch
      %763 = sbr.rel (0) target = $region29
    $region28: #{net4ht_forward.5} parent=1 // pred_region
      _
    $region29: #{net4ht_forward.5} parent=1 // pred_fallthru
      _
    // Predicated region
    $region30: #{net4ht_forward.5} parent=1 // pred_check
      _
    $region31: #{net4ht_forward.5} parent=1 // pred_check_branch
      %765 = sbr.rel (0) target = $region33
    $region32: #{net4ht_forward.5} parent=1 // pred_region
      _
    $region33: #{net4ht_forward.5} parent=1 // pred_fallthru
      _
    %766 = vsyncpa [#allocation3], 1
    %767 = vsyncpa [#allocation5], 1

// kernel: net4ht_forward.7
$region0: #{net4ht_forward.7}
  #allocation0 [shape = 'u32[]', space=smem, size = 0x4, offset = 0x4, fixed_abs, tag = 'smem constant byte address 0x4 - core index']
  #allocation1 [shape = 'u32[144,128]{1,0:T(1,128)}', space=vmem, size = 0x12000, scoped, tag = 'internal scratch']
  %s0 = inlined_call_operand.vmem [shape: f32[50,576], index: 0, kind: input, shape index: {}]
  %s1 = inlined_call_operand.vmem [shape: f32[576,192], index: 1, kind: input, shape index: {}]
  %s2 = inlined_call_operand.vmem [shape: f32[1,192], index: 2, kind: input, shape index: {}]
  %s3 = inlined_call_operand.vmem [shape: f32[50,192], index: 3, kind: output, shape index: {}]
  %s4 = sld [smem:[#allocation0]]
  $region26: #{net4ht_forward.7} parent=0
    _
  %s6 = ssub.s32 1, %s4
  %s7 = scalar_select 0, %s6, %s4
  // Predicated region
  $region2: #{net4ht_forward.7} parent=0 // pred_check
    _
  $region3: #{net4ht_forward.7} parent=0 // pred_check_branch
    %9 = sbr.rel (0) target = $region5
  $region4: #{net4ht_forward.7} parent=0 // pred_region
    _
  $region5: #{net4ht_forward.7} parent=0 // pred_fallthru
    _
  // Predicated region
  $region6: #{net4ht_forward.7} parent=0 // pred_check
    _
  $region7: #{net4ht_forward.7} parent=0 // pred_check_branch
    %11 = sbr.rel (0) target = $region9
  $region8: #{net4ht_forward.7} parent=0 // pred_region
    _
  $region9: #{net4ht_forward.7} parent=0 // pred_fallthru
    _
  // Predicated region
  $region10: #{net4ht_forward.7} parent=0 // pred_check
    _
  $region11: #{net4ht_forward.7} parent=0 // pred_check_branch
    %13 = sbr.rel (0) target = $region13
  $region12: #{net4ht_forward.7} parent=0 // pred_region
    _
  $region13: #{net4ht_forward.7} parent=0 // pred_fallthru
    _
  %p14 = scmp.eq.s32.totalorder 0, 0
  // Predicated region
  $region14: #{net4ht_forward.7} parent=0 // pred_check
    %p15 = pneg %p14
  $region15: #{net4ht_forward.7} parent=0 // pred_check_branch
    %17 = sbr.rel (%p15) target = $region17
  $region16: #{net4ht_forward.7} parent=0 // pred_region
    %v18 = vld [vmem:[%s2] sm:$0x3]
    %v20 = vlaneseq
    %v21 = vshrl.u32 %v20, 7
    %v22 = vsub.s32 0, %v21
    %v23 = vrot.slane %v18, %v22
    %v24 = vlaneseq
    %v25 = vshrl.u32 %v24, 7
    %v26 = vsub.s32 1, %v25
    %v27 = vrot.slane %v18, %v26
    %30 = vst [vmem:[%s3] sm:$0xff] %v23
    %vm31 = vcmask 523264
    %32 = vst.msk [vmem:[%s3 + $0x8] sm:$0xff] %vm31, %v27
    %33 = vst [vmem:[%s3 + $0x10] sm:$0xff] %v23
    %34 = vst.msk [vmem:[%s3 + $0x18] sm:$0xff] %vm31, %v27
    %35 = vst [vmem:[%s3 + $0x20] sm:$0xff] %v23
    %36 = vst.msk [vmem:[%s3 + $0x28] sm:$0xff] %vm31, %v27
    %37 = vst [vmem:[%s3 + $0x30] sm:$0xff] %v23
    %38 = vst.msk [vmem:[%s3 + $0x38] sm:$0xff] %vm31, %v27
    %39 = vst [vmem:[%s3 + $0x40] sm:$0xff] %v23
    %40 = vst.msk [vmem:[%s3 + $0x48] sm:$0xff] %vm31, %v27
    %41 = vst [vmem:[%s3 + $0x50] sm:$0xff] %v23
    %42 = vst.msk [vmem:[%s3 + $0x58] sm:$0xff] %vm31, %v27
    %43 = vst [vmem:[%s3 + $0x60] sm:$0x3] %v23
    %vm44 = vcmask 517120
    %45 = vst.msk [vmem:[%s3 + $0x68] sm:$0x3] %vm44, %v27
  $region17: #{net4ht_forward.7} parent=0 // pred_fallthru
    _
  %v46 = vld [vmem:[%s3] sm:$0xff]
  %v47 = vld [vmem:[%s3 + $0x8] sm:$0xff]
  %v48 = vld [vmem:[%s3 + $0x10] sm:$0xff]
  %v49 = vld [vmem:[%s3 + $0x18] sm:$0xff]
  %v50 = vld [vmem:[%s3 + $0x20] sm:$0xff]
  %v51 = vld [vmem:[%s3 + $0x28] sm:$0xff]
  %v52 = vld [vmem:[%s3 + $0x30] sm:$0xff]
  %v53 = vld [vmem:[%s3 + $0x38] sm:$0xff]
  %v54 = vld [vmem:[%s3 + $0x40] sm:$0xff]
  %v55 = vld [vmem:[%s3 + $0x48] sm:$0xff]
  %v56 = vld [vmem:[%s3 + $0x50] sm:$0xff]
  %v57 = vld [vmem:[%s3 + $0x58] sm:$0xff]
  %v58 = vld [vmem:[%s3 + $0x60] sm:$0x3]
  %v59 = vld [vmem:[%s3 + $0x68] sm:$0x3]
  %v60 = vld [vmem:[%s0] sm:$0xff]
  %v61 = vld [vmem:[%s0 + $0x8] sm:$0xff]
  %v62 = vld [vmem:[%s0 + $0x10] sm:$0xff]
  %v63 = vld [vmem:[%s0 + $0x18] sm:$0xff]
  %v64 = vld [vmem:[%s0 + $0x20] sm:$0xff]
  %v65 = vld [vmem:[%s0 + $0x28] sm:$0xff]
  %v66 = vld [vmem:[%s0 + $0x30] sm:$0xff]
  %v67 = vld [vmem:[%s0 + $0x38] sm:$0xff]
  %v68 = vld [vmem:[%s0 + $0x40] sm:$0xff]
  %v69 = vld [vmem:[%s0 + $0x48] sm:$0xff]
  %v70 = vld [vmem:[%s0 + $0x50] sm:$0xff]
  %v71 = vld [vmem:[%s0 + $0x58] sm:$0xff]
  %v72 = vld [vmem:[%s0 + $0x60] sm:$0xff]
  %v73 = vld [vmem:[%s0 + $0x68] sm:$0xff]
  %v74 = vld [vmem:[%s0 + $0x70] sm:$0xff]
  %v75 = vld [vmem:[%s0 + $0x78] sm:$0xff]
  %v76 = vld [vmem:[%s0 + $0x80] sm:$0xff]
  %v77 = vld [vmem:[%s0 + $0x88] sm:$0xff]
  %v78 = vld [vmem:[%s0 + $0x90] sm:$0xff]
  %v79 = vld [vmem:[%s0 + $0x98] sm:$0xff]
  %v80 = vld [vmem:[%s0 + $0xa0] sm:$0xff]
  %v81 = vld [vmem:[%s0 + $0xa8] sm:$0xff]
  %v82 = vld [vmem:[%s0 + $0xb0] sm:$0xff]
  %v83 = vld [vmem:[%s0 + $0xb8] sm:$0xff]
  %v84 = vld [vmem:[%s0 + $0xc0] sm:$0xff]
  %v85 = vld [vmem:[%s0 + $0xc8] sm:$0xff]
  %v86 = vld [vmem:[%s0 + $0xd0] sm:$0xff]
  %v87 = vld [vmem:[%s0 + $0xd8] sm:$0xff]
  %v88 = vld [vmem:[%s0 + $0xe0] sm:$0xff]
  %v89 = vld [vmem:[%s0 + $0xe8] sm:$0xff]
  %v90 = vld [vmem:[%s0 + $0xf0] sm:$0x3]
  %v91 = vld [vmem:[%s0 + $0xf8] sm:$0x3]
  %v92 = vld [vmem:[%s0 + $0x100] sm:$0x3]
  %v93 = vld [vmem:[%s0 + $0x108] sm:$0x3]
  %v94 = vld [vmem:[%s0 + $0x110] sm:$0x3]
  %v95 = vld [vmem:[%s1] sm:$0xff]
  %v96 = vld [vmem:[%s1 + $0x8] sm:$0xff]
  %v97 = vld [vmem:[%s1 + $0x10] sm:$0xff]
  %v98 = vld [vmem:[%s1 + $0x18] sm:$0xff]
  %v99 = vld [vmem:[%s1 + $0x20] sm:$0xff]
  %v100 = vld [vmem:[%s1 + $0x28] sm:$0xff]
  %v101 = vld [vmem:[%s1 + $0x30] sm:$0xff]
  %v102 = vld [vmem:[%s1 + $0x38] sm:$0xff]
  %v103 = vld [vmem:[%s1 + $0x40] sm:$0xff]
  %v104 = vld [vmem:[%s1 + $0x48] sm:$0xff]
  %v105 = vld [vmem:[%s1 + $0x50] sm:$0xff]
  %v106 = vld [vmem:[%s1 + $0x58] sm:$0xff]
  %v107 = vld [vmem:[%s1 + $0x60] sm:$0xff]
  %v108 = vld [vmem:[%s1 + $0x68] sm:$0xff]
  %v109 = vld [vmem:[%s1 + $0x70] sm:$0xff]
  %v110 = vld [vmem:[%s1 + $0x78] sm:$0xff]
  %v111 = vld [vmem:[%s1 + $0x80] sm:$0xff]
  %v112 = vld [vmem:[%s1 + $0x88] sm:$0xff]
  %v113 = vld [vmem:[%s1 + $0x90] sm:$0xff]
  %v114 = vld [vmem:[%s1 + $0x98] sm:$0xff]
  %v115 = vld [vmem:[%s1 + $0xa0] sm:$0xff]
  %v116 = vld [vmem:[%s1 + $0xa8] sm:$0xff]
  %v117 = vld [vmem:[%s1 + $0xb0] sm:$0xff]
  %v118 = vld [vmem:[%s1 + $0xb8] sm:$0xff]
  %v119 = vld [vmem:[%s1 + $0xc0] sm:$0xff]
  %v120 = vld [vmem:[%s1 + $0xc8] sm:$0xff]
  %v121 = vld [vmem:[%s1 + $0xd0] sm:$0xff]
  %v122 = vld [vmem:[%s1 + $0xd8] sm:$0xff]
  %v123 = vld [vmem:[%s1 + $0xe0] sm:$0xff]
  %v124 = vld [vmem:[%s1 + $0xe8] sm:$0xff]
  %v125 = vld [vmem:[%s1 + $0xf0] sm:$0xff]
  %v126 = vld [vmem:[%s1 + $0xf8] sm:$0xff]
  %v127 = vld [vmem:[%s1 + $0x100] sm:$0xff]
  %v128 = vld [vmem:[%s1 + $0x108] sm:$0xff]
  %v129 = vld [vmem:[%s1 + $0x110] sm:$0xff]
  %v130 = vld [vmem:[%s1 + $0x118] sm:$0xff]
  %v131 = vld [vmem:[%s1 + $0x120] sm:$0xff]
  %v132 = vld [vmem:[%s1 + $0x128] sm:$0xff]
  %v133 = vld [vmem:[%s1 + $0x130] sm:$0xff]
  %v134 = vld [vmem:[%s1 + $0x138] sm:$0xff]
  %v135 = vld [vmem:[%s1 + $0x140] sm:$0xff]
  %v136 = vld [vmem:[%s1 + $0x148] sm:$0xff]
  %v137 = vld [vmem:[%s1 + $0x150] sm:$0xff]
  %v138 = vld [vmem:[%s1 + $0x158] sm:$0xff]
  %v139 = vld [vmem:[%s1 + $0x160] sm:$0xff]
  %v140 = vld [vmem:[%s1 + $0x168] sm:$0xff]
  %v141 = vld [vmem:[%s1 + $0x170] sm:$0xff]
  %v142 = vld [vmem:[%s1 + $0x178] sm:$0xff]
  %v143 = vld [vmem:[%s1 + $0x180] sm:$0xff]
  %v144 = vld [vmem:[%s1 + $0x188] sm:$0xff]
  %v145 = vld [vmem:[%s1 + $0x190] sm:$0xff]
  %v146 = vld [vmem:[%s1 + $0x198] sm:$0xff]
  %v147 = vld [vmem:[%s1 + $0x1a0] sm:$0xff]
  %v148 = vld [vmem:[%s1 + $0x1a8] sm:$0xff]
  %v149 = vld [vmem:[%s1 + $0x1b0] sm:$0xff]
  %v150 = vld [vmem:[%s1 + $0x1b8] sm:$0xff]
  %v151 = vld [vmem:[%s1 + $0x1c0] sm:$0xff]
  %v152 = vld [vmem:[%s1 + $0x1c8] sm:$0xff]
  %v153 = vld [vmem:[%s1 + $0x1d0] sm:$0xff]
  %v154 = vld [vmem:[%s1 + $0x1d8] sm:$0xff]
  %v155 = vld [vmem:[%s1 + $0x1e0] sm:$0xff]
  %v156 = vld [vmem:[%s1 + $0x1e8] sm:$0xff]
  %v157 = vld [vmem:[%s1 + $0x1f0] sm:$0xff]
  %v158 = vld [vmem:[%s1 + $0x1f8] sm:$0xff]
  %v159 = vld [vmem:[%s1 + $0x200] sm:$0xff]
  %v160 = vld [vmem:[%s1 + $0x208] sm:$0xff]
  %v161 = vld [vmem:[%s1 + $0x210] sm:$0xff]
  %v162 = vld [vmem:[%s1 + $0x218] sm:$0xff]
  %v163 = vld [vmem:[%s1 + $0x220] sm:$0xff]
  %v164 = vld [vmem:[%s1 + $0x228] sm:$0xff]
  %v165 = vld [vmem:[%s1 + $0x230] sm:$0xff]
  %v166 = vld [vmem:[%s1 + $0x238] sm:$0xff]
  %v167 = vld [vmem:[%s1 + $0x240] sm:$0xff]
  %v168 = vld [vmem:[%s1 + $0x248] sm:$0xff]
  %v169 = vld [vmem:[%s1 + $0x250] sm:$0xff]
  %v170 = vld [vmem:[%s1 + $0x258] sm:$0xff]
  %v171 = vld [vmem:[%s1 + $0x260] sm:$0xff]
  %v172 = vld [vmem:[%s1 + $0x268] sm:$0xff]
  %v173 = vld [vmem:[%s1 + $0x270] sm:$0xff]
  %v174 = vld [vmem:[%s1 + $0x278] sm:$0xff]
  %v175 = vld [vmem:[%s1 + $0x280] sm:$0xff]
  %v176 = vld [vmem:[%s1 + $0x288] sm:$0xff]
  %v177 = vld [vmem:[%s1 + $0x290] sm:$0xff]
  %v178 = vld [vmem:[%s1 + $0x298] sm:$0xff]
  %v179 = vld [vmem:[%s1 + $0x2a0] sm:$0xff]
  %v180 = vld [vmem:[%s1 + $0x2a8] sm:$0xff]
  %v181 = vld [vmem:[%s1 + $0x2b0] sm:$0xff]
  %v182 = vld [vmem:[%s1 + $0x2b8] sm:$0xff]
  %v183 = vld [vmem:[%s1 + $0x2c0] sm:$0xff]
  %v184 = vld [vmem:[%s1 + $0x2c8] sm:$0xff]
  %v185 = vld [vmem:[%s1 + $0x2d0] sm:$0xff]
  %v186 = vld [vmem:[%s1 + $0x2d8] sm:$0xff]
  %v187 = vld [vmem:[%s1 + $0x2e0] sm:$0xff]
  %v188 = vld [vmem:[%s1 + $0x2e8] sm:$0xff]
  %v189 = vld [vmem:[%s1 + $0x2f0] sm:$0xff]
  %v190 = vld [vmem:[%s1 + $0x2f8] sm:$0xff]
  %v191 = vld [vmem:[%s1 + $0x300] sm:$0xff]
  %v192 = vld [vmem:[%s1 + $0x308] sm:$0xff]
  %v193 = vld [vmem:[%s1 + $0x310] sm:$0xff]
  %v194 = vld [vmem:[%s1 + $0x318] sm:$0xff]
  %v195 = vld [vmem:[%s1 + $0x320] sm:$0xff]
  %v196 = vld [vmem:[%s1 + $0x328] sm:$0xff]
  %v197 = vld [vmem:[%s1 + $0x330] sm:$0xff]
  %v198 = vld [vmem:[%s1 + $0x338] sm:$0xff]
  %v199 = vld [vmem:[%s1 + $0x340] sm:$0xff]
  %v200 = vld [vmem:[%s1 + $0x348] sm:$0xff]
  %v201 = vld [vmem:[%s1 + $0x350] sm:$0xff]
  %v202 = vld [vmem:[%s1 + $0x358] sm:$0xff]
  %v203 = vld [vmem:[%s1 + $0x360] sm:$0xff]
  %v204 = vld [vmem:[%s1 + $0x368] sm:$0xff]
  %v205 = vld [vmem:[%s1 + $0x370] sm:$0xff]
  %v206 = vld [vmem:[%s1 + $0x378] sm:$0xff]
  %v207 = vld [vmem:[%s1 + $0x380] sm:$0xff]
  %v208 = vld [vmem:[%s1 + $0x388] sm:$0xff]
  %v209 = vld [vmem:[%s1 + $0x390] sm:$0xff]
  %v210 = vld [vmem:[%s1 + $0x398] sm:$0xff]
  %v211 = vld [vmem:[%s1 + $0x3a0] sm:$0xff]
  %v212 = vld [vmem:[%s1 + $0x3a8] sm:$0xff]
  %v213 = vld [vmem:[%s1 + $0x3b0] sm:$0xff]
  %v214 = vld [vmem:[%s1 + $0x3b8] sm:$0xff]
  %v215 = vld [vmem:[%s1 + $0x3c0] sm:$0xff]
  %v216 = vld [vmem:[%s1 + $0x3c8] sm:$0xff]
  %v217 = vld [vmem:[%s1 + $0x3d0] sm:$0xff]
  %v218 = vld [vmem:[%s1 + $0x3d8] sm:$0xff]
  %v219 = vld [vmem:[%s1 + $0x3e0] sm:$0xff]
  %v220 = vld [vmem:[%s1 + $0x3e8] sm:$0xff]
  %v221 = vld [vmem:[%s1 + $0x3f0] sm:$0xff]
  %v222 = vld [vmem:[%s1 + $0x3f8] sm:$0xff]
  %v223 = vld [vmem:[%s1 + $0x400] sm:$0xff]
  %v224 = vld [vmem:[%s1 + $0x408] sm:$0xff]
  %v225 = vld [vmem:[%s1 + $0x410] sm:$0xff]
  %v226 = vld [vmem:[%s1 + $0x418] sm:$0xff]
  %v227 = vld [vmem:[%s1 + $0x420] sm:$0xff]
  %v228 = vld [vmem:[%s1 + $0x428] sm:$0xff]
  %v229 = vld [vmem:[%s1 + $0x430] sm:$0xff]
  %v230 = vld [vmem:[%s1 + $0x438] sm:$0xff]
  %v231 = vld [vmem:[%s1 + $0x440] sm:$0xff]
  %v232 = vld [vmem:[%s1 + $0x448] sm:$0xff]
  %v233 = vld [vmem:[%s1 + $0x450] sm:$0xff]
  %v234 = vld [vmem:[%s1 + $0x458] sm:$0xff]
  %v235 = vld [vmem:[%s1 + $0x460] sm:$0xff]
  %v236 = vld [vmem:[%s1 + $0x468] sm:$0xff]
  %v237 = vld [vmem:[%s1 + $0x470] sm:$0xff]
  %v238 = vld [vmem:[%s1 + $0x478] sm:$0xff]
  %vm239 = vcmask 523264
  %v241 = vsel %vm239, %v64, 0
  %v244 = vsel %vm239, %v69, 0
  %v247 = vsel %vm239, %v74, 0
  %v250 = vsel %vm239, %v79, 0
  %v253 = vsel %vm239, %v84, 0
  %v256 = vsel %vm239, %v89, 0
  %v259 = vsel %vm239, %v94, 0
  %261 = vmatprep.subr.mxu0 %v126
  %262 = vmatpush1.msra.mxu0 %v125
  %263 = vmatprep.subr.mxu0 %v124
  %264 = vmatpush1.msra.mxu0 %v123
  %265 = vmatprep.subr.mxu0 %v122
  %266 = vmatpush1.msra.mxu0 %v121
  %267 = vmatprep.subr.mxu0 %v120
  %268 = vmatpush1.msra.mxu0 %v119
  %269 = vmatprep.subr.mxu0 %v118
  %270 = vmatpush1.msra.mxu0 %v117
  %271 = vmatprep.subr.mxu0 %v116
  %272 = vmatpush1.msra.mxu0 %v115
  %273 = vmatprep.subr.mxu0 %v114
  %274 = vmatpush1.msra.mxu0 %v113
  %275 = vmatprep.subr.mxu0 %v112
  %276 = vmatpush1.msra.mxu0 %v111
  %277 = vmatprep.subr.mxu0 %v110
  %278 = vmatpush1.msra.mxu0 %v109
  %279 = vmatprep.subr.mxu0 %v108
  %280 = vmatpush1.msra.mxu0 %v107
  %281 = vmatprep.subr.mxu0 %v106
  %282 = vmatpush1.msra.mxu0 %v105
  %283 = vmatprep.subr.mxu0 %v104
  %284 = vmatpush1.msra.mxu0 %v103
  %285 = vmatprep.subr.mxu0 %v102
  %286 = vmatpush1.msra.mxu0 %v101
  %287 = vmatprep.subr.mxu0 %v100
  %288 = vmatpush1.msra.mxu0 %v99
  %289 = vmatprep.subr.mxu0 %v98
  %290 = vmatpush1.msra.mxu0 %v97
  %291 = vmatprep.subr.mxu0 %v96
  %292 = vmatpush1.msra.mxu0 %v95
  %293 = vmatprep.subr.mxu0 %v158
  %294 = vmatpush2.msra.mxu0 %v157
  %295 = vmatprep.subr.mxu0 %v156
  %296 = vmatpush2.msra.mxu0 %v155
  %297 = vmatprep.subr.mxu0 %v154
  %298 = vmatpush2.msra.mxu0 %v153
  %299 = vmatprep.subr.mxu0 %v152
  %300 = vmatpush2.msra.mxu0 %v151
  %301 = vmatprep.subr.mxu0 %v150
  %302 = vmatpush2.msra.mxu0 %v149
  %303 = vmatprep.subr.mxu0 %v148
  %304 = vmatpush2.msra.mxu0 %v147
  %305 = vmatprep.subr.mxu0 %v146
  %306 = vmatpush2.msra.mxu0 %v145
  %307 = vmatprep.subr.mxu0 %v144
  %308 = vmatpush2.msra.mxu0 %v143
  %309 = vmatprep.subr.mxu0 %v142
  %310 = vmatpush2.msra.mxu0 %v141
  %311 = vmatprep.subr.mxu0 %v140
  %312 = vmatpush2.msra.mxu0 %v139
  %313 = vmatprep.subr.mxu0 %v138
  %314 = vmatpush2.msra.mxu0 %v137
  %315 = vmatprep.subr.mxu0 %v136
  %316 = vmatpush2.msra.mxu0 %v135
  %317 = vmatprep.subr.mxu0 %v134
  %318 = vmatpush2.msra.mxu0 %v133
  %319 = vmatprep.subr.mxu0 %v132
  %320 = vmatpush2.msra.mxu0 %v131
  %321 = vmatprep.subr.mxu0 %v130
  %322 = vmatpush2.msra.mxu0 %v129
  %323 = vmatprep.subr.mxu0 %v128
  %324 = vmatpush2.msra.mxu0 %v127
  %325 = vmatprep.mubr.f32.mxu0 %v61
  %326 = vmatmul.mubr.f32.gmra.mxu0 %v60
  %v327 = vpop.f32.mrf.mxu0
  %v328 = vadd.f32 0.0, %v327
  %v329 = vpop.f32.mrf.mxu0
  %v330 = vadd.f32 0.0, %v329
  %331 = vmatprep.mubr.f32.mxu0 %v66
  %332 = vmatmul.mubr.f32.gmra.mxu0 %v65
  %v333 = vpop.f32.mrf.mxu0
  %v334 = vadd.f32 0.0, %v333
  %v335 = vpop.f32.mrf.mxu0
  %v336 = vadd.f32 0.0, %v335
  %337 = vmatprep.mubr.f32.mxu0 %v71
  %338 = vmatmul.mubr.f32.gmra.mxu0 %v70
  %v339 = vpop.f32.mrf.mxu0
  %v340 = vadd.f32 0.0, %v339
  %v341 = vpop.f32.mrf.mxu0
  %v342 = vadd.f32 0.0, %v341
  %343 = vmatprep.mubr.f32.mxu0 %v76
  %344 = vmatmul.mubr.f32.gmra.mxu0 %v75
  %v345 = vpop.f32.mrf.mxu0
  %v346 = vadd.f32 0.0, %v345
  %v347 = vpop.f32.mrf.mxu0
  %v348 = vadd.f32 0.0, %v347
  %349 = vmatprep.mubr.f32.mxu0 %v81
  %350 = vmatmul.mubr.f32.gmra.mxu0 %v80
  %v351 = vpop.f32.mrf.mxu0
  %v352 = vadd.f32 0.0, %v351
  %v353 = vpop.f32.mrf.mxu0
  %v354 = vadd.f32 0.0, %v353
  %355 = vmatprep.mubr.f32.mxu0 %v86
  %356 = vmatmul.mubr.f32.gmra.mxu0 %v85
  %v357 = vpop.f32.mrf.mxu0
  %v358 = vadd.f32 0.0, %v357
  %v359 = vpop.f32.mrf.mxu0
  %v360 = vadd.f32 0.0, %v359
  %361 = vmatprep.mubr.f32.mxu0 %v91
  %362 = vmatmul.mubr.f32.gmra.mxu0 %v90
  %v363 = vpop.f32.mrf.mxu0
  %v364 = vadd.f32 0.0, %v363
  %v365 = vpop.f32.mrf.mxu0
  %v366 = vadd.f32 0.0, %v365
  %367 = vdwg.mxu0
  %368 = vmatprep.subr.mxu0 %v190
  %369 = vmatpush1.msra.mxu0 %v189
  %370 = vmatprep.subr.mxu0 %v188
  %371 = vmatpush1.msra.mxu0 %v187
  %372 = vmatprep.subr.mxu0 %v186
  %373 = vmatpush1.msra.mxu0 %v185
  %374 = vmatprep.subr.mxu0 %v184
  %375 = vmatpush1.msra.mxu0 %v183
  %376 = vmatprep.subr.mxu0 %v182
  %377 = vmatpush1.msra.mxu0 %v181
  %378 = vmatprep.subr.mxu0 %v180
  %379 = vmatpush1.msra.mxu0 %v179
  %380 = vmatprep.subr.mxu0 %v178
  %381 = vmatpush1.msra.mxu0 %v177
  %382 = vmatprep.subr.mxu0 %v176
  %383 = vmatpush1.msra.mxu0 %v175
  %384 = vmatprep.subr.mxu0 %v174
  %385 = vmatpush1.msra.mxu0 %v173
  %386 = vmatprep.subr.mxu0 %v172
  %387 = vmatpush1.msra.mxu0 %v171
  %388 = vmatprep.subr.mxu0 %v170
  %389 = vmatpush1.msra.mxu0 %v169
  %390 = vmatprep.subr.mxu0 %v168
  %391 = vmatpush1.msra.mxu0 %v167
  %392 = vmatprep.subr.mxu0 %v166
  %393 = vmatpush1.msra.mxu0 %v165
  %394 = vmatprep.subr.mxu0 %v164
  %395 = vmatpush1.msra.mxu0 %v163
  %396 = vmatprep.subr.mxu0 %v162
  %397 = vmatpush1.msra.mxu0 %v161
  %398 = vmatprep.subr.mxu0 %v160
  %399 = vmatpush1.msra.mxu0 %v159
  %400 = vmatprep.subr.mxu0 %v222
  %401 = vmatpush2.msra.mxu0 %v221
  %402 = vmatprep.subr.mxu0 %v220
  %403 = vmatpush2.msra.mxu0 %v219
  %404 = vmatprep.subr.mxu0 %v218
  %405 = vmatpush2.msra.mxu0 %v217
  %406 = vmatprep.subr.mxu0 %v216
  %407 = vmatpush2.msra.mxu0 %v215
  %408 = vmatprep.subr.mxu0 %v214
  %409 = vmatpush2.msra.mxu0 %v213
  %410 = vmatprep.subr.mxu0 %v212
  %411 = vmatpush2.msra.mxu0 %v211
  %412 = vmatprep.subr.mxu0 %v210
  %413 = vmatpush2.msra.mxu0 %v209
  %414 = vmatprep.subr.mxu0 %v208
  %415 = vmatpush2.msra.mxu0 %v207
  %416 = vmatprep.subr.mxu0 %v206
  %417 = vmatpush2.msra.mxu0 %v205
  %418 = vmatprep.subr.mxu0 %v204
  %419 = vmatpush2.msra.mxu0 %v203
  %420 = vmatprep.subr.mxu0 %v202
  %421 = vmatpush2.msra.mxu0 %v201
  %422 = vmatprep.subr.mxu0 %v200
  %423 = vmatpush2.msra.mxu0 %v199
  %424 = vmatprep.subr.mxu0 %v198
  %425 = vmatpush2.msra.mxu0 %v197
  %426 = vmatprep.subr.mxu0 %v196
  %427 = vmatpush2.msra.mxu0 %v195
  %428 = vmatprep.subr.mxu0 %v194
  %429 = vmatpush2.msra.mxu0 %v193
  %430 = vmatprep.subr.mxu0 %v192
  %431 = vmatpush2.msra.mxu0 %v191
  %432 = vmatprep.mubr.f32.mxu0 %v63
  %433 = vmatmul.mubr.f32.gmra.mxu0 %v62
  %v434 = vpop.f32.mrf.mxu0
  %v435 = vadd.f32 %v328, %v434
  %v436 = vpop.f32.mrf.mxu0
  %v437 = vadd.f32 %v330, %v436
  %438 = vmatprep.mubr.f32.mxu0 %v68
  %439 = vmatmul.mubr.f32.gmra.mxu0 %v67
  %v440 = vpop.f32.mrf.mxu0
  %v441 = vadd.f32 %v334, %v440
  %v442 = vpop.f32.mrf.mxu0
  %v443 = vadd.f32 %v336, %v442
  %444 = vmatprep.mubr.f32.mxu0 %v73
  %445 = vmatmul.mubr.f32.gmra.mxu0 %v72
  %v446 = vpop.f32.mrf.mxu0
  %v447 = vadd.f32 %v340, %v446
  %v448 = vpop.f32.mrf.mxu0
  %v449 = vadd.f32 %v342, %v448
  %450 = vmatprep.mubr.f32.mxu0 %v78
  %451 = vmatmul.mubr.f32.gmra.mxu0 %v77
  %v452 = vpop.f32.mrf.mxu0
  %v453 = vadd.f32 %v346, %v452
  %v454 = vpop.f32.mrf.mxu0
  %v455 = vadd.f32 %v348, %v454
  %456 = vmatprep.mubr.f32.mxu0 %v83
  %457 = vmatmul.mubr.f32.gmra.mxu0 %v82
  %v458 = vpop.f32.mrf.mxu0
  %v459 = vadd.f32 %v352, %v458
  %v460 = vpop.f32.mrf.mxu0
  %v461 = vadd.f32 %v354, %v460
  %462 = vmatprep.mubr.f32.mxu0 %v88
  %463 = vmatmul.mubr.f32.gmra.mxu0 %v87
  %v464 = vpop.f32.mrf.mxu0
  %v465 = vadd.f32 %v358, %v464
  %v466 = vpop.f32.mrf.mxu0
  %v467 = vadd.f32 %v360, %v466
  %468 = vmatprep.mubr.f32.mxu0 %v93
  %469 = vmatmul.mubr.f32.gmra.mxu0 %v92
  %v470 = vpop.f32.mrf.mxu0
  %v471 = vadd.f32 %v364, %v470
  %v472 = vpop.f32.mrf.mxu0
  %v473 = vadd.f32 %v366, %v472
  %474 = vdwg.mxu0
  %475 = vmatprep.subr.mxu0 0.0
  %476 = vmatpush1.msra.mxu0 0.0
  %477 = vmatprep.subr.mxu0 0.0
  %478 = vmatpush1.msra.mxu0 0.0
  %479 = vmatprep.subr.mxu0 0.0
  %480 = vmatpush1.msra.mxu0 0.0
  %481 = vmatprep.subr.mxu0 0.0
  %482 = vmatpush1.msra.mxu0 0.0
  %483 = vmatprep.subr.mxu0 0.0
  %484 = vmatpush1.msra.mxu0 0.0
  %485 = vmatprep.subr.mxu0 0.0
  %486 = vmatpush1.msra.mxu0 0.0
  %487 = vmatprep.subr.mxu0 0.0
  %488 = vmatpush1.msra.mxu0 0.0
  %489 = vmatprep.subr.mxu0 0.0
  %490 = vmatpush1.msra.mxu0 0.0
  %491 = vmatprep.subr.mxu0 %v238
  %492 = vmatpush1.msra.mxu0 %v237
  %493 = vmatprep.subr.mxu0 %v236
  %494 = vmatpush1.msra.mxu0 %v235
  %495 = vmatprep.subr.mxu0 %v234
  %496 = vmatpush1.msra.mxu0 %v233
  %497 = vmatprep.subr.mxu0 %v232
  %498 = vmatpush1.msra.mxu0 %v231
  %499 = vmatprep.subr.mxu0 %v230
  %500 = vmatpush1.msra.mxu0 %v229
  %501 = vmatprep.subr.mxu0 %v228
  %502 = vmatpush1.msra.mxu0 %v227
  %503 = vmatprep.subr.mxu0 %v226
  %504 = vmatpush1.msra.mxu0 %v225
  %505 = vmatprep.subr.mxu0 %v224
  %506 = vmatpush1.msra.mxu0 %v223
  %507 = vmatprep.subr.mxu0 0.0
  %508 = vmatpush2.msra.mxu0 0.0
  %509 = vmatprep.subr.mxu0 0.0
  %510 = vmatpush2.msra.mxu0 0.0
  %511 = vmatprep.subr.mxu0 0.0
  %512 = vmatpush2.msra.mxu0 0.0
  %513 = vmatprep.subr.mxu0 0.0
  %514 = vmatpush2.msra.mxu0 0.0
  %515 = vmatprep.subr.mxu0 0.0
  %516 = vmatpush2.msra.mxu0 0.0
  %517 = vmatprep.subr.mxu0 0.0
  %518 = vmatpush2.msra.mxu0 0.0
  %519 = vmatprep.subr.mxu0 0.0
  %520 = vmatpush2.msra.mxu0 0.0
  %521 = vmatprep.subr.mxu0 0.0
  %522 = vmatpush2.msra.mxu0 0.0
  %523 = vmatprep.subr.mxu0 0.0
  %524 = vmatpush2.msra.mxu0 0.0
  %525 = vmatprep.subr.mxu0 0.0
  %526 = vmatpush2.msra.mxu0 0.0
  %527 = vmatprep.subr.mxu0 0.0
  %528 = vmatpush2.msra.mxu0 0.0
  %529 = vmatprep.subr.mxu0 0.0
  %530 = vmatpush2.msra.mxu0 0.0
  %531 = vmatprep.subr.mxu0 0.0
  %532 = vmatpush2.msra.mxu0 0.0
  %533 = vmatprep.subr.mxu0 0.0
  %534 = vmatpush2.msra.mxu0 0.0
  %535 = vmatprep.subr.mxu0 0.0
  %536 = vmatpush2.msra.mxu0 0.0
  %537 = vmatprep.subr.mxu0 0.0
  %538 = vmatpush2.msra.mxu0 0.0
  %539 = vmatprep.mubr.f32.mxu0 0.0
  %540 = vmatmul.mubr.f32.gmra.mxu0 %v241
  %v541 = vpop.f32.mrf.mxu0
  %v542 = vadd.f32 %v435, %v541
  %v543 = vpop.f32.mrf.mxu0
  %v544 = vadd.f32 %v437, %v543
  %545 = vmatprep.mubr.f32.mxu0 0.0
  %546 = vmatmul.mubr.f32.gmra.mxu0 %v244
  %v547 = vpop.f32.mrf.mxu0
  %v548 = vadd.f32 %v441, %v547
  %v549 = vpop.f32.mrf.mxu0
  %v550 = vadd.f32 %v443, %v549
  %551 = vmatprep.mubr.f32.mxu0 0.0
  %552 = vmatmul.mubr.f32.gmra.mxu0 %v247
  %v553 = vpop.f32.mrf.mxu0
  %v554 = vadd.f32 %v447, %v553
  %v555 = vpop.f32.mrf.mxu0
  %v556 = vadd.f32 %v449, %v555
  %557 = vmatprep.mubr.f32.mxu0 0.0
  %558 = vmatmul.mubr.f32.gmra.mxu0 %v250
  %v559 = vpop.f32.mrf.mxu0
  %v560 = vadd.f32 %v453, %v559
  %v561 = vpop.f32.mrf.mxu0
  %v562 = vadd.f32 %v455, %v561
  %563 = vmatprep.mubr.f32.mxu0 0.0
  %564 = vmatmul.mubr.f32.gmra.mxu0 %v253
  %v565 = vpop.f32.mrf.mxu0
  %v566 = vadd.f32 %v459, %v565
  %v567 = vpop.f32.mrf.mxu0
  %v568 = vadd.f32 %v461, %v567
  %569 = vmatprep.mubr.f32.mxu0 0.0
  %570 = vmatmul.mubr.f32.gmra.mxu0 %v256
  %v571 = vpop.f32.mrf.mxu0
  %v572 = vadd.f32 %v465, %v571
  %v573 = vpop.f32.mrf.mxu0
  %v574 = vadd.f32 %v467, %v573
  %575 = vmatprep.mubr.f32.mxu0 0.0
  %576 = vmatmul.mubr.f32.gmra.mxu0 %v259
  %v577 = vpop.f32.mrf.mxu0
  %v578 = vadd.f32 %v471, %v577
  %v579 = vpop.f32.mrf.mxu0
  %v580 = vadd.f32 %v473, %v579
  %581 = vdwg.mxu0
  %v582 = vadd.f32 %v46, %v542
  %v583 = vadd.f32 %v47, %v544
  %v584 = vadd.f32 %v48, %v548
  %v585 = vadd.f32 %v49, %v550
  %v586 = vadd.f32 %v50, %v554
  %v587 = vadd.f32 %v51, %v556
  %v588 = vadd.f32 %v52, %v560
  %v589 = vadd.f32 %v53, %v562
  %v590 = vadd.f32 %v54, %v566
  %v591 = vadd.f32 %v55, %v568
  %v592 = vadd.f32 %v56, %v572
  %v593 = vadd.f32 %v57, %v574
  %v594 = vadd.f32 %v58, %v578
  %v595 = vadd.f32 %v59, %v580
  %596 = vst [vmem:[%s3] sm:$0xff] %v582
  %597 = vst.msk [vmem:[%s3 + $0x8] sm:$0xff] %vm239, %v583
  %598 = vst [vmem:[%s3 + $0x10] sm:$0xff] %v584
  %599 = vst.msk [vmem:[%s3 + $0x18] sm:$0xff] %vm239, %v585
  %600 = vst [vmem:[%s3 + $0x20] sm:$0xff] %v586
  %601 = vst.msk [vmem:[%s3 + $0x28] sm:$0xff] %vm239, %v587
  %602 = vst [vmem:[%s3 + $0x30] sm:$0xff] %v588
  %603 = vst.msk [vmem:[%s3 + $0x38] sm:$0xff] %vm239, %v589
  %604 = vst [vmem:[%s3 + $0x40] sm:$0xff] %v590
  %605 = vst.msk [vmem:[%s3 + $0x48] sm:$0xff] %vm239, %v591
  %606 = vst [vmem:[%s3 + $0x50] sm:$0xff] %v592
  %607 = vst.msk [vmem:[%s3 + $0x58] sm:$0xff] %vm239, %v593
  %608 = vst [vmem:[%s3 + $0x60] sm:$0x3] %v594
  %vm609 = vcmask 517120
  %610 = vst.msk [vmem:[%s3 + $0x68] sm:$0x3] %vm609, %v595
  // Predicated region
  $region18: #{net4ht_forward.7} parent=0 // pred_check
    _
  $region19: #{net4ht_forward.7} parent=0 // pred_check_branch
    %612 = sbr.rel (0) target = $region21
  $region20: #{net4ht_forward.7} parent=0 // pred_region
    _
  $region21: #{net4ht_forward.7} parent=0 // pred_fallthru
    _
  // Predicated region
  $region22: #{net4ht_forward.7} parent=0 // pred_check
    _
  $region23: #{net4ht_forward.7} parent=0 // pred_check_branch
    %614 = sbr.rel (0) target = $region25
  $region24: #{net4ht_forward.7} parent=0 // pred_region
    _
  $region25: #{net4ht_forward.7} parent=0 // pred_fallthru
    _

// kernel: net4ht_forward.8
$region0: #{net4ht_forward.8}
  #allocation0 [shape = 'u32[]', space=smem, size = 0x4, offset = 0x4, fixed_abs, tag = 'smem constant byte address 0x4 - core index']
  #allocation1 [shape = 'u32[144,128]{1,0:T(1,128)}', space=vmem, size = 0x12000, scoped, tag = 'internal scratch']
  %s0 = inlined_call_operand.vmem [shape: f32[4,2,2,2,192], index: 0, kind: input, shape index: {}]
  %s1 = inlined_call_operand.vmem [shape: f32[4,2,192], index: 1, kind: output, shape index: {}]
  %s2 = sld [smem:[#allocation0]]
  $region37: #{net4ht_forward.8} parent=0
    _
  %s4 = ssub.s32 1, %s2
  %s5 = scalar_select 0, %s4, %s2
  loop: start=0, step=1, limit=4
  $region2: #{net4ht_forward.8} parent=0 // loop_pre_header
    _
  $region3: #{net4ht_forward.8} parent=0 // loop_header
    %s7 = sphi 0, %s11
    %p8 = scmp.ge.s32.totalorder %s7, 4
    %s17 = sphi 0, %s19
    %s20 = sphi 0, %s17
    %s21 = sphi 0, %s20
    %s37 = sphi 0, %s21
    %s43 = sphi 0, %s45
    %s46 = sphi 0, %s43
    %s47 = sphi 0, %s46
    %s63 = sphi 0, %s47
  $region4: #{net4ht_forward.8} parent=0 // loop_header_branch
    %10 = sbr.rel (%p8) target = $region8
  $region5: #{net4ht_forward.8} parent=0 // loop_body
    %s12 = ssub.s32 %s7, 1
    %s13 = ssub.s32 %s7, 2
    %s14 = sadd.s32 %s7, 1
    %s15 = ssub.s32 %s7, %s14
    %p16 = scmp.eq.s32.totalorder %s15, 0
    %s18 = sadd.s32 %s17, 1
    %s19 = scalar_select %p16, %s17, %s18
    %p22 = pneg %p16
    %p23 = scmp.eq.s32.totalorder %s7, 1
    %p24 = por %p22, %p23
    %p25 = scmp.ne.s32.totalorder %s17, %s20
    %p26 = scmp.eq.s32.totalorder %s7, 0
    %p27 = por %p25, %p26
    %p28 = scmp.ne.s32.totalorder %s17, %s20
    %p29 = scmp.eq.s32.totalorder %s12, 1
    %p30 = por %p28, %p29
    %p31 = scmp.ne.s32.totalorder %s20, %s21
    %p32 = scmp.eq.s32.totalorder %s12, 0
    %p33 = por %p31, %p32
    %p34 = scmp.ne.s32.totalorder %s20, %s21
    %p35 = scmp.eq.s32.totalorder %s13, 1
    %p36 = por %p34, %p35
    %p38 = scmp.ne.s32.totalorder %s21, %s37
    %p39 = scmp.eq.s32.totalorder %s13, 0
    %p40 = por %p38, %p39
    %s41 = ssub.s32 %s7, %s14
    %p42 = scmp.eq.s32.totalorder %s41, 0
    %s44 = sadd.s32 %s43, 1
    %s45 = scalar_select %p42, %s43, %s44
    %p48 = pneg %p42
    %p49 = scmp.eq.s32.totalorder %s7, 1
    %p50 = por %p48, %p49
    %p51 = scmp.ne.s32.totalorder %s43, %s46
    %p52 = scmp.eq.s32.totalorder %s7, 0
    %p53 = por %p51, %p52
    %p54 = scmp.ne.s32.totalorder %s43, %s46
    %p55 = scmp.eq.s32.totalorder %s12, 1
    %p56 = por %p54, %p55
    %p57 = scmp.ne.s32.totalorder %s46, %s47
    %p58 = scmp.eq.s32.totalorder %s12, 0
    %p59 = por %p57, %p58
    %p60 = scmp.ne.s32.totalorder %s46, %s47
    %p61 = scmp.eq.s32.totalorder %s13, 1
    %p62 = por %p60, %p61
    %p64 = scmp.ne.s32.totalorder %s47, %s63
    %p65 = scmp.eq.s32.totalorder %s13, 0
    %p66 = por %p64, %p65
    %p67 = scmp.le.s32.totalorder 1, %s7
    %p68 = scmp.lt.s32.totalorder %s7, 3
    %p69 = pnand %p67, %p68
    %p70 = pneg %p69
    // Predicated region
    $region9: #{net4ht_forward.8} parent=5 // pred_check
      _
    $region10: #{net4ht_forward.8} parent=5 // pred_check_branch
      %72 = sbr.rel (%p69) target = $region12
    $region11: #{net4ht_forward.8} parent=5 // pred_region
      %s73 = ssub.s32 %s7, 1
    $region12: #{net4ht_forward.8} parent=5 // pred_fallthru
      _
    %p74 = scmp.lt.s32.totalorder %s7, 2
    // Predicated region
    $region13: #{net4ht_forward.8} parent=5 // pred_check
      %p75 = pneg %p74
    $region14: #{net4ht_forward.8} parent=5 // pred_check_branch
      %77 = sbr.rel (%p75) target = $region16
    $region15: #{net4ht_forward.8} parent=5 // pred_region
      // Predicated region
      $region17: #{net4ht_forward.8} parent=15 // pred_check
        %p78 = pneg %p27
      $region18: #{net4ht_forward.8} parent=15 // pred_check_branch
        %80 = sbr.rel (%p78) target = $region20
      $region19: #{net4ht_forward.8} parent=15 // pred_region
        %s81 = smul.u32 2, %s7
        %p82 = scmp.lt.s32.totalorder %s81, 3
        %s83 = scalar_select %p82, %s81, 3
        %s84 = smul.addr %s83, 8
        %s85 = smul.addr %s84, 2
        %s86 = scalar_lea.vmem %s0, %s85
        %s87 = smul.u32 2, %s7
      $region20: #{net4ht_forward.8} parent=15 // pred_fallthru
        _
    $region16: #{net4ht_forward.8} parent=5 // pred_fallthru
      _
    %p88 = scmp.le.s32.totalorder 1, %s7
    %p89 = scmp.lt.s32.totalorder %s7, 3
    %p90 = pnand %p88, %p89
    %p91 = pneg %p90
    // Predicated region
    $region21: #{net4ht_forward.8} parent=5 // pred_check
      _
    $region22: #{net4ht_forward.8} parent=5 // pred_check_branch
      %93 = sbr.rel (%p90) target = $region24
    $region23: #{net4ht_forward.8} parent=5 // pred_region
      %s94 = ssub.s32 %s7, 1
      %s95 = smul.u32 2, %s12
      %p96 = scmp.lt.s32.totalorder %s95, 3
      %s97 = scalar_select %p96, %s95, 3
      %s98 = smul.addr %s97, 8
      %s99 = smul.addr %s98, 2
      %s100 = scalar_lea.vmem %s0, %s99
      %p101 = pneg %p33
      %p102 = pneg %p30
      %p103 = pneg %p59
      %p104 = pneg %p56
      %s105 = smul.u32 2, %s12
      %p106 = scmp.lt.s32.totalorder %s105, 3
      %s107 = scalar_select %p106, %s105, 3
      %s108 = smul.addr %s107, 2
      %s109 = smul.addr %s108, 2
      %s110 = scalar_lea.vmem %s1, %s109
      %s111 = smul.u32 2, %s12
      %p112 = scmp.lt.s32.totalorder %s111, 3
      %s113 = scalar_select %p112, %s111, 3
      %s114 = smul.addr %s113, 8
      %s115 = smul.addr %s114, 2
      %s116 = scalar_lea.vmem %s0, %s115
      %s117 = smul.u32 2, %s12
      %s118 = smul.u32 2, %s12
      %p119 = scmp.lt.s32.totalorder %s118, 3
      %s120 = scalar_select %p119, %s118, 3
      %s121 = smul.addr %s120, 2
      %s122 = smul.addr %s121, 2
      %s123 = scalar_lea.vmem %s1, %s122
      %s124 = smul.u32 2, %s12
      %v125 = vld [vmem:[%s116] sm:$0xf]
      %v126 = vld [vmem:[%s116 + $0x4] sm:$0xf]
      %v127 = vld [vmem:[%s116 + $0x10] sm:$0xf]
      %v128 = vld [vmem:[%s116 + $0x14] sm:$0xf]
      %s129 = scalar_lea.vmem %s116, 8
      %v130 = vld [vmem:[%s129] sm:$0xf]
      %v131 = vld [vmem:[%s129 + $0x4] sm:$0xf]
      %v132 = vld [vmem:[%s129 + $0x10] sm:$0xf]
      %v133 = vld [vmem:[%s129 + $0x14] sm:$0xf]
      %v134 = vmax.f32 %v125, %v130
      %v135 = vmax.f32 %v126, %v131
      %v136 = vmax.f32 %v127, %v132
      %v137 = vmax.f32 %v128, %v133
      %v143 = vunpack.c.l.s4 1983009808
      %v144 = vunpack.c.0.s8 %v143
      %v145 = vlaneseq
      %v146 = vshrl.u32 %v145, 7
      %v147 = vsub.s32 %v144, %v146
      %v148 = vrot.slane %v134, %v147
      %v149 = vcombine.high %v148, %v148
      %v151 = vunpack.c.l.s4 1983009808
      %v152 = vunpack.c.0.s8 %v151
      %v153 = vlaneseq
      %v154 = vshrl.u32 %v153, 7
      %v155 = vsub.s32 %v152, %v154
      %v156 = vrot.slane %v135, %v155
      %v157 = vcombine.high %v156, %v156
      %v159 = vunpack.c.l.s4 1983009808
      %v160 = vunpack.c.0.s8 %v159
      %v161 = vlaneseq
      %v162 = vshrl.u32 %v161, 7
      %v163 = vsub.s32 %v160, %v162
      %v164 = vrot.slane %v136, %v163
      %v165 = vcombine.high %v164, %v164
      %v167 = vunpack.c.l.s4 1983009808
      %v168 = vunpack.c.0.s8 %v167
      %v169 = vlaneseq
      %v170 = vshrl.u32 %v169, 7
      %v171 = vsub.s32 %v168, %v170
      %v172 = vrot.slane %v137, %v171
      %v173 = vcombine.high %v172, %v172
      %vm182 = vcmask 1041408
      %v183 = vsel %vm182, %v148, -inf
      %v184 = vrot.slane %v183, 4
      %v185 = vmax.f32 %v183, %v184
      %v186 = vrot.slane %v185, 2
      %v187 = vmax.f32 %v185, %v186
      %v188 = vrot.slane %v187, 1
      %v189 = vmax.f32 %v187, %v188
      %vm190 = vcmask 517120
      %v191 = vsel %vm190, %v149, -inf
      %v192 = vrot.slane %v191, 4
      %v193 = vmax.f32 %v191, %v192
      %v194 = vrot.slane %v193, 2
      %v195 = vmax.f32 %v193, %v194
      %v196 = vrot.slane %v195, 1
      %v197 = vmax.f32 %v195, %v196
      %v198 = vsel %vm182, %v156, -inf
      %v199 = vrot.slane %v198, 4
      %v200 = vmax.f32 %v198, %v199
      %v201 = vrot.slane %v200, 2
      %v202 = vmax.f32 %v200, %v201
      %v203 = vrot.slane %v202, 1
      %v204 = vmax.f32 %v202, %v203
      %v205 = vsel %vm190, %v157, -inf
      %v206 = vrot.slane %v205, 4
      %v207 = vmax.f32 %v205, %v206
      %v208 = vrot.slane %v207, 2
      %v209 = vmax.f32 %v207, %v208
      %v210 = vrot.slane %v209, 1
      %v211 = vmax.f32 %v209, %v210
      %v212 = vsel %vm182, %v164, -inf
      %v213 = vrot.slane %v212, 4
      %v214 = vmax.f32 %v212, %v213
      %v215 = vrot.slane %v214, 2
      %v216 = vmax.f32 %v214, %v215
      %v217 = vrot.slane %v216, 1
      %v218 = vmax.f32 %v216, %v217
      %v219 = vsel %vm190, %v165, -inf
      %v220 = vrot.slane %v219, 4
      %v221 = vmax.f32 %v219, %v220
      %v222 = vrot.slane %v221, 2
      %v223 = vmax.f32 %v221, %v222
      %v224 = vrot.slane %v223, 1
      %v225 = vmax.f32 %v223, %v224
      %v226 = vsel %vm182, %v172, -inf
      %v227 = vrot.slane %v226, 4
      %v228 = vmax.f32 %v226, %v227
      %v229 = vrot.slane %v228, 2
      %v230 = vmax.f32 %v228, %v229
      %v231 = vrot.slane %v230, 1
      %v232 = vmax.f32 %v230, %v231
      %v233 = vsel %vm190, %v173, -inf
      %v234 = vrot.slane %v233, 4
      %v235 = vmax.f32 %v233, %v234
      %v236 = vrot.slane %v235, 2
      %v237 = vmax.f32 %v235, %v236
      %v238 = vrot.slane %v237, 1
      %v239 = vmax.f32 %v237, %v238
      %v248 = vcombine.low %v189, %v197
      %v250 = vunpack.c.l.s4 1983009808
      %v251 = vunpack.c.0.s8 %v250
      %v252 = vlaneseq
      %v253 = vshrl.u32 %v252, 7
      %v254 = vsub.s32 %v251, %v253
      %v255 = vrot.slane %v248, %v254
      %v256 = vcombine.low %v204, %v211
      %v258 = vunpack.c.l.s4 1983009808
      %v259 = vunpack.c.0.s8 %v258
      %v260 = vlaneseq
      %v261 = vshrl.u32 %v260, 7
      %v262 = vsub.s32 %v259, %v261
      %v263 = vrot.slane %v256, %v262
      %v264 = vcombine.low %v218, %v225
      %v266 = vunpack.c.l.s4 1983009808
      %v267 = vunpack.c.0.s8 %v266
      %v268 = vlaneseq
      %v269 = vshrl.u32 %v268, 7
      %v270 = vsub.s32 %v267, %v269
      %v271 = vrot.slane %v264, %v270
      %v272 = vcombine.low %v232, %v239
      %v274 = vunpack.c.l.s4 1983009808
      %v275 = vunpack.c.0.s8 %v274
      %v276 = vlaneseq
      %v277 = vshrl.u32 %v276, 7
      %v278 = vsub.s32 %v275, %v277
      %v279 = vrot.slane %v272, %v278
      %vm280 = vcmask 1044484
      %v281 = vsel %vm280, %v255, %v255
      %vm282 = vcmask 1046534
      %v283 = vsel %vm282, %v255, %v281
      %v284 = vrot.slane %v263, 7
      %vm285 = vcmask 1041409
      %v286 = vsel %vm285, %v284, %v283
      %vm287 = vcmask 1043459
      %v288 = vsel %vm287, %v284, %v286
      %vm289 = vcmask 1045509
      %v290 = vsel %vm289, %v284, %v288
      %vm291 = vcmask 1047559
      %v292 = vsel %vm291, %v284, %v290
      %v293 = vsel %vm280, %v271, %v271
      %v294 = vsel %vm282, %v271, %v293
      %v295 = vrot.slane %v279, 7
      %v296 = vsel %vm285, %v295, %v294
      %v297 = vsel %vm287, %v295, %v296
      %v298 = vsel %vm289, %v295, %v297
      %v299 = vsel %vm291, %v295, %v298
      %vm302 = vcmask 519170
      %vm303 = vmor %vm302, %vm182
      %304 = vst.msk [vmem:[%s123] sm:$0xf] %vm303, %v292
      %305 = vst.msk [vmem:[%s123 + $0x4] sm:$0xf] %vm303, %v299
      %s306 = smul.u32 2, %s12
      %p307 = scmp.lt.s32.totalorder %s306, 3
      %s308 = scalar_select %p307, %s306, 3
      %s309 = smul.addr %s308, 2
      %s310 = smul.addr %s309, 2
      %s311 = scalar_lea.vmem %s1, %s310
      // Predicated region
      $region25: #{net4ht_forward.8} parent=23 // pred_check
        %p312 = pneg %p56
      $region26: #{net4ht_forward.8} parent=23 // pred_check_branch
        %314 = sbr.rel (%p312) target = $region28
      $region27: #{net4ht_forward.8} parent=23 // pred_region
        %s315 = smul.u32 2, %s12
      $region28: #{net4ht_forward.8} parent=23 // pred_fallthru
        _
    $region24: #{net4ht_forward.8} parent=5 // pred_fallthru
      _
    %p316 = scmp.le.s32.totalorder 2, %s7
    // Predicated region
    $region29: #{net4ht_forward.8} parent=5 // pred_check
      %p317 = pneg %p316
    $region30: #{net4ht_forward.8} parent=5 // pred_check_branch
      %319 = sbr.rel (%p317) target = $region32
    $region31: #{net4ht_forward.8} parent=5 // pred_region
      %s320 = ssub.s32 %s7, 2
      // Predicated region
      $region33: #{net4ht_forward.8} parent=31 // pred_check
        %p321 = pneg %p62
      $region34: #{net4ht_forward.8} parent=31 // pred_check_branch
        %323 = sbr.rel (%p321) target = $region36
      $region35: #{net4ht_forward.8} parent=31 // pred_region
        %s324 = smul.u32 2, %s13
        %p325 = scmp.lt.s32.totalorder %s324, 3
        %s326 = scalar_select %p325, %s324, 3
        %s327 = smul.addr %s326, 2
        %s328 = smul.addr %s327, 2
        %s329 = scalar_lea.vmem %s1, %s328
      $region36: #{net4ht_forward.8} parent=31 // pred_fallthru
        _
    $region32: #{net4ht_forward.8} parent=5 // pred_fallthru
      _
  $region6: #{net4ht_forward.8} parent=0 // loop_footer
    %s11 = sadd.s32 1, %s7
  $region7: #{net4ht_forward.8} parent=0 // loop_footer_branch
    %6 = sbr.rel target = $region3
  $region8: #{net4ht_forward.8} parent=0 // loop_exit
    _

// kernel: net4ht_forward.9
$region0: #{net4ht_forward.9}
  #allocation0 [shape = 'u32[]', space=smem, size = 0x4, offset = 0x4, fixed_abs, tag = 'smem constant byte address 0x4 - core index']
  #allocation1 [shape = 'u32[144,128]{1,0:T(1,128)}', space=vmem, size = 0x12000, scoped, tag = 'internal scratch']
  %s0 = inlined_call_operand.vmem [shape: f32[2,768], index: 0, kind: input, shape index: {}]
  %s1 = inlined_call_operand.vmem [shape: f32[768,1024], index: 1, kind: input, shape index: {}]
  %s2 = inlined_call_operand.vmem [shape: f32[1,1024], index: 2, kind: input, shape index: {}]
  %s3 = inlined_call_operand.vmem [shape: f32[2,512,128], index: 3, kind: input, shape index: {}]
  %s4 = inlined_call_operand.vmem [shape: f32[2,1,128], index: 4, kind: input, shape index: {}]
  %s5 = inlined_call_operand.vmem [shape: f32[2,2,512], index: 5, kind: output, shape index: {0}]
  %s6 = inlined_call_operand.vmem [shape: f32[2,2,128], index: 6, kind: output, shape index: {1}]
  %7 = xla_tuple %s5, %s6
  %s8 = sld [smem:[#allocation0]]
  $region92: #{net4ht_forward.9} parent=0
    _
  %s10 = ssub.s32 1, %s8
  %s11 = scalar_select 0, %s10, %s8
  $region1: #{net4ht_forward.9} parent=0
    #allocation2 [shape = 'u8[3145728]{0}', space=vmem, size = 0x300000, scoped, tag = 'input window, operand 1']
    loop: start=0, step=1, limit=4
    $region2: #{net4ht_forward.9} parent=1 // loop_pre_header
      _
    $region3: #{net4ht_forward.9} parent=1 // loop_header
      %s13 = sphi 0, %s17
      %p14 = scmp.ge.s32.totalorder %s13, 4
      %s20 = sphi 0, %s32
      %s21 = sphi 0, %s28
      %s22 = sphi 0, %s20
      %s23 = sphi 0, %s21
      %s24 = sphi 0, %s22
      %s25 = sphi 0, %s23
      %s35 = sphi 0, %s37
      %s38 = sphi 0, %s35
      %s39 = sphi 0, %s38
      %s55 = sphi 0, %s39
      %s63 = sphi 0, %s65
      %s66 = sphi 0, %s63
      %s67 = sphi 0, %s66
      %s83 = sphi 0, %s67
      %s89 = sphi 0, %s91
      %s92 = sphi 0, %s89
      %s93 = sphi 0, %s92
      %s109 = sphi 0, %s93
      %s115 = sphi 0, %s117
      %s118 = sphi 0, %s115
      %s119 = sphi 0, %s118
      %s135 = sphi 0, %s119
      %s141 = sphi 0, %s143
      %s144 = sphi 0, %s141
      %s145 = sphi 0, %s144
      %s161 = sphi 0, %s145
      %s167 = sphi 0, %s169
      %s170 = sphi 0, %s167
      %s171 = sphi 0, %s170
      %s187 = sphi 0, %s171
      %s193 = sphi 0, %s195
      %s196 = sphi 0, %s193
      %s197 = sphi 0, %s196
      %s213 = sphi 0, %s197
    $region4: #{net4ht_forward.9} parent=1 // loop_header_branch
      %16 = sbr.rel (%p14) target = $region8
    $region5: #{net4ht_forward.9} parent=1 // loop_body
      %s18 = ssub.s32 %s13, 1
      %s19 = ssub.s32 %s13, 2
      %s26 = sadd.s32 1, %s21
      %p27 = scmp.ge.s32.totalorder %s26, 1
      %s28 = scalar_select %p27, 0, %s26
      %s29 = sadd.s32 1, %s20
      %s30 = scalar_select %p27, %s29, %s20
      %p31 = scmp.ge.s32.totalorder %s30, 2
      %s32 = scalar_select %p31, 0, %s30
      %s33 = ssub.s32 %s21, %s28
      %p34 = scmp.eq.s32.totalorder %s33, 0
      %s36 = sadd.s32 %s35, 1
      %s37 = scalar_select %p34, %s35, %s36
      %p40 = pneg %p34
      %p41 = scmp.eq.s32.totalorder %s13, 1
      %p42 = por %p40, %p41
      %p43 = scmp.ne.s32.totalorder %s35, %s38
      %p44 = scmp.eq.s32.totalorder %s13, 0
      %p45 = por %p43, %p44
      %p46 = scmp.ne.s32.totalorder %s35, %s38
      %p47 = scmp.eq.s32.totalorder %s18, 1
      %p48 = por %p46, %p47
      %p49 = scmp.ne.s32.totalorder %s38, %s39
      %p50 = scmp.eq.s32.totalorder %s18, 0
      %p51 = por %p49, %p50
      %p52 = scmp.ne.s32.totalorder %s38, %s39
      %p53 = scmp.eq.s32.totalorder %s19, 1
      %p54 = por %p52, %p53
      %p56 = scmp.ne.s32.totalorder %s39, %s55
      %p57 = scmp.eq.s32.totalorder %s19, 0
      %p58 = por %p56, %p57
      %s59 = ssub.s32 %s21, %s28
      %s60 = ssub.s32 %s20, %s32
      %s61 = sor.u32 %s59, %s60
      %p62 = scmp.eq.s32.totalorder %s61, 0
      %s64 = sadd.s32 %s63, 1
      %s65 = scalar_select %p62, %s63, %s64
      %p68 = pneg %p62
      %p69 = scmp.eq.s32.totalorder %s13, 1
      %p70 = por %p68, %p69
      %p71 = scmp.ne.s32.totalorder %s63, %s66
      %p72 = scmp.eq.s32.totalorder %s13, 0
      %p73 = por %p71, %p72
      %p74 = scmp.ne.s32.totalorder %s63, %s66
      %p75 = scmp.eq.s32.totalorder %s18, 1
      %p76 = por %p74, %p75
      %p77 = scmp.ne.s32.totalorder %s66, %s67
      %p78 = scmp.eq.s32.totalorder %s18, 0
      %p79 = por %p77, %p78
      %p80 = scmp.ne.s32.totalorder %s66, %s67
      %p81 = scmp.eq.s32.totalorder %s19, 1
      %p82 = por %p80, %p81
      %p84 = scmp.ne.s32.totalorder %s67, %s83
      %p85 = scmp.eq.s32.totalorder %s19, 0
      %p86 = por %p84, %p85
      %s87 = ssub.s32 %s20, %s32
      %p88 = scmp.eq.s32.totalorder %s87, 0
      %s90 = sadd.s32 %s89, 1
      %s91 = scalar_select %p88, %s89, %s90
      %p94 = pneg %p88
      %p95 = scmp.eq.s32.totalorder %s13, 1
      %p96 = por %p94, %p95
      %p97 = scmp.ne.s32.totalorder %s89, %s92
      %p98 = scmp.eq.s32.totalorder %s13, 0
      %p99 = por %p97, %p98
      %p100 = scmp.ne.s32.totalorder %s89, %s92
      %p101 = scmp.eq.s32.totalorder %s18, 1
      %p102 = por %p100, %p101
      %p103 = scmp.ne.s32.totalorder %s92, %s93
      %p104 = scmp.eq.s32.totalorder %s18, 0
      %p105 = por %p103, %p104
      %p106 = scmp.ne.s32.totalorder %s92, %s93
      %p107 = scmp.eq.s32.totalorder %s19, 1
      %p108 = por %p106, %p107
      %p110 = scmp.ne.s32.totalorder %s93, %s109
      %p111 = scmp.eq.s32.totalorder %s19, 0
      %p112 = por %p110, %p111
      %s113 = ssub.s32 %s20, %s32
      %p114 = scmp.eq.s32.totalorder %s113, 0
      %s116 = sadd.s32 %s115, 1
      %s117 = scalar_select %p114, %s115, %s116
      %p120 = pneg %p114
      %p121 = scmp.eq.s32.totalorder %s13, 1
      %p122 = por %p120, %p121
      %p123 = scmp.ne.s32.totalorder %s115, %s118
      %p124 = scmp.eq.s32.totalorder %s13, 0
      %p125 = por %p123, %p124
      %p126 = scmp.ne.s32.totalorder %s115, %s118
      %p127 = scmp.eq.s32.totalorder %s18, 1
      %p128 = por %p126, %p127
      %p129 = scmp.ne.s32.totalorder %s118, %s119
      %p130 = scmp.eq.s32.totalorder %s18, 0
      %p131 = por %p129, %p130
      %p132 = scmp.ne.s32.totalorder %s118, %s119
      %p133 = scmp.eq.s32.totalorder %s19, 1
      %p134 = por %p132, %p133
      %p136 = scmp.ne.s32.totalorder %s119, %s135
      %p137 = scmp.eq.s32.totalorder %s19, 0
      %p138 = por %p136, %p137
      %s139 = ssub.s32 %s20, %s32
      %p140 = scmp.eq.s32.totalorder %s139, 0
      %s142 = sadd.s32 %s141, 1
      %s143 = scalar_select %p140, %s141, %s142
      %p146 = pneg %p140
      %p147 = scmp.eq.s32.totalorder %s13, 1
      %p148 = por %p146, %p147
      %p149 = scmp.ne.s32.totalorder %s141, %s144
      %p150 = scmp.eq.s32.totalorder %s13, 0
      %p151 = por %p149, %p150
      %p152 = scmp.ne.s32.totalorder %s141, %s144
      %p153 = scmp.eq.s32.totalorder %s18, 1
      %p154 = por %p152, %p153
      %p155 = scmp.ne.s32.totalorder %s144, %s145
      %p156 = scmp.eq.s32.totalorder %s18, 0
      %p157 = por %p155, %p156
      %p158 = scmp.ne.s32.totalorder %s144, %s145
      %p159 = scmp.eq.s32.totalorder %s19, 1
      %p160 = por %p158, %p159
      %p162 = scmp.ne.s32.totalorder %s145, %s161
      %p163 = scmp.eq.s32.totalorder %s19, 0
      %p164 = por %p162, %p163
      %s165 = ssub.s32 %s20, %s32
      %p166 = scmp.eq.s32.totalorder %s165, 0
      %s168 = sadd.s32 %s167, 1
      %s169 = scalar_select %p166, %s167, %s168
      %p172 = pneg %p166
      %p173 = scmp.eq.s32.totalorder %s13, 1
      %p174 = por %p172, %p173
      %p175 = scmp.ne.s32.totalorder %s167, %s170
      %p176 = scmp.eq.s32.totalorder %s13, 0
      %p177 = por %p175, %p176
      %p178 = scmp.ne.s32.totalorder %s167, %s170
      %p179 = scmp.eq.s32.totalorder %s18, 1
      %p180 = por %p178, %p179
      %p181 = scmp.ne.s32.totalorder %s170, %s171
      %p182 = scmp.eq.s32.totalorder %s18, 0
      %p183 = por %p181, %p182
      %p184 = scmp.ne.s32.totalorder %s170, %s171
      %p185 = scmp.eq.s32.totalorder %s19, 1
      %p186 = por %p184, %p185
      %p188 = scmp.ne.s32.totalorder %s171, %s187
      %p189 = scmp.eq.s32.totalorder %s19, 0
      %p190 = por %p188, %p189
      %s191 = ssub.s32 %s20, %s32
      %p192 = scmp.eq.s32.totalorder %s191, 0
      %s194 = sadd.s32 %s193, 1
      %s195 = scalar_select %p192, %s193, %s194
      %p198 = pneg %p192
      %p199 = scmp.eq.s32.totalorder %s13, 1
      %p200 = por %p198, %p199
      %p201 = scmp.ne.s32.totalorder %s193, %s196
      %p202 = scmp.eq.s32.totalorder %s13, 0
      %p203 = por %p201, %p202
      %p204 = scmp.ne.s32.totalorder %s193, %s196
      %p205 = scmp.eq.s32.totalorder %s18, 1
      %p206 = por %p204, %p205
      %p207 = scmp.ne.s32.totalorder %s196, %s197
      %p208 = scmp.eq.s32.totalorder %s18, 0
      %p209 = por %p207, %p208
      %p210 = scmp.ne.s32.totalorder %s196, %s197
      %p211 = scmp.eq.s32.totalorder %s19, 1
      %p212 = por %p210, %p211
      %p214 = scmp.ne.s32.totalorder %s197, %s213
      %p215 = scmp.eq.s32.totalorder %s19, 0
      %p216 = por %p214, %p215
      %p217 = scmp.le.s32.totalorder 1, %s13
      %p218 = scmp.lt.s32.totalorder %s13, 3
      %p219 = pnand %p217, %p218
      %p220 = pneg %p219
      // Predicated region
      $region9: #{net4ht_forward.9} parent=5 // pred_check
        _
      $region10: #{net4ht_forward.9} parent=5 // pred_check_branch
        %222 = sbr.rel (%p219) target = $region12
      $region11: #{net4ht_forward.9} parent=5 // pred_region
        %s223 = ssub.s32 %s13, 1
        // Predicated region
        $region13: #{net4ht_forward.9} parent=11 // pred_check
          %p224 = pneg %p51
        $region14: #{net4ht_forward.9} parent=11 // pred_check_branch
          %226 = sbr.rel (%p224) target = $region16
        $region15: #{net4ht_forward.9} parent=11 // pred_region
          %s227 = smul.u32 6, %s23
          %p228 = scmp.lt.s32.totalorder %s227, 5
          %s229 = scalar_select %p228, %s227, 5
          %s230 = smul.addr %s229, 2
          %s231 = scalar_lea.vmem %s0, %s230
          %s232 = smul.u32 6, %s23
        $region16: #{net4ht_forward.9} parent=11 // pred_fallthru
          _
      $region12: #{net4ht_forward.9} parent=5 // pred_fallthru
        _
      %p233 = scmp.lt.s32.totalorder %s13, 2
      // Predicated region
      $region17: #{net4ht_forward.9} parent=5 // pred_check
        %p234 = pneg %p233
      $region18: #{net4ht_forward.9} parent=5 // pred_check_branch
        %236 = sbr.rel (%p234) target = $region20
      $region19: #{net4ht_forward.9} parent=5 // pred_region
        // Predicated region
        $region21: #{net4ht_forward.9} parent=19 // pred_check
          %p237 = pneg %p73
        $region22: #{net4ht_forward.9} parent=19 // pred_check_branch
          %239 = sbr.rel (%p237) target = $region24
        $region23: #{net4ht_forward.9} parent=19 // pred_region
          %s240 = sand.u32 %s63, 1
          %s241 = sand.u32 %s63, 1
          %s242 = smul.addr %s241, 3072
          %s243 = scalar_lea.vmem [#allocation2], %s242
          %s244 = smul.u32 96, %s21
          %s245 = smul.u32 4, %s20
          %s246 = smul.addr %s244, 8
          %s247 = sadd.s32 %s245, %s246
          %s248 = smul.addr %s247, 8
          %s249 = scalar_lea.vmem %s1, %s248
          // Predicated region
          $region25: #{net4ht_forward.9} parent=23 // pred_check
            _
          $region26: #{net4ht_forward.9} parent=23 // pred_check_branch
            %251 = sbr.rel (0) target = $region28
          $region27: #{net4ht_forward.9} parent=23 // pred_region
            // Predicated region
            $region29: #{net4ht_forward.9} parent=27 // pred_check
              _
            $region30: #{net4ht_forward.9} parent=27 // pred_check_branch
              %253 = sbr.rel (0) target = $region32
            $region31: #{net4ht_forward.9} parent=27 // pred_region
              loop: start=0, step=1, limit=1
              $region33: #{net4ht_forward.9} parent=31 // loop_pre_header
                _
              $region34: #{net4ht_forward.9} parent=31 // loop_header
                %s255 = sphi 0, %s259
                %p256 = scmp.ge.s32.totalorder %s255, 1
                %s260 = sphi %s249, %s249
                %s261 = sphi %s243, %s243
              $region35: #{net4ht_forward.9} parent=31 // loop_header_branch
                %258 = sbr.rel (%p256) target = $region39
              $region36: #{net4ht_forward.9} parent=31 // loop_body
                %v262 = vld [vmem:[%s260] sm:$0xff]
                %263 = vst [vmem:[%s261] sm:$0xff] %v262
                %v264 = vld [vmem:[%s260 + $0x8] sm:$0xff]
                %265 = vst [vmem:[%s261 + $0x8] sm:$0xff] %v264
                %v266 = vld [vmem:[%s260 + $0x10] sm:$0xff]
                %267 = vst [vmem:[%s261 + $0x10] sm:$0xff] %v266
                %v268 = vld [vmem:[%s260 + $0x18] sm:$0xff]
                %269 = vst [vmem:[%s261 + $0x18] sm:$0xff] %v268
                %v270 = vld [vmem:[%s260 + $0x40] sm:$0xff]
                %271 = vst [vmem:[%s261 + $0x20] sm:$0xff] %v270
                %v272 = vld [vmem:[%s260 + $0x48] sm:$0xff]
                %273 = vst [vmem:[%s261 + $0x28] sm:$0xff] %v272
                %v274 = vld [vmem:[%s260 + $0x50] sm:$0xff]
                %275 = vst [vmem:[%s261 + $0x30] sm:$0xff] %v274
                %v276 = vld [vmem:[%s260 + $0x58] sm:$0xff]
                %277 = vst [vmem:[%s261 + $0x38] sm:$0xff] %v276
                %v278 = vld [vmem:[%s260 + $0x80] sm:$0xff]
                %279 = vst [vmem:[%s261 + $0x40] sm:$0xff] %v278
                %v280 = vld [vmem:[%s260 + $0x88] sm:$0xff]
                %281 = vst [vmem:[%s261 + $0x48] sm:$0xff] %v280
                %v282 = vld [vmem:[%s260 + $0x90] sm:$0xff]
                %283 = vst [vmem:[%s261 + $0x50] sm:$0xff] %v282
                %v284 = vld [vmem:[%s260 + $0x98] sm:$0xff]
                %285 = vst [vmem:[%s261 + $0x58] sm:$0xff] %v284
                %v286 = vld [vmem:[%s260 + $0xc0] sm:$0xff]
                %287 = vst [vmem:[%s261 + $0x60] sm:$0xff] %v286
                %v288 = vld [vmem:[%s260 + $0xc8] sm:$0xff]
                %289 = vst [vmem:[%s261 + $0x68] sm:$0xff] %v288
                %v290 = vld [vmem:[%s260 + $0xd0] sm:$0xff]
                %291 = vst [vmem:[%s261 + $0x70] sm:$0xff] %v290
                %v292 = vld [vmem:[%s260 + $0xd8] sm:$0xff]
                %293 = vst [vmem:[%s261 + $0x78] sm:$0xff] %v292
                %v294 = vld [vmem:[%s260 + $0x100] sm:$0xff]
                %295 = vst [vmem:[%s261 + $0x80] sm:$0xff] %v294
                %v296 = vld [vmem:[%s260 + $0x108] sm:$0xff]
                %297 = vst [vmem:[%s261 + $0x88] sm:$0xff] %v296
                %v298 = vld [vmem:[%s260 + $0x110] sm:$0xff]
                %299 = vst [vmem:[%s261 + $0x90] sm:$0xff] %v298
                %v300 = vld [vmem:[%s260 + $0x118] sm:$0xff]
                %301 = vst [vmem:[%s261 + $0x98] sm:$0xff] %v300
                %v302 = vld [vmem:[%s260 + $0x140] sm:$0xff]
                %303 = vst [vmem:[%s261 + $0xa0] sm:$0xff] %v302
                %v304 = vld [vmem:[%s260 + $0x148] sm:$0xff]
                %305 = vst [vmem:[%s261 + $0xa8] sm:$0xff] %v304
                %v306 = vld [vmem:[%s260 + $0x150] sm:$0xff]
                %307 = vst [vmem:[%s261 + $0xb0] sm:$0xff] %v306
                %v308 = vld [vmem:[%s260 + $0x158] sm:$0xff]
                %309 = vst [vmem:[%s261 + $0xb8] sm:$0xff] %v308
                %v310 = vld [vmem:[%s260 + $0x180] sm:$0xff]
                %311 = vst [vmem:[%s261 + $0xc0] sm:$0xff] %v310
                %v312 = vld [vmem:[%s260 + $0x188] sm:$0xff]
                %313 = vst [vmem:[%s261 + $0xc8] sm:$0xff] %v312
                %v314 = vld [vmem:[%s260 + $0x190] sm:$0xff]
                %315 = vst [vmem:[%s261 + $0xd0] sm:$0xff] %v314
                %v316 = vld [vmem:[%s260 + $0x198] sm:$0xff]
                %317 = vst [vmem:[%s261 + $0xd8] sm:$0xff] %v316
                %v318 = vld [vmem:[%s260 + $0x1c0] sm:$0xff]
                %319 = vst [vmem:[%s261 + $0xe0] sm:$0xff] %v318
                %v320 = vld [vmem:[%s260 + $0x1c8] sm:$0xff]
                %321 = vst [vmem:[%s261 + $0xe8] sm:$0xff] %v320
                %v322 = vld [vmem:[%s260 + $0x1d0] sm:$0xff]
                %323 = vst [vmem:[%s261 + $0xf0] sm:$0xff] %v322
                %v324 = vld [vmem:[%s260 + $0x1d8] sm:$0xff]
                %325 = vst [vmem:[%s261 + $0xf8] sm:$0xff] %v324
                %v326 = vld [vmem:[%s260 + $0x200] sm:$0xff]
                %327 = vst [vmem:[%s261 + $0x100] sm:$0xff] %v326
                %v328 = vld [vmem:[%s260 + $0x208] sm:$0xff]
                %329 = vst [vmem:[%s261 + $0x108] sm:$0xff] %v328
                %v330 = vld [vmem:[%s260 + $0x210] sm:$0xff]
                %331 = vst [vmem:[%s261 + $0x110] sm:$0xff] %v330
                %v332 = vld [vmem:[%s260 + $0x218] sm:$0xff]
                %333 = vst [vmem:[%s261 + $0x118] sm:$0xff] %v332
                %v334 = vld [vmem:[%s260 + $0x240] sm:$0xff]
                %335 = vst [vmem:[%s261 + $0x120] sm:$0xff] %v334
                %v336 = vld [vmem:[%s260 + $0x248] sm:$0xff]
                %337 = vst [vmem:[%s261 + $0x128] sm:$0xff] %v336
                %v338 = vld [vmem:[%s260 + $0x250] sm:$0xff]
                %339 = vst [vmem:[%s261 + $0x130] sm:$0xff] %v338
                %v340 = vld [vmem:[%s260 + $0x258] sm:$0xff]
                %341 = vst [vmem:[%s261 + $0x138] sm:$0xff] %v340
                %v342 = vld [vmem:[%s260 + $0x280] sm:$0xff]
                %343 = vst [vmem:[%s261 + $0x140] sm:$0xff] %v342
                %v344 = vld [vmem:[%s260 + $0x288] sm:$0xff]
                %345 = vst [vmem:[%s261 + $0x148] sm:$0xff] %v344
                %v346 = vld [vmem:[%s260 + $0x290] sm:$0xff]
                %347 = vst [vmem:[%s261 + $0x150] sm:$0xff] %v346
                %v348 = vld [vmem:[%s260 + $0x298] sm:$0xff]
                %349 = vst [vmem:[%s261 + $0x158] sm:$0xff] %v348
                %v350 = vld [vmem:[%s260 + $0x2c0] sm:$0xff]
                %351 = vst [vmem:[%s261 + $0x160] sm:$0xff] %v350
                %v352 = vld [vmem:[%s260 + $0x2c8] sm:$0xff]
                %353 = vst [vmem:[%s261 + $0x168] sm:$0xff] %v352
                %v354 = vld [vmem:[%s260 + $0x2d0] sm:$0xff]
                %355 = vst [vmem:[%s261 + $0x170] sm:$0xff] %v354
                %v356 = vld [vmem:[%s260 + $0x2d8] sm:$0xff]
                %357 = vst [vmem:[%s261 + $0x178] sm:$0xff] %v356
                %v358 = vld [vmem:[%s260 + $0x300] sm:$0xff]
                %359 = vst [vmem:[%s261 + $0x180] sm:$0xff] %v358
                %v360 = vld [vmem:[%s260 + $0x308] sm:$0xff]
                %361 = vst [vmem:[%s261 + $0x188] sm:$0xff] %v360
                %v362 = vld [vmem:[%s260 + $0x310] sm:$0xff]
                %363 = vst [vmem:[%s261 + $0x190] sm:$0xff] %v362
                %v364 = vld [vmem:[%s260 + $0x318] sm:$0xff]
                %365 = vst [vmem:[%s261 + $0x198] sm:$0xff] %v364
                %v366 = vld [vmem:[%s260 + $0x340] sm:$0xff]
                %367 = vst [vmem:[%s261 + $0x1a0] sm:$0xff] %v366
                %v368 = vld [vmem:[%s260 + $0x348] sm:$0xff]
                %369 = vst [vmem:[%s261 + $0x1a8] sm:$0xff] %v368
                %v370 = vld [vmem:[%s260 + $0x350] sm:$0xff]
                %371 = vst [vmem:[%s261 + $0x1b0] sm:$0xff] %v370
                %v372 = vld [vmem:[%s260 + $0x358] sm:$0xff]
                %373 = vst [vmem:[%s261 + $0x1b8] sm:$0xff] %v372
                %v374 = vld [vmem:[%s260 + $0x380] sm:$0xff]
                %375 = vst [vmem:[%s261 + $0x1c0] sm:$0xff] %v374
                %v376 = vld [vmem:[%s260 + $0x388] sm:$0xff]
                %377 = vst [vmem:[%s261 + $0x1c8] sm:$0xff] %v376
                %v378 = vld [vmem:[%s260 + $0x390] sm:$0xff]
                %379 = vst [vmem:[%s261 + $0x1d0] sm:$0xff] %v378
                %v380 = vld [vmem:[%s260 + $0x398] sm:$0xff]
                %381 = vst [vmem:[%s261 + $0x1d8] sm:$0xff] %v380
                %v382 = vld [vmem:[%s260 + $0x3c0] sm:$0xff]
                %383 = vst [vmem:[%s261 + $0x1e0] sm:$0xff] %v382
                %v384 = vld [vmem:[%s260 + $0x3c8] sm:$0xff]
                %385 = vst [vmem:[%s261 + $0x1e8] sm:$0xff] %v384
                %v386 = vld [vmem:[%s260 + $0x3d0] sm:$0xff]
                %387 = vst [vmem:[%s261 + $0x1f0] sm:$0xff] %v386
                %v388 = vld [vmem:[%s260 + $0x3d8] sm:$0xff]
                %389 = vst [vmem:[%s261 + $0x1f8] sm:$0xff] %v388
                %v390 = vld [vmem:[%s260 + $0x400] sm:$0xff]
                %391 = vst [vmem:[%s261 + $0x200] sm:$0xff] %v390
                %v392 = vld [vmem:[%s260 + $0x408] sm:$0xff]
                %393 = vst [vmem:[%s261 + $0x208] sm:$0xff] %v392
                %v394 = vld [vmem:[%s260 + $0x410] sm:$0xff]
                %395 = vst [vmem:[%s261 + $0x210] sm:$0xff] %v394
                %v396 = vld [vmem:[%s260 + $0x418] sm:$0xff]
                %397 = vst [vmem:[%s261 + $0x218] sm:$0xff] %v396
                %v398 = vld [vmem:[%s260 + $0x440] sm:$0xff]
                %399 = vst [vmem:[%s261 + $0x220] sm:$0xff] %v398
                %v400 = vld [vmem:[%s260 + $0x448] sm:$0xff]
                %401 = vst [vmem:[%s261 + $0x228] sm:$0xff] %v400
                %v402 = vld [vmem:[%s260 + $0x450] sm:$0xff]
                %403 = vst [vmem:[%s261 + $0x230] sm:$0xff] %v402
                %v404 = vld [vmem:[%s260 + $0x458] sm:$0xff]
                %405 = vst [vmem:[%s261 + $0x238] sm:$0xff] %v404
                %v406 = vld [vmem:[%s260 + $0x480] sm:$0xff]
                %407 = vst [vmem:[%s261 + $0x240] sm:$0xff] %v406
                %v408 = vld [vmem:[%s260 + $0x488] sm:$0xff]
                %409 = vst [vmem:[%s261 + $0x248] sm:$0xff] %v408
                %v410 = vld [vmem:[%s260 + $0x490] sm:$0xff]
                %411 = vst [vmem:[%s261 + $0x250] sm:$0xff] %v410
                %v412 = vld [vmem:[%s260 + $0x498] sm:$0xff]
                %413 = vst [vmem:[%s261 + $0x258] sm:$0xff] %v412
                %v414 = vld [vmem:[%s260 + $0x4c0] sm:$0xff]
                %415 = vst [vmem:[%s261 + $0x260] sm:$0xff] %v414
                %v416 = vld [vmem:[%s260 + $0x4c8] sm:$0xff]
                %417 = vst [vmem:[%s261 + $0x268] sm:$0xff] %v416
                %v418 = vld [vmem:[%s260 + $0x4d0] sm:$0xff]
                %419 = vst [vmem:[%s261 + $0x270] sm:$0xff] %v418
                %v420 = vld [vmem:[%s260 + $0x4d8] sm:$0xff]
                %421 = vst [vmem:[%s261 + $0x278] sm:$0xff] %v420
                %v422 = vld [vmem:[%s260 + $0x500] sm:$0xff]
                %423 = vst [vmem:[%s261 + $0x280] sm:$0xff] %v422
                %v424 = vld [vmem:[%s260 + $0x508] sm:$0xff]
                %425 = vst [vmem:[%s261 + $0x288] sm:$0xff] %v424
                %v426 = vld [vmem:[%s260 + $0x510] sm:$0xff]
                %427 = vst [vmem:[%s261 + $0x290] sm:$0xff] %v426
                %v428 = vld [vmem:[%s260 + $0x518] sm:$0xff]
                %429 = vst [vmem:[%s261 + $0x298] sm:$0xff] %v428
                %v430 = vld [vmem:[%s260 + $0x540] sm:$0xff]
                %431 = vst [vmem:[%s261 + $0x2a0] sm:$0xff] %v430
                %v432 = vld [vmem:[%s260 + $0x548] sm:$0xff]
                %433 = vst [vmem:[%s261 + $0x2a8] sm:$0xff] %v432
                %v434 = vld [vmem:[%s260 + $0x550] sm:$0xff]
                %435 = vst [vmem:[%s261 + $0x2b0] sm:$0xff] %v434
                %v436 = vld [vmem:[%s260 + $0x558] sm:$0xff]
                %437 = vst [vmem:[%s261 + $0x2b8] sm:$0xff] %v436
                %v438 = vld [vmem:[%s260 + $0x580] sm:$0xff]
                %439 = vst [vmem:[%s261 + $0x2c0] sm:$0xff] %v438
                %v440 = vld [vmem:[%s260 + $0x588] sm:$0xff]
                %441 = vst [vmem:[%s261 + $0x2c8] sm:$0xff] %v440
                %v442 = vld [vmem:[%s260 + $0x590] sm:$0xff]
                %443 = vst [vmem:[%s261 + $0x2d0] sm:$0xff] %v442
                %v444 = vld [vmem:[%s260 + $0x598] sm:$0xff]
                %445 = vst [vmem:[%s261 + $0x2d8] sm:$0xff] %v444
                %v446 = vld [vmem:[%s260 + $0x5c0] sm:$0xff]
                %447 = vst [vmem:[%s261 + $0x2e0] sm:$0xff] %v446
                %v448 = vld [vmem:[%s260 + $0x5c8] sm:$0xff]
                %449 = vst [vmem:[%s261 + $0x2e8] sm:$0xff] %v448
                %v450 = vld [vmem:[%s260 + $0x5d0] sm:$0xff]
                %451 = vst [vmem:[%s261 + $0x2f0] sm:$0xff] %v450
                %v452 = vld [vmem:[%s260 + $0x5d8] sm:$0xff]
                %453 = vst [vmem:[%s261 + $0x2f8] sm:$0xff] %v452
                %v454 = vld [vmem:[%s260 + $0x600] sm:$0xff]
                %455 = vst [vmem:[%s261 + $0x300] sm:$0xff] %v454
                %v456 = vld [vmem:[%s260 + $0x608] sm:$0xff]
                %457 = vst [vmem:[%s261 + $0x308] sm:$0xff] %v456
                %v458 = vld [vmem:[%s260 + $0x610] sm:$0xff]
                %459 = vst [vmem:[%s261 + $0x310] sm:$0xff] %v458
                %v460 = vld [vmem:[%s260 + $0x618] sm:$0xff]
                %461 = vst [vmem:[%s261 + $0x318] sm:$0xff] %v460
                %v462 = vld [vmem:[%s260 + $0x640] sm:$0xff]
                %463 = vst [vmem:[%s261 + $0x320] sm:$0xff] %v462
                %v464 = vld [vmem:[%s260 + $0x648] sm:$0xff]
                %465 = vst [vmem:[%s261 + $0x328] sm:$0xff] %v464
                %v466 = vld [vmem:[%s260 + $0x650] sm:$0xff]
                %467 = vst [vmem:[%s261 + $0x330] sm:$0xff] %v466
                %v468 = vld [vmem:[%s260 + $0x658] sm:$0xff]
                %469 = vst [vmem:[%s261 + $0x338] sm:$0xff] %v468
                %v470 = vld [vmem:[%s260 + $0x680] sm:$0xff]
                %471 = vst [vmem:[%s261 + $0x340] sm:$0xff] %v470
                %v472 = vld [vmem:[%s260 + $0x688] sm:$0xff]
                %473 = vst [vmem:[%s261 + $0x348] sm:$0xff] %v472
                %v474 = vld [vmem:[%s260 + $0x690] sm:$0xff]
                %475 = vst [vmem:[%s261 + $0x350] sm:$0xff] %v474
                %v476 = vld [vmem:[%s260 + $0x698] sm:$0xff]
                %477 = vst [vmem:[%s261 + $0x358] sm:$0xff] %v476
                %v478 = vld [vmem:[%s260 + $0x6c0] sm:$0xff]
                %479 = vst [vmem:[%s261 + $0x360] sm:$0xff] %v478
                %v480 = vld [vmem:[%s260 + $0x6c8] sm:$0xff]
                %481 = vst [vmem:[%s261 + $0x368] sm:$0xff] %v480
                %v482 = vld [vmem:[%s260 + $0x6d0] sm:$0xff]
                %483 = vst [vmem:[%s261 + $0x370] sm:$0xff] %v482
                %v484 = vld [vmem:[%s260 + $0x6d8] sm:$0xff]
                %485 = vst [vmem:[%s261 + $0x378] sm:$0xff] %v484
                %v486 = vld [vmem:[%s260 + $0x700] sm:$0xff]
                %487 = vst [vmem:[%s261 + $0x380] sm:$0xff] %v486
                %v488 = vld [vmem:[%s260 + $0x708] sm:$0xff]
                %489 = vst [vmem:[%s261 + $0x388] sm:$0xff] %v488
                %v490 = vld [vmem:[%s260 + $0x710] sm:$0xff]
                %491 = vst [vmem:[%s261 + $0x390] sm:$0xff] %v490
                %v492 = vld [vmem:[%s260 + $0x718] sm:$0xff]
                %493 = vst [vmem:[%s261 + $0x398] sm:$0xff] %v492
                %v494 = vld [vmem:[%s260 + $0x740] sm:$0xff]
                %495 = vst [vmem:[%s261 + $0x3a0] sm:$0xff] %v494
                %v496 = vld [vmem:[%s260 + $0x748] sm:$0xff]
                %497 = vst [vmem:[%s261 + $0x3a8] sm:$0xff] %v496
                %v498 = vld [vmem:[%s260 + $0x750] sm:$0xff]
                %499 = vst [vmem:[%s261 + $0x3b0] sm:$0xff] %v498
                %v500 = vld [vmem:[%s260 + $0x758] sm:$0xff]
                %501 = vst [vmem:[%s261 + $0x3b8] sm:$0xff] %v500
                %v502 = vld [vmem:[%s260 + $0x780] sm:$0xff]
                %503 = vst [vmem:[%s261 + $0x3c0] sm:$0xff] %v502
                %v504 = vld [vmem:[%s260 + $0x788] sm:$0xff]
                %505 = vst [vmem:[%s261 + $0x3c8] sm:$0xff] %v504
                %v506 = vld [vmem:[%s260 + $0x790] sm:$0xff]
                %507 = vst [vmem:[%s261 + $0x3d0] sm:$0xff] %v506
                %v508 = vld [vmem:[%s260 + $0x798] sm:$0xff]
                %509 = vst [vmem:[%s261 + $0x3d8] sm:$0xff] %v508
                %v510 = vld [vmem:[%s260 + $0x7c0] sm:$0xff]
                %511 = vst [vmem:[%s261 + $0x3e0] sm:$0xff] %v510
                %v512 = vld [vmem:[%s260 + $0x7c8] sm:$0xff]
                %513 = vst [vmem:[%s261 + $0x3e8] sm:$0xff] %v512
                %v514 = vld [vmem:[%s260 + $0x7d0] sm:$0xff]
                %515 = vst [vmem:[%s261 + $0x3f0] sm:$0xff] %v514
                %v516 = vld [vmem:[%s260 + $0x7d8] sm:$0xff]
                %517 = vst [vmem:[%s261 + $0x3f8] sm:$0xff] %v516
                %v518 = vld [vmem:[%s260 + $0x800] sm:$0xff]
                %519 = vst [vmem:[%s261 + $0x400] sm:$0xff] %v518
                %v520 = vld [vmem:[%s260 + $0x808] sm:$0xff]
                %521 = vst [vmem:[%s261 + $0x408] sm:$0xff] %v520
                %v522 = vld [vmem:[%s260 + $0x810] sm:$0xff]
                %523 = vst [vmem:[%s261 + $0x410] sm:$0xff] %v522
                %v524 = vld [vmem:[%s260 + $0x818] sm:$0xff]
                %525 = vst [vmem:[%s261 + $0x418] sm:$0xff] %v524
                %v526 = vld [vmem:[%s260 + $0x840] sm:$0xff]
                %527 = vst [vmem:[%s261 + $0x420] sm:$0xff] %v526
                %v528 = vld [vmem:[%s260 + $0x848] sm:$0xff]
                %529 = vst [vmem:[%s261 + $0x428] sm:$0xff] %v528
                %v530 = vld [vmem:[%s260 + $0x850] sm:$0xff]
                %531 = vst [vmem:[%s261 + $0x430] sm:$0xff] %v530
                %v532 = vld [vmem:[%s260 + $0x858] sm:$0xff]
                %533 = vst [vmem:[%s261 + $0x438] sm:$0xff] %v532
                %v534 = vld [vmem:[%s260 + $0x880] sm:$0xff]
                %535 = vst [vmem:[%s261 + $0x440] sm:$0xff] %v534
                %v536 = vld [vmem:[%s260 + $0x888] sm:$0xff]
                %537 = vst [vmem:[%s261 + $0x448] sm:$0xff] %v536
                %v538 = vld [vmem:[%s260 + $0x890] sm:$0xff]
                %539 = vst [vmem:[%s261 + $0x450] sm:$0xff] %v538
                %v540 = vld [vmem:[%s260 + $0x898] sm:$0xff]
                %541 = vst [vmem:[%s261 + $0x458] sm:$0xff] %v540
                %v542 = vld [vmem:[%s260 + $0x8c0] sm:$0xff]
                %543 = vst [vmem:[%s261 + $0x460] sm:$0xff] %v542
                %v544 = vld [vmem:[%s260 + $0x8c8] sm:$0xff]
                %545 = vst [vmem:[%s261 + $0x468] sm:$0xff] %v544
                %v546 = vld [vmem:[%s260 + $0x8d0] sm:$0xff]
                %547 = vst [vmem:[%s261 + $0x470] sm:$0xff] %v546
                %v548 = vld [vmem:[%s260 + $0x8d8] sm:$0xff]
                %549 = vst [vmem:[%s261 + $0x478] sm:$0xff] %v548
                %v550 = vld [vmem:[%s260 + $0x900] sm:$0xff]
                %551 = vst [vmem:[%s261 + $0x480] sm:$0xff] %v550
                %v552 = vld [vmem:[%s260 + $0x908] sm:$0xff]
                %553 = vst [vmem:[%s261 + $0x488] sm:$0xff] %v552
                %v554 = vld [vmem:[%s260 + $0x910] sm:$0xff]
                %555 = vst [vmem:[%s261 + $0x490] sm:$0xff] %v554
                %v556 = vld [vmem:[%s260 + $0x918] sm:$0xff]
                %557 = vst [vmem:[%s261 + $0x498] sm:$0xff] %v556
                %v558 = vld [vmem:[%s260 + $0x940] sm:$0xff]
                %559 = vst [vmem:[%s261 + $0x4a0] sm:$0xff] %v558
                %v560 = vld [vmem:[%s260 + $0x948] sm:$0xff]
                %561 = vst [vmem:[%s261 + $0x4a8] sm:$0xff] %v560
                %v562 = vld [vmem:[%s260 + $0x950] sm:$0xff]
                %563 = vst [vmem:[%s261 + $0x4b0] sm:$0xff] %v562
                %v564 = vld [vmem:[%s260 + $0x958] sm:$0xff]
                %565 = vst [vmem:[%s261 + $0x4b8] sm:$0xff] %v564
                %v566 = vld [vmem:[%s260 + $0x980] sm:$0xff]
                %567 = vst [vmem:[%s261 + $0x4c0] sm:$0xff] %v566
                %v568 = vld [vmem:[%s260 + $0x988] sm:$0xff]
                %569 = vst [vmem:[%s261 + $0x4c8] sm:$0xff] %v568
                %v570 = vld [vmem:[%s260 + $0x990] sm:$0xff]
                %571 = vst [vmem:[%s261 + $0x4d0] sm:$0xff] %v570
                %v572 = vld [vmem:[%s260 + $0x998] sm:$0xff]
                %573 = vst [vmem:[%s261 + $0x4d8] sm:$0xff] %v572
                %v574 = vld [vmem:[%s260 + $0x9c0] sm:$0xff]
                %575 = vst [vmem:[%s261 + $0x4e0] sm:$0xff] %v574
                %v576 = vld [vmem:[%s260 + $0x9c8] sm:$0xff]
                %577 = vst [vmem:[%s261 + $0x4e8] sm:$0xff] %v576
                %v578 = vld [vmem:[%s260 + $0x9d0] sm:$0xff]
                %579 = vst [vmem:[%s261 + $0x4f0] sm:$0xff] %v578
                %v580 = vld [vmem:[%s260 + $0x9d8] sm:$0xff]
                %581 = vst [vmem:[%s261 + $0x4f8] sm:$0xff] %v580
                %v582 = vld [vmem:[%s260 + $0xa00] sm:$0xff]
                %583 = vst [vmem:[%s261 + $0x500] sm:$0xff] %v582
                %v584 = vld [vmem:[%s260 + $0xa08] sm:$0xff]
                %585 = vst [vmem:[%s261 + $0x508] sm:$0xff] %v584
                %v586 = vld [vmem:[%s260 + $0xa10] sm:$0xff]
                %587 = vst [vmem:[%s261 + $0x510] sm:$0xff] %v586
                %v588 = vld [vmem:[%s260 + $0xa18] sm:$0xff]
                %589 = vst [vmem:[%s261 + $0x518] sm:$0xff] %v588
                %v590 = vld [vmem:[%s260 + $0xa40] sm:$0xff]
                %591 = vst [vmem:[%s261 + $0x520] sm:$0xff] %v590
                %v592 = vld [vmem:[%s260 + $0xa48] sm:$0xff]
                %593 = vst [vmem:[%s261 + $0x528] sm:$0xff] %v592
                %v594 = vld [vmem:[%s260 + $0xa50] sm:$0xff]
                %595 = vst [vmem:[%s261 + $0x530] sm:$0xff] %v594
                %v596 = vld [vmem:[%s260 + $0xa58] sm:$0xff]
                %597 = vst [vmem:[%s261 + $0x538] sm:$0xff] %v596
                %v598 = vld [vmem:[%s260 + $0xa80] sm:$0xff]
                %599 = vst [vmem:[%s261 + $0x540] sm:$0xff] %v598
                %v600 = vld [vmem:[%s260 + $0xa88] sm:$0xff]
                %601 = vst [vmem:[%s261 + $0x548] sm:$0xff] %v600
                %v602 = vld [vmem:[%s260 + $0xa90] sm:$0xff]
                %603 = vst [vmem:[%s261 + $0x550] sm:$0xff] %v602
                %v604 = vld [vmem:[%s260 + $0xa98] sm:$0xff]
                %605 = vst [vmem:[%s261 + $0x558] sm:$0xff] %v604
                %v606 = vld [vmem:[%s260 + $0xac0] sm:$0xff]
                %607 = vst [vmem:[%s261 + $0x560] sm:$0xff] %v606
                %v608 = vld [vmem:[%s260 + $0xac8] sm:$0xff]
                %609 = vst [vmem:[%s261 + $0x568] sm:$0xff] %v608
                %v610 = vld [vmem:[%s260 + $0xad0] sm:$0xff]
                %611 = vst [vmem:[%s261 + $0x570] sm:$0xff] %v610
                %v612 = vld [vmem:[%s260 + $0xad8] sm:$0xff]
                %613 = vst [vmem:[%s261 + $0x578] sm:$0xff] %v612
                %v614 = vld [vmem:[%s260 + $0xb00] sm:$0xff]
                %615 = vst [vmem:[%s261 + $0x580] sm:$0xff] %v614
                %v616 = vld [vmem:[%s260 + $0xb08] sm:$0xff]
                %617 = vst [vmem:[%s261 + $0x588] sm:$0xff] %v616
                %v618 = vld [vmem:[%s260 + $0xb10] sm:$0xff]
                %619 = vst [vmem:[%s261 + $0x590] sm:$0xff] %v618
                %v620 = vld [vmem:[%s260 + $0xb18] sm:$0xff]
                %621 = vst [vmem:[%s261 + $0x598] sm:$0xff] %v620
                %v622 = vld [vmem:[%s260 + $0xb40] sm:$0xff]
                %623 = vst [vmem:[%s261 + $0x5a0] sm:$0xff] %v622
                %v624 = vld [vmem:[%s260 + $0xb48] sm:$0xff]
                %625 = vst [vmem:[%s261 + $0x5a8] sm:$0xff] %v624
                %v626 = vld [vmem:[%s260 + $0xb50] sm:$0xff]
                %627 = vst [vmem:[%s261 + $0x5b0] sm:$0xff] %v626
                %v628 = vld [vmem:[%s260 + $0xb58] sm:$0xff]
                %629 = vst [vmem:[%s261 + $0x5b8] sm:$0xff] %v628
                %v630 = vld [vmem:[%s260 + $0xb80] sm:$0xff]
                %631 = vst [vmem:[%s261 + $0x5c0] sm:$0xff] %v630
                %v632 = vld [vmem:[%s260 + $0xb88] sm:$0xff]
                %633 = vst [vmem:[%s261 + $0x5c8] sm:$0xff] %v632
                %v634 = vld [vmem:[%s260 + $0xb90] sm:$0xff]
                %635 = vst [vmem:[%s261 + $0x5d0] sm:$0xff] %v634
                %v636 = vld [vmem:[%s260 + $0xb98] sm:$0xff]
                %637 = vst [vmem:[%s261 + $0x5d8] sm:$0xff] %v636
                %v638 = vld [vmem:[%s260 + $0xbc0] sm:$0xff]
                %639 = vst [vmem:[%s261 + $0x5e0] sm:$0xff] %v638
                %v640 = vld [vmem:[%s260 + $0xbc8] sm:$0xff]
                %641 = vst [vmem:[%s261 + $0x5e8] sm:$0xff] %v640
                %v642 = vld [vmem:[%s260 + $0xbd0] sm:$0xff]
                %643 = vst [vmem:[%s261 + $0x5f0] sm:$0xff] %v642
                %v644 = vld [vmem:[%s260 + $0xbd8] sm:$0xff]
                %645 = vst [vmem:[%s261 + $0x5f8] sm:$0xff] %v644
                %v646 = vld [vmem:[%s260 + $0xc00] sm:$0xff]
                %647 = vst [vmem:[%s261 + $0x600] sm:$0xff] %v646
                %v648 = vld [vmem:[%s260 + $0xc08] sm:$0xff]
                %649 = vst [vmem:[%s261 + $0x608] sm:$0xff] %v648
                %v650 = vld [vmem:[%s260 + $0xc10] sm:$0xff]
                %651 = vst [vmem:[%s261 + $0x610] sm:$0xff] %v650
                %v652 = vld [vmem:[%s260 + $0xc18] sm:$0xff]
                %653 = vst [vmem:[%s261 + $0x618] sm:$0xff] %v652
                %v654 = vld [vmem:[%s260 + $0xc40] sm:$0xff]
                %655 = vst [vmem:[%s261 + $0x620] sm:$0xff] %v654
                %v656 = vld [vmem:[%s260 + $0xc48] sm:$0xff]
                %657 = vst [vmem:[%s261 + $0x628] sm:$0xff] %v656
                %v658 = vld [vmem:[%s260 + $0xc50] sm:$0xff]
                %659 = vst [vmem:[%s261 + $0x630] sm:$0xff] %v658
                %v660 = vld [vmem:[%s260 + $0xc58] sm:$0xff]
                %661 = vst [vmem:[%s261 + $0x638] sm:$0xff] %v660
                %v662 = vld [vmem:[%s260 + $0xc80] sm:$0xff]
                %663 = vst [vmem:[%s261 + $0x640] sm:$0xff] %v662
                %v664 = vld [vmem:[%s260 + $0xc88] sm:$0xff]
                %665 = vst [vmem:[%s261 + $0x648] sm:$0xff] %v664
                %v666 = vld [vmem:[%s260 + $0xc90] sm:$0xff]
                %667 = vst [vmem:[%s261 + $0x650] sm:$0xff] %v666
                %v668 = vld [vmem:[%s260 + $0xc98] sm:$0xff]
                %669 = vst [vmem:[%s261 + $0x658] sm:$0xff] %v668
                %v670 = vld [vmem:[%s260 + $0xcc0] sm:$0xff]
                %671 = vst [vmem:[%s261 + $0x660] sm:$0xff] %v670
                %v672 = vld [vmem:[%s260 + $0xcc8] sm:$0xff]
                %673 = vst [vmem:[%s261 + $0x668] sm:$0xff] %v672
                %v674 = vld [vmem:[%s260 + $0xcd0] sm:$0xff]
                %675 = vst [vmem:[%s261 + $0x670] sm:$0xff] %v674
                %v676 = vld [vmem:[%s260 + $0xcd8] sm:$0xff]
                %677 = vst [vmem:[%s261 + $0x678] sm:$0xff] %v676
                %v678 = vld [vmem:[%s260 + $0xd00] sm:$0xff]
                %679 = vst [vmem:[%s261 + $0x680] sm:$0xff] %v678
                %v680 = vld [vmem:[%s260 + $0xd08] sm:$0xff]
                %681 = vst [vmem:[%s261 + $0x688] sm:$0xff] %v680
                %v682 = vld [vmem:[%s260 + $0xd10] sm:$0xff]
                %683 = vst [vmem:[%s261 + $0x690] sm:$0xff] %v682
                %v684 = vld [vmem:[%s260 + $0xd18] sm:$0xff]
                %685 = vst [vmem:[%s261 + $0x698] sm:$0xff] %v684
                %v686 = vld [vmem:[%s260 + $0xd40] sm:$0xff]
                %687 = vst [vmem:[%s261 + $0x6a0] sm:$0xff] %v686
                %v688 = vld [vmem:[%s260 + $0xd48] sm:$0xff]
                %689 = vst [vmem:[%s261 + $0x6a8] sm:$0xff] %v688
                %v690 = vld [vmem:[%s260 + $0xd50] sm:$0xff]
                %691 = vst [vmem:[%s261 + $0x6b0] sm:$0xff] %v690
                %v692 = vld [vmem:[%s260 + $0xd58] sm:$0xff]
                %693 = vst [vmem:[%s261 + $0x6b8] sm:$0xff] %v692
                %v694 = vld [vmem:[%s260 + $0xd80] sm:$0xff]
                %695 = vst [vmem:[%s261 + $0x6c0] sm:$0xff] %v694
                %v696 = vld [vmem:[%s260 + $0xd88] sm:$0xff]
                %697 = vst [vmem:[%s261 + $0x6c8] sm:$0xff] %v696
                %v698 = vld [vmem:[%s260 + $0xd90] sm:$0xff]
                %699 = vst [vmem:[%s261 + $0x6d0] sm:$0xff] %v698
                %v700 = vld [vmem:[%s260 + $0xd98] sm:$0xff]
                %701 = vst [vmem:[%s261 + $0x6d8] sm:$0xff] %v700
                %v702 = vld [vmem:[%s260 + $0xdc0] sm:$0xff]
                %703 = vst [vmem:[%s261 + $0x6e0] sm:$0xff] %v702
                %v704 = vld [vmem:[%s260 + $0xdc8] sm:$0xff]
                %705 = vst [vmem:[%s261 + $0x6e8] sm:$0xff] %v704
                %v706 = vld [vmem:[%s260 + $0xdd0] sm:$0xff]
                %707 = vst [vmem:[%s261 + $0x6f0] sm:$0xff] %v706
                %v708 = vld [vmem:[%s260 + $0xdd8] sm:$0xff]
                %709 = vst [vmem:[%s261 + $0x6f8] sm:$0xff] %v708
                %v710 = vld [vmem:[%s260 + $0xe00] sm:$0xff]
                %711 = vst [vmem:[%s261 + $0x700] sm:$0xff] %v710
                %v712 = vld [vmem:[%s260 + $0xe08] sm:$0xff]
                %713 = vst [vmem:[%s261 + $0x708] sm:$0xff] %v712
                %v714 = vld [vmem:[%s260 + $0xe10] sm:$0xff]
                %715 = vst [vmem:[%s261 + $0x710] sm:$0xff] %v714
                %v716 = vld [vmem:[%s260 + $0xe18] sm:$0xff]
                %717 = vst [vmem:[%s261 + $0x718] sm:$0xff] %v716
                %v718 = vld [vmem:[%s260 + $0xe40] sm:$0xff]
                %719 = vst [vmem:[%s261 + $0x720] sm:$0xff] %v718
                %v720 = vld [vmem:[%s260 + $0xe48] sm:$0xff]
                %721 = vst [vmem:[%s261 + $0x728] sm:$0xff] %v720
                %v722 = vld [vmem:[%s260 + $0xe50] sm:$0xff]
                %723 = vst [vmem:[%s261 + $0x730] sm:$0xff] %v722
                %v724 = vld [vmem:[%s260 + $0xe58] sm:$0xff]
                %725 = vst [vmem:[%s261 + $0x738] sm:$0xff] %v724
                %v726 = vld [vmem:[%s260 + $0xe80] sm:$0xff]
                %727 = vst [vmem:[%s261 + $0x740] sm:$0xff] %v726
                %v728 = vld [vmem:[%s260 + $0xe88] sm:$0xff]
                %729 = vst [vmem:[%s261 + $0x748] sm:$0xff] %v728
                %v730 = vld [vmem:[%s260 + $0xe90] sm:$0xff]
                %731 = vst [vmem:[%s261 + $0x750] sm:$0xff] %v730
                %v732 = vld [vmem:[%s260 + $0xe98] sm:$0xff]
                %733 = vst [vmem:[%s261 + $0x758] sm:$0xff] %v732
                %v734 = vld [vmem:[%s260 + $0xec0] sm:$0xff]
                %735 = vst [vmem:[%s261 + $0x760] sm:$0xff] %v734
                %v736 = vld [vmem:[%s260 + $0xec8] sm:$0xff]
                %737 = vst [vmem:[%s261 + $0x768] sm:$0xff] %v736
                %v738 = vld [vmem:[%s260 + $0xed0] sm:$0xff]
                %739 = vst [vmem:[%s261 + $0x770] sm:$0xff] %v738
                %v740 = vld [vmem:[%s260 + $0xed8] sm:$0xff]
                %741 = vst [vmem:[%s261 + $0x778] sm:$0xff] %v740
                %v742 = vld [vmem:[%s260 + $0xf00] sm:$0xff]
                %743 = vst [vmem:[%s261 + $0x780] sm:$0xff] %v742
                %v744 = vld [vmem:[%s260 + $0xf08] sm:$0xff]
                %745 = vst [vmem:[%s261 + $0x788] sm:$0xff] %v744
                %v746 = vld [vmem:[%s260 + $0xf10] sm:$0xff]
                %747 = vst [vmem:[%s261 + $0x790] sm:$0xff] %v746
                %v748 = vld [vmem:[%s260 + $0xf18] sm:$0xff]
                %749 = vst [vmem:[%s261 + $0x798] sm:$0xff] %v748
                %v750 = vld [vmem:[%s260 + $0xf40] sm:$0xff]
                %751 = vst [vmem:[%s261 + $0x7a0] sm:$0xff] %v750
                %v752 = vld [vmem:[%s260 + $0xf48] sm:$0xff]
                %753 = vst [vmem:[%s261 + $0x7a8] sm:$0xff] %v752
                %v754 = vld [vmem:[%s260 + $0xf50] sm:$0xff]
                %755 = vst [vmem:[%s261 + $0x7b0] sm:$0xff] %v754
                %v756 = vld [vmem:[%s260 + $0xf58] sm:$0xff]
                %757 = vst [vmem:[%s261 + $0x7b8] sm:$0xff] %v756
                %v758 = vld [vmem:[%s260 + $0xf80] sm:$0xff]
                %759 = vst [vmem:[%s261 + $0x7c0] sm:$0xff] %v758
                %v760 = vld [vmem:[%s260 + $0xf88] sm:$0xff]
                %761 = vst [vmem:[%s261 + $0x7c8] sm:$0xff] %v760
                %v762 = vld [vmem:[%s260 + $0xf90] sm:$0xff]
                %763 = vst [vmem:[%s261 + $0x7d0] sm:$0xff] %v762
                %v764 = vld [vmem:[%s260 + $0xf98] sm:$0xff]
                %765 = vst [vmem:[%s261 + $0x7d8] sm:$0xff] %v764
                %v766 = vld [vmem:[%s260 + $0xfc0] sm:$0xff]
                %767 = vst [vmem:[%s261 + $0x7e0] sm:$0xff] %v766
                %v768 = vld [vmem:[%s260 + $0xfc8] sm:$0xff]
                %769 = vst [vmem:[%s261 + $0x7e8] sm:$0xff] %v768
                %v770 = vld [vmem:[%s260 + $0xfd0] sm:$0xff]
                %771 = vst [vmem:[%s261 + $0x7f0] sm:$0xff] %v770
                %v772 = vld [vmem:[%s260 + $0xfd8] sm:$0xff]
                %773 = vst [vmem:[%s261 + $0x7f8] sm:$0xff] %v772
                %v774 = vld [vmem:[%s260 + $0x1000] sm:$0xff]
                %775 = vst [vmem:[%s261 + $0x800] sm:$0xff] %v774
                %v776 = vld [vmem:[%s260 + $0x1008] sm:$0xff]
                %777 = vst [vmem:[%s261 + $0x808] sm:$0xff] %v776
                %v778 = vld [vmem:[%s260 + $0x1010] sm:$0xff]
                %779 = vst [vmem:[%s261 + $0x810] sm:$0xff] %v778
                %v780 = vld [vmem:[%s260 + $0x1018] sm:$0xff]
                %781 = vst [vmem:[%s261 + $0x818] sm:$0xff] %v780
                %v782 = vld [vmem:[%s260 + $0x1040] sm:$0xff]
                %783 = vst [vmem:[%s261 + $0x820] sm:$0xff] %v782
                %v784 = vld [vmem:[%s260 + $0x1048] sm:$0xff]
                %785 = vst [vmem:[%s261 + $0x828] sm:$0xff] %v784
                %v786 = vld [vmem:[%s260 + $0x1050] sm:$0xff]
                %787 = vst [vmem:[%s261 + $0x830] sm:$0xff] %v786
                %v788 = vld [vmem:[%s260 + $0x1058] sm:$0xff]
                %789 = vst [vmem:[%s261 + $0x838] sm:$0xff] %v788
                %v790 = vld [vmem:[%s260 + $0x1080] sm:$0xff]
                %791 = vst [vmem:[%s261 + $0x840] sm:$0xff] %v790
                %v792 = vld [vmem:[%s260 + $0x1088] sm:$0xff]
                %793 = vst [vmem:[%s261 + $0x848] sm:$0xff] %v792
                %v794 = vld [vmem:[%s260 + $0x1090] sm:$0xff]
                %795 = vst [vmem:[%s261 + $0x850] sm:$0xff] %v794
                %v796 = vld [vmem:[%s260 + $0x1098] sm:$0xff]
                %797 = vst [vmem:[%s261 + $0x858] sm:$0xff] %v796
                %v798 = vld [vmem:[%s260 + $0x10c0] sm:$0xff]
                %799 = vst [vmem:[%s261 + $0x860] sm:$0xff] %v798
                %v800 = vld [vmem:[%s260 + $0x10c8] sm:$0xff]
                %801 = vst [vmem:[%s261 + $0x868] sm:$0xff] %v800
                %v802 = vld [vmem:[%s260 + $0x10d0] sm:$0xff]
                %803 = vst [vmem:[%s261 + $0x870] sm:$0xff] %v802
                %v804 = vld [vmem:[%s260 + $0x10d8] sm:$0xff]
                %805 = vst [vmem:[%s261 + $0x878] sm:$0xff] %v804
                %v806 = vld [vmem:[%s260 + $0x1100] sm:$0xff]
                %807 = vst [vmem:[%s261 + $0x880] sm:$0xff] %v806
                %v808 = vld [vmem:[%s260 + $0x1108] sm:$0xff]
                %809 = vst [vmem:[%s261 + $0x888] sm:$0xff] %v808
                %v810 = vld [vmem:[%s260 + $0x1110] sm:$0xff]
                %811 = vst [vmem:[%s261 + $0x890] sm:$0xff] %v810
                %v812 = vld [vmem:[%s260 + $0x1118] sm:$0xff]
                %813 = vst [vmem:[%s261 + $0x898] sm:$0xff] %v812
                %v814 = vld [vmem:[%s260 + $0x1140] sm:$0xff]
                %815 = vst [vmem:[%s261 + $0x8a0] sm:$0xff] %v814
                %v816 = vld [vmem:[%s260 + $0x1148] sm:$0xff]
                %817 = vst [vmem:[%s261 + $0x8a8] sm:$0xff] %v816
                %v818 = vld [vmem:[%s260 + $0x1150] sm:$0xff]
                %819 = vst [vmem:[%s261 + $0x8b0] sm:$0xff] %v818
                %v820 = vld [vmem:[%s260 + $0x1158] sm:$0xff]
                %821 = vst [vmem:[%s261 + $0x8b8] sm:$0xff] %v820
                %v822 = vld [vmem:[%s260 + $0x1180] sm:$0xff]
                %823 = vst [vmem:[%s261 + $0x8c0] sm:$0xff] %v822
                %v824 = vld [vmem:[%s260 + $0x1188] sm:$0xff]
                %825 = vst [vmem:[%s261 + $0x8c8] sm:$0xff] %v824
                %v826 = vld [vmem:[%s260 + $0x1190] sm:$0xff]
                %827 = vst [vmem:[%s261 + $0x8d0] sm:$0xff] %v826
                %v828 = vld [vmem:[%s260 + $0x1198] sm:$0xff]
                %829 = vst [vmem:[%s261 + $0x8d8] sm:$0xff] %v828
                %v830 = vld [vmem:[%s260 + $0x11c0] sm:$0xff]
                %831 = vst [vmem:[%s261 + $0x8e0] sm:$0xff] %v830
                %v832 = vld [vmem:[%s260 + $0x11c8] sm:$0xff]
                %833 = vst [vmem:[%s261 + $0x8e8] sm:$0xff] %v832
                %v834 = vld [vmem:[%s260 + $0x11d0] sm:$0xff]
                %835 = vst [vmem:[%s261 + $0x8f0] sm:$0xff] %v834
                %v836 = vld [vmem:[%s260 + $0x11d8] sm:$0xff]
                %837 = vst [vmem:[%s261 + $0x8f8] sm:$0xff] %v836
                %v838 = vld [vmem:[%s260 + $0x1200] sm:$0xff]
                %839 = vst [vmem:[%s261 + $0x900] sm:$0xff] %v838
                %v840 = vld [vmem:[%s260 + $0x1208] sm:$0xff]
                %841 = vst [vmem:[%s261 + $0x908] sm:$0xff] %v840
                %v842 = vld [vmem:[%s260 + $0x1210] sm:$0xff]
                %843 = vst [vmem:[%s261 + $0x910] sm:$0xff] %v842
                %v844 = vld [vmem:[%s260 + $0x1218] sm:$0xff]
                %845 = vst [vmem:[%s261 + $0x918] sm:$0xff] %v844
                %v846 = vld [vmem:[%s260 + $0x1240] sm:$0xff]
                %847 = vst [vmem:[%s261 + $0x920] sm:$0xff] %v846
                %v848 = vld [vmem:[%s260 + $0x1248] sm:$0xff]
                %849 = vst [vmem:[%s261 + $0x928] sm:$0xff] %v848
                %v850 = vld [vmem:[%s260 + $0x1250] sm:$0xff]
                %851 = vst [vmem:[%s261 + $0x930] sm:$0xff] %v850
                %v852 = vld [vmem:[%s260 + $0x1258] sm:$0xff]
                %853 = vst [vmem:[%s261 + $0x938] sm:$0xff] %v852
                %v854 = vld [vmem:[%s260 + $0x1280] sm:$0xff]
                %855 = vst [vmem:[%s261 + $0x940] sm:$0xff] %v854
                %v856 = vld [vmem:[%s260 + $0x1288] sm:$0xff]
                %857 = vst [vmem:[%s261 + $0x948] sm:$0xff] %v856
                %v858 = vld [vmem:[%s260 + $0x1290] sm:$0xff]
                %859 = vst [vmem:[%s261 + $0x950] sm:$0xff] %v858
                %v860 = vld [vmem:[%s260 + $0x1298] sm:$0xff]
                %861 = vst [vmem:[%s261 + $0x958] sm:$0xff] %v860
                %v862 = vld [vmem:[%s260 + $0x12c0] sm:$0xff]
                %863 = vst [vmem:[%s261 + $0x960] sm:$0xff] %v862
                %v864 = vld [vmem:[%s260 + $0x12c8] sm:$0xff]
                %865 = vst [vmem:[%s261 + $0x968] sm:$0xff] %v864
                %v866 = vld [vmem:[%s260 + $0x12d0] sm:$0xff]
                %867 = vst [vmem:[%s261 + $0x970] sm:$0xff] %v866
                %v868 = vld [vmem:[%s260 + $0x12d8] sm:$0xff]
                %869 = vst [vmem:[%s261 + $0x978] sm:$0xff] %v868
                %v870 = vld [vmem:[%s260 + $0x1300] sm:$0xff]
                %871 = vst [vmem:[%s261 + $0x980] sm:$0xff] %v870
                %v872 = vld [vmem:[%s260 + $0x1308] sm:$0xff]
                %873 = vst [vmem:[%s261 + $0x988] sm:$0xff] %v872
                %v874 = vld [vmem:[%s260 + $0x1310] sm:$0xff]
                %875 = vst [vmem:[%s261 + $0x990] sm:$0xff] %v874
                %v876 = vld [vmem:[%s260 + $0x1318] sm:$0xff]
                %877 = vst [vmem:[%s261 + $0x998] sm:$0xff] %v876
                %v878 = vld [vmem:[%s260 + $0x1340] sm:$0xff]
                %879 = vst [vmem:[%s261 + $0x9a0] sm:$0xff] %v878
                %v880 = vld [vmem:[%s260 + $0x1348] sm:$0xff]
                %881 = vst [vmem:[%s261 + $0x9a8] sm:$0xff] %v880
                %v882 = vld [vmem:[%s260 + $0x1350] sm:$0xff]
                %883 = vst [vmem:[%s261 + $0x9b0] sm:$0xff] %v882
                %v884 = vld [vmem:[%s260 + $0x1358] sm:$0xff]
                %885 = vst [vmem:[%s261 + $0x9b8] sm:$0xff] %v884
                %v886 = vld [vmem:[%s260 + $0x1380] sm:$0xff]
                %887 = vst [vmem:[%s261 + $0x9c0] sm:$0xff] %v886
                %v888 = vld [vmem:[%s260 + $0x1388] sm:$0xff]
                %889 = vst [vmem:[%s261 + $0x9c8] sm:$0xff] %v888
                %v890 = vld [vmem:[%s260 + $0x1390] sm:$0xff]
                %891 = vst [vmem:[%s261 + $0x9d0] sm:$0xff] %v890
                %v892 = vld [vmem:[%s260 + $0x1398] sm:$0xff]
                %893 = vst [vmem:[%s261 + $0x9d8] sm:$0xff] %v892
                %v894 = vld [vmem:[%s260 + $0x13c0] sm:$0xff]
                %895 = vst [vmem:[%s261 + $0x9e0] sm:$0xff] %v894
                %v896 = vld [vmem:[%s260 + $0x13c8] sm:$0xff]
                %897 = vst [vmem:[%s261 + $0x9e8] sm:$0xff] %v896
                %v898 = vld [vmem:[%s260 + $0x13d0] sm:$0xff]
                %899 = vst [vmem:[%s261 + $0x9f0] sm:$0xff] %v898
                %v900 = vld [vmem:[%s260 + $0x13d8] sm:$0xff]
                %901 = vst [vmem:[%s261 + $0x9f8] sm:$0xff] %v900
                %v902 = vld [vmem:[%s260 + $0x1400] sm:$0xff]
                %903 = vst [vmem:[%s261 + $0xa00] sm:$0xff] %v902
                %v904 = vld [vmem:[%s260 + $0x1408] sm:$0xff]
                %905 = vst [vmem:[%s261 + $0xa08] sm:$0xff] %v904
                %v906 = vld [vmem:[%s260 + $0x1410] sm:$0xff]
                %907 = vst [vmem:[%s261 + $0xa10] sm:$0xff] %v906
                %v908 = vld [vmem:[%s260 + $0x1418] sm:$0xff]
                %909 = vst [vmem:[%s261 + $0xa18] sm:$0xff] %v908
                %v910 = vld [vmem:[%s260 + $0x1440] sm:$0xff]
                %911 = vst [vmem:[%s261 + $0xa20] sm:$0xff] %v910
                %v912 = vld [vmem:[%s260 + $0x1448] sm:$0xff]
                %913 = vst [vmem:[%s261 + $0xa28] sm:$0xff] %v912
                %v914 = vld [vmem:[%s260 + $0x1450] sm:$0xff]
                %915 = vst [vmem:[%s261 + $0xa30] sm:$0xff] %v914
                %v916 = vld [vmem:[%s260 + $0x1458] sm:$0xff]
                %917 = vst [vmem:[%s261 + $0xa38] sm:$0xff] %v916
                %v918 = vld [vmem:[%s260 + $0x1480] sm:$0xff]
                %919 = vst [vmem:[%s261 + $0xa40] sm:$0xff] %v918
                %v920 = vld [vmem:[%s260 + $0x1488] sm:$0xff]
                %921 = vst [vmem:[%s261 + $0xa48] sm:$0xff] %v920
                %v922 = vld [vmem:[%s260 + $0x1490] sm:$0xff]
                %923 = vst [vmem:[%s261 + $0xa50] sm:$0xff] %v922
                %v924 = vld [vmem:[%s260 + $0x1498] sm:$0xff]
                %925 = vst [vmem:[%s261 + $0xa58] sm:$0xff] %v924
                %v926 = vld [vmem:[%s260 + $0x14c0] sm:$0xff]
                %927 = vst [vmem:[%s261 + $0xa60] sm:$0xff] %v926
                %v928 = vld [vmem:[%s260 + $0x14c8] sm:$0xff]
                %929 = vst [vmem:[%s261 + $0xa68] sm:$0xff] %v928
                %v930 = vld [vmem:[%s260 + $0x14d0] sm:$0xff]
                %931 = vst [vmem:[%s261 + $0xa70] sm:$0xff] %v930
                %v932 = vld [vmem:[%s260 + $0x14d8] sm:$0xff]
                %933 = vst [vmem:[%s261 + $0xa78] sm:$0xff] %v932
                %v934 = vld [vmem:[%s260 + $0x1500] sm:$0xff]
                %935 = vst [vmem:[%s261 + $0xa80] sm:$0xff] %v934
                %v936 = vld [vmem:[%s260 + $0x1508] sm:$0xff]
                %937 = vst [vmem:[%s261 + $0xa88] sm:$0xff] %v936
                %v938 = vld [vmem:[%s260 + $0x1510] sm:$0xff]
                %939 = vst [vmem:[%s261 + $0xa90] sm:$0xff] %v938
                %v940 = vld [vmem:[%s260 + $0x1518] sm:$0xff]
                %941 = vst [vmem:[%s261 + $0xa98] sm:$0xff] %v940
                %v942 = vld [vmem:[%s260 + $0x1540] sm:$0xff]
                %943 = vst [vmem:[%s261 + $0xaa0] sm:$0xff] %v942
                %v944 = vld [vmem:[%s260 + $0x1548] sm:$0xff]
                %945 = vst [vmem:[%s261 + $0xaa8] sm:$0xff] %v944
                %v946 = vld [vmem:[%s260 + $0x1550] sm:$0xff]
                %947 = vst [vmem:[%s261 + $0xab0] sm:$0xff] %v946
                %v948 = vld [vmem:[%s260 + $0x1558] sm:$0xff]
                %949 = vst [vmem:[%s261 + $0xab8] sm:$0xff] %v948
                %v950 = vld [vmem:[%s260 + $0x1580] sm:$0xff]
                %951 = vst [vmem:[%s261 + $0xac0] sm:$0xff] %v950
                %v952 = vld [vmem:[%s260 + $0x1588] sm:$0xff]
                %953 = vst [vmem:[%s261 + $0xac8] sm:$0xff] %v952
                %v954 = vld [vmem:[%s260 + $0x1590] sm:$0xff]
                %955 = vst [vmem:[%s261 + $0xad0] sm:$0xff] %v954
                %v956 = vld [vmem:[%s260 + $0x1598] sm:$0xff]
                %957 = vst [vmem:[%s261 + $0xad8] sm:$0xff] %v956
                %v958 = vld [vmem:[%s260 + $0x15c0] sm:$0xff]
                %959 = vst [vmem:[%s261 + $0xae0] sm:$0xff] %v958
                %v960 = vld [vmem:[%s260 + $0x15c8] sm:$0xff]
                %961 = vst [vmem:[%s261 + $0xae8] sm:$0xff] %v960
                %v962 = vld [vmem:[%s260 + $0x15d0] sm:$0xff]
                %963 = vst [vmem:[%s261 + $0xaf0] sm:$0xff] %v962
                %v964 = vld [vmem:[%s260 + $0x15d8] sm:$0xff]
                %965 = vst [vmem:[%s261 + $0xaf8] sm:$0xff] %v964
                %v966 = vld [vmem:[%s260 + $0x1600] sm:$0xff]
                %967 = vst [vmem:[%s261 + $0xb00] sm:$0xff] %v966
                %v968 = vld [vmem:[%s260 + $0x1608] sm:$0xff]
                %969 = vst [vmem:[%s261 + $0xb08] sm:$0xff] %v968
                %v970 = vld [vmem:[%s260 + $0x1610] sm:$0xff]
                %971 = vst [vmem:[%s261 + $0xb10] sm:$0xff] %v970
                %v972 = vld [vmem:[%s260 + $0x1618] sm:$0xff]
                %973 = vst [vmem:[%s261 + $0xb18] sm:$0xff] %v972
                %v974 = vld [vmem:[%s260 + $0x1640] sm:$0xff]
                %975 = vst [vmem:[%s261 + $0xb20] sm:$0xff] %v974
                %v976 = vld [vmem:[%s260 + $0x1648] sm:$0xff]
                %977 = vst [vmem:[%s261 + $0xb28] sm:$0xff] %v976
                %v978 = vld [vmem:[%s260 + $0x1650] sm:$0xff]
                %979 = vst [vmem:[%s261 + $0xb30] sm:$0xff] %v978
                %v980 = vld [vmem:[%s260 + $0x1658] sm:$0xff]
                %981 = vst [vmem:[%s261 + $0xb38] sm:$0xff] %v980
                %v982 = vld [vmem:[%s260 + $0x1680] sm:$0xff]
                %983 = vst [vmem:[%s261 + $0xb40] sm:$0xff] %v982
                %v984 = vld [vmem:[%s260 + $0x1688] sm:$0xff]
                %985 = vst [vmem:[%s261 + $0xb48] sm:$0xff] %v984
                %v986 = vld [vmem:[%s260 + $0x1690] sm:$0xff]
                %987 = vst [vmem:[%s261 + $0xb50] sm:$0xff] %v986
                %v988 = vld [vmem:[%s260 + $0x1698] sm:$0xff]
                %989 = vst [vmem:[%s261 + $0xb58] sm:$0xff] %v988
                %v990 = vld [vmem:[%s260 + $0x16c0] sm:$0xff]
                %991 = vst [vmem:[%s261 + $0xb60] sm:$0xff] %v990
                %v992 = vld [vmem:[%s260 + $0x16c8] sm:$0xff]
                %993 = vst [vmem:[%s261 + $0xb68] sm:$0xff] %v992
                %v994 = vld [vmem:[%s260 + $0x16d0] sm:$0xff]
                %995 = vst [vmem:[%s261 + $0xb70] sm:$0xff] %v994
                %v996 = vld [vmem:[%s260 + $0x16d8] sm:$0xff]
                %997 = vst [vmem:[%s261 + $0xb78] sm:$0xff] %v996
                %v998 = vld [vmem:[%s260 + $0x1700] sm:$0xff]
                %999 = vst [vmem:[%s261 + $0xb80] sm:$0xff] %v998
                %v1000 = vld [vmem:[%s260 + $0x1708] sm:$0xff]
                %1001 = vst [vmem:[%s261 + $0xb88] sm:$0xff] %v1000
                %v1002 = vld [vmem:[%s260 + $0x1710] sm:$0xff]
                %1003 = vst [vmem:[%s261 + $0xb90] sm:$0xff] %v1002
                %v1004 = vld [vmem:[%s260 + $0x1718] sm:$0xff]
                %1005 = vst [vmem:[%s261 + $0xb98] sm:$0xff] %v1004
                %v1006 = vld [vmem:[%s260 + $0x1740] sm:$0xff]
                %1007 = vst [vmem:[%s261 + $0xba0] sm:$0xff] %v1006
                %v1008 = vld [vmem:[%s260 + $0x1748] sm:$0xff]
                %1009 = vst [vmem:[%s261 + $0xba8] sm:$0xff] %v1008
                %v1010 = vld [vmem:[%s260 + $0x1750] sm:$0xff]
                %1011 = vst [vmem:[%s261 + $0xbb0] sm:$0xff] %v1010
                %v1012 = vld [vmem:[%s260 + $0x1758] sm:$0xff]
                %1013 = vst [vmem:[%s261 + $0xbb8] sm:$0xff] %v1012
                %v1014 = vld [vmem:[%s260 + $0x1780] sm:$0xff]
                %1015 = vst [vmem:[%s261 + $0xbc0] sm:$0xff] %v1014
                %v1016 = vld [vmem:[%s260 + $0x1788] sm:$0xff]
                %1017 = vst [vmem:[%s261 + $0xbc8] sm:$0xff] %v1016
                %v1018 = vld [vmem:[%s260 + $0x1790] sm:$0xff]
                %1019 = vst [vmem:[%s261 + $0xbd0] sm:$0xff] %v1018
                %v1020 = vld [vmem:[%s260 + $0x1798] sm:$0xff]
                %1021 = vst [vmem:[%s261 + $0xbd8] sm:$0xff] %v1020
                %v1022 = vld [vmem:[%s260 + $0x17c0] sm:$0xff]
                %1023 = vst [vmem:[%s261 + $0xbe0] sm:$0xff] %v1022
                %v1024 = vld [vmem:[%s260 + $0x17c8] sm:$0xff]
                %1025 = vst [vmem:[%s261 + $0xbe8] sm:$0xff] %v1024
                %v1026 = vld [vmem:[%s260 + $0x17d0] sm:$0xff]
                %1027 = vst [vmem:[%s261 + $0xbf0] sm:$0xff] %v1026
                %v1028 = vld [vmem:[%s260 + $0x17d8] sm:$0xff]
                %1029 = vst [vmem:[%s261 + $0xbf8] sm:$0xff] %v1028
              $region37: #{net4ht_forward.9} parent=31 // loop_footer
                %s259 = sadd.s32 1, %s255
              $region38: #{net4ht_forward.9} parent=31 // loop_footer_branch
                %254 = sbr.rel target = $region34
              $region39: #{net4ht_forward.9} parent=31 // loop_exit
                _
            $region32: #{net4ht_forward.9} parent=27 // pred_fallthru
              _
            // Predicated region
            $region40: #{net4ht_forward.9} parent=27 // pred_check
              _
            $region41: #{net4ht_forward.9} parent=27 // pred_check_branch
              %1031 = sbr.rel target = $region43
            $region42: #{net4ht_forward.9} parent=27 // pred_region
              _
            $region43: #{net4ht_forward.9} parent=27 // pred_fallthru
              _
          $region28: #{net4ht_forward.9} parent=23 // pred_fallthru
            _
          %1032 = vnop
        $region24: #{net4ht_forward.9} parent=19 // pred_fallthru
          _
        // Predicated region
        $region44: #{net4ht_forward.9} parent=19 // pred_check
          %p1033 = pneg %p99
        $region45: #{net4ht_forward.9} parent=19 // pred_check_branch
          %1035 = sbr.rel (%p1033) target = $region47
        $region46: #{net4ht_forward.9} parent=19 // pred_region
          %s1036 = smul.u32 4, %s20
          %p1037 = scmp.lt.s32.totalorder %s1036, 7
          %s1038 = scalar_select %p1037, %s1036, 7
          %s1039 = scalar_lea.vmem %s2, %s1038
          %s1040 = smul.u32 4, %s20
        $region47: #{net4ht_forward.9} parent=19 // pred_fallthru
          _
        // Predicated region
        $region48: #{net4ht_forward.9} parent=19 // pred_check
          %p1041 = pneg %p125
        $region49: #{net4ht_forward.9} parent=19 // pred_check_branch
          %1043 = sbr.rel (%p1041) target = $region51
        $region50: #{net4ht_forward.9} parent=19 // pred_region
          %p1044 = scmp.lt.s32.totalorder %s20, 1
          %s1045 = scalar_select %p1044, %s20, 1
          %s1046 = smul.addr %s1045, 64
          %s1047 = smul.addr %s1046, 8
          %s1048 = scalar_lea.vmem %s3, %s1047
        $region51: #{net4ht_forward.9} parent=19 // pred_fallthru
          _
        // Predicated region
        $region52: #{net4ht_forward.9} parent=19 // pred_check
          %p1049 = pneg %p151
        $region53: #{net4ht_forward.9} parent=19 // pred_check_branch
          %1051 = sbr.rel (%p1049) target = $region55
        $region54: #{net4ht_forward.9} parent=19 // pred_region
          %p1052 = scmp.lt.s32.totalorder %s20, 1
          %s1053 = scalar_select %p1052, %s20, 1
          %s1054 = scalar_lea.vmem %s4, %s1053
        $region55: #{net4ht_forward.9} parent=19 // pred_fallthru
          _
      $region20: #{net4ht_forward.9} parent=5 // pred_fallthru
        _
      %p1055 = scmp.le.s32.totalorder 1, %s13
      %p1056 = scmp.lt.s32.totalorder %s13, 3
      %p1057 = pnand %p1055, %p1056
      %p1058 = pneg %p1057
      // Predicated region
      $region56: #{net4ht_forward.9} parent=5 // pred_check
        _
      $region57: #{net4ht_forward.9} parent=5 // pred_check_branch
        %1060 = sbr.rel (%p1057) target = $region59
      $region58: #{net4ht_forward.9} parent=5 // pred_region
        %s1061 = ssub.s32 %s13, 1
        %s1062 = sand.u32 %s66, 1
        %s1063 = sand.u32 %s66, 1
        %s1064 = smul.addr %s1063, 3072
        %s1065 = scalar_lea.vmem [#allocation2], %s1064
        // Predicated region
        $region60: #{net4ht_forward.9} parent=58 // pred_check
          %p1066 = pneg %p79
        $region61: #{net4ht_forward.9} parent=58 // pred_check_branch
          %1068 = sbr.rel (%p1066) target = $region63
        $region62: #{net4ht_forward.9} parent=58 // pred_region
          _
        $region63: #{net4ht_forward.9} parent=58 // pred_fallthru
          _
        %s1069 = smul.u32 6, %s23
        %p1070 = scmp.lt.s32.totalorder %s1069, 5
        %s1071 = scalar_select %p1070, %s1069, 5
        %s1072 = smul.addr %s1071, 2
        %s1073 = scalar_lea.vmem %s0, %s1072
        %p1074 = pneg %p51
        %p1075 = pneg %p48
        %s1076 = sand.u32 %s66, 1
        %s1077 = sand.u32 %s66, 1
        %s1078 = smul.addr %s1077, 3072
        %s1079 = scalar_lea.vmem [#allocation2], %s1078
        %p1080 = pneg %p79
        %p1081 = pneg %p76
        %s1082 = smul.u32 4, %s22
        %p1083 = scmp.lt.s32.totalorder %s1082, 7
        %s1084 = scalar_select %p1083, %s1082, 7
        %s1085 = scalar_lea.vmem %s2, %s1084
        %p1086 = pneg %p105
        %p1087 = pneg %p102
        %p1088 = scmp.lt.s32.totalorder %s22, 1
        %s1089 = scalar_select %p1088, %s22, 1
        %s1090 = smul.addr %s1089, 64
        %s1091 = smul.addr %s1090, 8
        %s1092 = scalar_lea.vmem %s3, %s1091
        %p1093 = pneg %p131
        %p1094 = pneg %p128
        %p1095 = scmp.lt.s32.totalorder %s22, 1
        %s1096 = scalar_select %p1095, %s22, 1
        %s1097 = scalar_lea.vmem %s4, %s1096
        %p1098 = pneg %p157
        %p1099 = pneg %p154
        %p1100 = pneg %p183
        %p1101 = pneg %p180
        %p1102 = scmp.lt.s32.totalorder %s22, 1
        %s1103 = scalar_select %p1102, %s22, 1
        %s1104 = smul.addr %s1103, 4
        %s1105 = smul.addr %s1104, 2
        %s1106 = scalar_lea.vmem %s5, %s1105
        %p1107 = pneg %p209
        %p1108 = pneg %p206
        %p1109 = scmp.lt.s32.totalorder %s22, 1
        %s1110 = scalar_select %p1109, %s22, 1
        %s1111 = smul.addr %s1110, 2
        %s1112 = scalar_lea.vmem %s6, %s1111
        %s1113 = smul.u32 6, %s23
        %p1114 = scmp.lt.s32.totalorder %s1113, 5
        %s1115 = scalar_select %p1114, %s1113, 5
        %s1116 = smul.addr %s1115, 2
        %s1117 = scalar_lea.vmem %s0, %s1116
        %s1118 = smul.u32 6, %s23
        %s1119 = smul.u32 96, %s23
        %s1120 = smul.u32 4, %s22
        %s1121 = smul.u32 4, %s22
        %p1122 = scmp.lt.s32.totalorder %s1121, 7
        %s1123 = scalar_select %p1122, %s1121, 7
        %s1124 = scalar_lea.vmem %s2, %s1123
        %s1125 = smul.u32 4, %s22
        %p1126 = scmp.lt.s32.totalorder %s22, 1
        %s1127 = scalar_select %p1126, %s22, 1
        %s1128 = smul.addr %s1127, 64
        %s1129 = smul.addr %s1128, 8
        %s1130 = scalar_lea.vmem %s3, %s1129
        %p1131 = scmp.lt.s32.totalorder %s22, 1
        %s1132 = scalar_select %p1131, %s22, 1
        %s1133 = scalar_lea.vmem %s4, %s1132
        %p1134 = scmp.lt.s32.totalorder %s22, 1
        %s1135 = scalar_select %p1134, %s22, 1
        %s1136 = smul.addr %s1135, 4
        %s1137 = smul.addr %s1136, 2
        %s1138 = scalar_lea.vmem %s5, %s1137
        %p1139 = scmp.lt.s32.totalorder %s22, 1
        %s1140 = scalar_select %p1139, %s22, 1
        %s1141 = smul.addr %s1140, 2
        %s1142 = scalar_lea.vmem %s6, %s1141
        %p1143 = scmp.eq.s32.totalorder %s23, 0
        // Predicated region
        $region64: #{net4ht_forward.9} parent=58 // pred_check
          %p1144 = pneg %p1143
        $region65: #{net4ht_forward.9} parent=58 // pred_check_branch
          %1146 = sbr.rel (%p1144) target = $region67
        $region66: #{net4ht_forward.9} parent=58 // pred_region
          %v1147 = vld [vmem:[%s1124] sm:$0xf]
          %v1149 = vlaneseq
          %v1150 = vshrl.u32 %v1149, 7
          %v1151 = vsub.s32 0, %v1150
          %v1152 = vrot.slane %v1147, %v1151
          %v1153 = vlaneseq
          %v1154 = vshrl.u32 %v1153, 7
          %v1155 = vsub.s32 1, %v1154
          %v1156 = vrot.slane %v1147, %v1155
          %v1157 = vlaneseq
          %v1158 = vshrl.u32 %v1157, 7
          %v1159 = vsub.s32 2, %v1158
          %v1160 = vrot.slane %v1147, %v1159
          %v1161 = vlaneseq
          %v1162 = vshrl.u32 %v1161, 7
          %v1163 = vsub.s32 3, %v1162
          %v1164 = vrot.slane %v1147, %v1163
          %v1165 = vcombine.low %v1152, %v1156
          %v1166 = vcombine.low %v1160, %v1164
          %v1168 = vunpack.c.l.s4 1983009808
          %v1169 = vunpack.c.0.s8 %v1168
          %v1170 = vlaneseq
          %v1171 = vshrl.u32 %v1170, 7
          %v1172 = vsub.s32 %v1169, %v1171
          %v1173 = vrot.slane %v1165, %v1172
          %v1175 = vunpack.c.l.s4 1983009808
          %v1176 = vunpack.c.0.s8 %v1175
          %v1177 = vlaneseq
          %v1178 = vshrl.u32 %v1177, 7
          %v1179 = vsub.s32 %v1176, %v1178
          %v1180 = vrot.slane %v1166, %v1179
          %v1181 = vcombine.low %v1173, %v1180
          %1183 = vst [vmem:[%s1138] sm:$0xff] %v1181
        $region67: #{net4ht_forward.9} parent=58 // pred_fallthru
          _
        %v1184 = vld [vmem:[%s1138] sm:$0xff]
        %v1185 = vld [vmem:[%s1117] sm:$0xff]
        %v1186 = vld [vmem:[%s1117 + $0x8] sm:$0xf]
        %v1187 = vld [vmem:[%s1065] sm:$0xff]
        %v1188 = vld [vmem:[%s1065 + $0x8] sm:$0xff]
        %v1189 = vld [vmem:[%s1065 + $0x10] sm:$0xff]
        %v1190 = vld [vmem:[%s1065 + $0x18] sm:$0xff]
        %v1191 = vld [vmem:[%s1065 + $0x20] sm:$0xff]
        %v1192 = vld [vmem:[%s1065 + $0x28] sm:$0xff]
        %v1193 = vld [vmem:[%s1065 + $0x30] sm:$0xff]
        %v1194 = vld [vmem:[%s1065 + $0x38] sm:$0xff]
        %v1195 = vld [vmem:[%s1065 + $0x40] sm:$0xff]
        %v1196 = vld [vmem:[%s1065 + $0x48] sm:$0xff]
        %v1197 = vld [vmem:[%s1065 + $0x50] sm:$0xff]
        %v1198 = vld [vmem:[%s1065 + $0x58] sm:$0xff]
        %v1199 = vld [vmem:[%s1065 + $0x60] sm:$0xff]
        %v1200 = vld [vmem:[%s1065 + $0x68] sm:$0xff]
        %v1201 = vld [vmem:[%s1065 + $0x70] sm:$0xff]
        %v1202 = vld [vmem:[%s1065 + $0x78] sm:$0xff]
        %v1203 = vld [vmem:[%s1065 + $0x80] sm:$0xff]
        %v1204 = vld [vmem:[%s1065 + $0x88] sm:$0xff]
        %v1205 = vld [vmem:[%s1065 + $0x90] sm:$0xff]
        %v1206 = vld [vmem:[%s1065 + $0x98] sm:$0xff]
        %v1207 = vld [vmem:[%s1065 + $0xa0] sm:$0xff]
        %v1208 = vld [vmem:[%s1065 + $0xa8] sm:$0xff]
        %v1209 = vld [vmem:[%s1065 + $0xb0] sm:$0xff]
        %v1210 = vld [vmem:[%s1065 + $0xb8] sm:$0xff]
        %v1211 = vld [vmem:[%s1065 + $0xc0] sm:$0xff]
        %v1212 = vld [vmem:[%s1065 + $0xc8] sm:$0xff]
        %v1213 = vld [vmem:[%s1065 + $0xd0] sm:$0xff]
        %v1214 = vld [vmem:[%s1065 + $0xd8] sm:$0xff]
        %v1215 = vld [vmem:[%s1065 + $0xe0] sm:$0xff]
        %v1216 = vld [vmem:[%s1065 + $0xe8] sm:$0xff]
        %v1217 = vld [vmem:[%s1065 + $0xf0] sm:$0xff]
        %v1218 = vld [vmem:[%s1065 + $0xf8] sm:$0xff]
        %v1219 = vld [vmem:[%s1065 + $0x100] sm:$0xff]
        %v1220 = vld [vmem:[%s1065 + $0x108] sm:$0xff]
        %v1221 = vld [vmem:[%s1065 + $0x110] sm:$0xff]
        %v1222 = vld [vmem:[%s1065 + $0x118] sm:$0xff]
        %v1223 = vld [vmem:[%s1065 + $0x120] sm:$0xff]
        %v1224 = vld [vmem:[%s1065 + $0x128] sm:$0xff]
        %v1225 = vld [vmem:[%s1065 + $0x130] sm:$0xff]
        %v1226 = vld [vmem:[%s1065 + $0x138] sm:$0xff]
        %v1227 = vld [vmem:[%s1065 + $0x140] sm:$0xff]
        %v1228 = vld [vmem:[%s1065 + $0x148] sm:$0xff]
        %v1229 = vld [vmem:[%s1065 + $0x150] sm:$0xff]
        %v1230 = vld [vmem:[%s1065 + $0x158] sm:$0xff]
        %v1231 = vld [vmem:[%s1065 + $0x160] sm:$0xff]
        %v1232 = vld [vmem:[%s1065 + $0x168] sm:$0xff]
        %v1233 = vld [vmem:[%s1065 + $0x170] sm:$0xff]
        %v1234 = vld [vmem:[%s1065 + $0x178] sm:$0xff]
        %v1235 = vld [vmem:[%s1065 + $0x180] sm:$0xff]
        %v1236 = vld [vmem:[%s1065 + $0x188] sm:$0xff]
        %v1237 = vld [vmem:[%s1065 + $0x190] sm:$0xff]
        %v1238 = vld [vmem:[%s1065 + $0x198] sm:$0xff]
        %v1239 = vld [vmem:[%s1065 + $0x1a0] sm:$0xff]
        %v1240 = vld [vmem:[%s1065 + $0x1a8] sm:$0xff]
        %v1241 = vld [vmem:[%s1065 + $0x1b0] sm:$0xff]
        %v1242 = vld [vmem:[%s1065 + $0x1b8] sm:$0xff]
        %v1243 = vld [vmem:[%s1065 + $0x1c0] sm:$0xff]
        %v1244 = vld [vmem:[%s1065 + $0x1c8] sm:$0xff]
        %v1245 = vld [vmem:[%s1065 + $0x1d0] sm:$0xff]
        %v1246 = vld [vmem:[%s1065 + $0x1d8] sm:$0xff]
        %v1247 = vld [vmem:[%s1065 + $0x1e0] sm:$0xff]
        %v1248 = vld [vmem:[%s1065 + $0x1e8] sm:$0xff]
        %v1249 = vld [vmem:[%s1065 + $0x1f0] sm:$0xff]
        %v1250 = vld [vmem:[%s1065 + $0x1f8] sm:$0xff]
        %v1251 = vld [vmem:[%s1065 + $0x200] sm:$0xff]
        %v1252 = vld [vmem:[%s1065 + $0x208] sm:$0xff]
        %v1253 = vld [vmem:[%s1065 + $0x210] sm:$0xff]
        %v1254 = vld [vmem:[%s1065 + $0x218] sm:$0xff]
        %v1255 = vld [vmem:[%s1065 + $0x220] sm:$0xff]
        %v1256 = vld [vmem:[%s1065 + $0x228] sm:$0xff]
        %v1257 = vld [vmem:[%s1065 + $0x230] sm:$0xff]
        %v1258 = vld [vmem:[%s1065 + $0x238] sm:$0xff]
        %v1259 = vld [vmem:[%s1065 + $0x240] sm:$0xff]
        %v1260 = vld [vmem:[%s1065 + $0x248] sm:$0xff]
        %v1261 = vld [vmem:[%s1065 + $0x250] sm:$0xff]
        %v1262 = vld [vmem:[%s1065 + $0x258] sm:$0xff]
        %v1263 = vld [vmem:[%s1065 + $0x260] sm:$0xff]
        %v1264 = vld [vmem:[%s1065 + $0x268] sm:$0xff]
        %v1265 = vld [vmem:[%s1065 + $0x270] sm:$0xff]
        %v1266 = vld [vmem:[%s1065 + $0x278] sm:$0xff]
        %v1267 = vld [vmem:[%s1065 + $0x280] sm:$0xff]
        %v1268 = vld [vmem:[%s1065 + $0x288] sm:$0xff]
        %v1269 = vld [vmem:[%s1065 + $0x290] sm:$0xff]
        %v1270 = vld [vmem:[%s1065 + $0x298] sm:$0xff]
        %v1271 = vld [vmem:[%s1065 + $0x2a0] sm:$0xff]
        %v1272 = vld [vmem:[%s1065 + $0x2a8] sm:$0xff]
        %v1273 = vld [vmem:[%s1065 + $0x2b0] sm:$0xff]
        %v1274 = vld [vmem:[%s1065 + $0x2b8] sm:$0xff]
        %v1275 = vld [vmem:[%s1065 + $0x2c0] sm:$0xff]
        %v1276 = vld [vmem:[%s1065 + $0x2c8] sm:$0xff]
        %v1277 = vld [vmem:[%s1065 + $0x2d0] sm:$0xff]
        %v1278 = vld [vmem:[%s1065 + $0x2d8] sm:$0xff]
        %v1279 = vld [vmem:[%s1065 + $0x2e0] sm:$0xff]
        %v1280 = vld [vmem:[%s1065 + $0x2e8] sm:$0xff]
        %v1281 = vld [vmem:[%s1065 + $0x2f0] sm:$0xff]
        %v1282 = vld [vmem:[%s1065 + $0x2f8] sm:$0xff]
        %v1283 = vld [vmem:[%s1065 + $0x300] sm:$0xff]
        %v1284 = vld [vmem:[%s1065 + $0x308] sm:$0xff]
        %v1285 = vld [vmem:[%s1065 + $0x310] sm:$0xff]
        %v1286 = vld [vmem:[%s1065 + $0x318] sm:$0xff]
        %v1287 = vld [vmem:[%s1065 + $0x320] sm:$0xff]
        %v1288 = vld [vmem:[%s1065 + $0x328] sm:$0xff]
        %v1289 = vld [vmem:[%s1065 + $0x330] sm:$0xff]
        %v1290 = vld [vmem:[%s1065 + $0x338] sm:$0xff]
        %v1291 = vld [vmem:[%s1065 + $0x340] sm:$0xff]
        %v1292 = vld [vmem:[%s1065 + $0x348] sm:$0xff]
        %v1293 = vld [vmem:[%s1065 + $0x350] sm:$0xff]
        %v1294 = vld [vmem:[%s1065 + $0x358] sm:$0xff]
        %v1295 = vld [vmem:[%s1065 + $0x360] sm:$0xff]
        %v1296 = vld [vmem:[%s1065 + $0x368] sm:$0xff]
        %v1297 = vld [vmem:[%s1065 + $0x370] sm:$0xff]
        %v1298 = vld [vmem:[%s1065 + $0x378] sm:$0xff]
        %v1299 = vld [vmem:[%s1065 + $0x380] sm:$0xff]
        %v1300 = vld [vmem:[%s1065 + $0x388] sm:$0xff]
        %v1301 = vld [vmem:[%s1065 + $0x390] sm:$0xff]
        %v1302 = vld [vmem:[%s1065 + $0x398] sm:$0xff]
        %v1303 = vld [vmem:[%s1065 + $0x3a0] sm:$0xff]
        %v1304 = vld [vmem:[%s1065 + $0x3a8] sm:$0xff]
        %v1305 = vld [vmem:[%s1065 + $0x3b0] sm:$0xff]
        %v1306 = vld [vmem:[%s1065 + $0x3b8] sm:$0xff]
        %v1307 = vld [vmem:[%s1065 + $0x3c0] sm:$0xff]
        %v1308 = vld [vmem:[%s1065 + $0x3c8] sm:$0xff]
        %v1309 = vld [vmem:[%s1065 + $0x3d0] sm:$0xff]
        %v1310 = vld [vmem:[%s1065 + $0x3d8] sm:$0xff]
        %v1311 = vld [vmem:[%s1065 + $0x3e0] sm:$0xff]
        %v1312 = vld [vmem:[%s1065 + $0x3e8] sm:$0xff]
        %v1313 = vld [vmem:[%s1065 + $0x3f0] sm:$0xff]
        %v1314 = vld [vmem:[%s1065 + $0x3f8] sm:$0xff]
        %v1315 = vld [vmem:[%s1065 + $0x400] sm:$0xff]
        %v1316 = vld [vmem:[%s1065 + $0x408] sm:$0xff]
        %v1317 = vld [vmem:[%s1065 + $0x410] sm:$0xff]
        %v1318 = vld [vmem:[%s1065 + $0x418] sm:$0xff]
        %v1319 = vld [vmem:[%s1065 + $0x420] sm:$0xff]
        %v1320 = vld [vmem:[%s1065 + $0x428] sm:$0xff]
        %v1321 = vld [vmem:[%s1065 + $0x430] sm:$0xff]
        %v1322 = vld [vmem:[%s1065 + $0x438] sm:$0xff]
        %v1323 = vld [vmem:[%s1065 + $0x440] sm:$0xff]
        %v1324 = vld [vmem:[%s1065 + $0x448] sm:$0xff]
        %v1325 = vld [vmem:[%s1065 + $0x450] sm:$0xff]
        %v1326 = vld [vmem:[%s1065 + $0x458] sm:$0xff]
        %v1327 = vld [vmem:[%s1065 + $0x460] sm:$0xff]
        %v1328 = vld [vmem:[%s1065 + $0x468] sm:$0xff]
        %v1329 = vld [vmem:[%s1065 + $0x470] sm:$0xff]
        %v1330 = vld [vmem:[%s1065 + $0x478] sm:$0xff]
        %v1331 = vld [vmem:[%s1065 + $0x480] sm:$0xff]
        %v1332 = vld [vmem:[%s1065 + $0x488] sm:$0xff]
        %v1333 = vld [vmem:[%s1065 + $0x490] sm:$0xff]
        %v1334 = vld [vmem:[%s1065 + $0x498] sm:$0xff]
        %v1335 = vld [vmem:[%s1065 + $0x4a0] sm:$0xff]
        %v1336 = vld [vmem:[%s1065 + $0x4a8] sm:$0xff]
        %v1337 = vld [vmem:[%s1065 + $0x4b0] sm:$0xff]
        %v1338 = vld [vmem:[%s1065 + $0x4b8] sm:$0xff]
        %v1339 = vld [vmem:[%s1065 + $0x4c0] sm:$0xff]
        %v1340 = vld [vmem:[%s1065 + $0x4c8] sm:$0xff]
        %v1341 = vld [vmem:[%s1065 + $0x4d0] sm:$0xff]
        %v1342 = vld [vmem:[%s1065 + $0x4d8] sm:$0xff]
        %v1343 = vld [vmem:[%s1065 + $0x4e0] sm:$0xff]
        %v1344 = vld [vmem:[%s1065 + $0x4e8] sm:$0xff]
        %v1345 = vld [vmem:[%s1065 + $0x4f0] sm:$0xff]
        %v1346 = vld [vmem:[%s1065 + $0x4f8] sm:$0xff]
        %v1347 = vld [vmem:[%s1065 + $0x500] sm:$0xff]
        %v1348 = vld [vmem:[%s1065 + $0x508] sm:$0xff]
        %v1349 = vld [vmem:[%s1065 + $0x510] sm:$0xff]
        %v1350 = vld [vmem:[%s1065 + $0x518] sm:$0xff]
        %v1351 = vld [vmem:[%s1065 + $0x520] sm:$0xff]
        %v1352 = vld [vmem:[%s1065 + $0x528] sm:$0xff]
        %v1353 = vld [vmem:[%s1065 + $0x530] sm:$0xff]
        %v1354 = vld [vmem:[%s1065 + $0x538] sm:$0xff]
        %v1355 = vld [vmem:[%s1065 + $0x540] sm:$0xff]
        %v1356 = vld [vmem:[%s1065 + $0x548] sm:$0xff]
        %v1357 = vld [vmem:[%s1065 + $0x550] sm:$0xff]
        %v1358 = vld [vmem:[%s1065 + $0x558] sm:$0xff]
        %v1359 = vld [vmem:[%s1065 + $0x560] sm:$0xff]
        %v1360 = vld [vmem:[%s1065 + $0x568] sm:$0xff]
        %v1361 = vld [vmem:[%s1065 + $0x570] sm:$0xff]
        %v1362 = vld [vmem:[%s1065 + $0x578] sm:$0xff]
        %v1363 = vld [vmem:[%s1065 + $0x580] sm:$0xff]
        %v1364 = vld [vmem:[%s1065 + $0x588] sm:$0xff]
        %v1365 = vld [vmem:[%s1065 + $0x590] sm:$0xff]
        %v1366 = vld [vmem:[%s1065 + $0x598] sm:$0xff]
        %v1367 = vld [vmem:[%s1065 + $0x5a0] sm:$0xff]
        %v1368 = vld [vmem:[%s1065 + $0x5a8] sm:$0xff]
        %v1369 = vld [vmem:[%s1065 + $0x5b0] sm:$0xff]
        %v1370 = vld [vmem:[%s1065 + $0x5b8] sm:$0xff]
        %v1371 = vld [vmem:[%s1065 + $0x5c0] sm:$0xff]
        %v1372 = vld [vmem:[%s1065 + $0x5c8] sm:$0xff]
        %v1373 = vld [vmem:[%s1065 + $0x5d0] sm:$0xff]
        %v1374 = vld [vmem:[%s1065 + $0x5d8] sm:$0xff]
        %v1375 = vld [vmem:[%s1065 + $0x5e0] sm:$0xff]
        %v1376 = vld [vmem:[%s1065 + $0x5e8] sm:$0xff]
        %v1377 = vld [vmem:[%s1065 + $0x5f0] sm:$0xff]
        %v1378 = vld [vmem:[%s1065 + $0x5f8] sm:$0xff]
        %v1379 = vld [vmem:[%s1065 + $0x600] sm:$0xff]
        %v1380 = vld [vmem:[%s1065 + $0x608] sm:$0xff]
        %v1381 = vld [vmem:[%s1065 + $0x610] sm:$0xff]
        %v1382 = vld [vmem:[%s1065 + $0x618] sm:$0xff]
        %v1383 = vld [vmem:[%s1065 + $0x620] sm:$0xff]
        %v1384 = vld [vmem:[%s1065 + $0x628] sm:$0xff]
        %v1385 = vld [vmem:[%s1065 + $0x630] sm:$0xff]
        %v1386 = vld [vmem:[%s1065 + $0x638] sm:$0xff]
        %v1387 = vld [vmem:[%s1065 + $0x640] sm:$0xff]
        %v1388 = vld [vmem:[%s1065 + $0x648] sm:$0xff]
        %v1389 = vld [vmem:[%s1065 + $0x650] sm:$0xff]
        %v1390 = vld [vmem:[%s1065 + $0x658] sm:$0xff]
        %v1391 = vld [vmem:[%s1065 + $0x660] sm:$0xff]
        %v1392 = vld [vmem:[%s1065 + $0x668] sm:$0xff]
        %v1393 = vld [vmem:[%s1065 + $0x670] sm:$0xff]
        %v1394 = vld [vmem:[%s1065 + $0x678] sm:$0xff]
        %v1395 = vld [vmem:[%s1065 + $0x680] sm:$0xff]
        %v1396 = vld [vmem:[%s1065 + $0x688] sm:$0xff]
        %v1397 = vld [vmem:[%s1065 + $0x690] sm:$0xff]
        %v1398 = vld [vmem:[%s1065 + $0x698] sm:$0xff]
        %v1399 = vld [vmem:[%s1065 + $0x6a0] sm:$0xff]
        %v1400 = vld [vmem:[%s1065 + $0x6a8] sm:$0xff]
        %v1401 = vld [vmem:[%s1065 + $0x6b0] sm:$0xff]
        %v1402 = vld [vmem:[%s1065 + $0x6b8] sm:$0xff]
        %v1403 = vld [vmem:[%s1065 + $0x6c0] sm:$0xff]
        %v1404 = vld [vmem:[%s1065 + $0x6c8] sm:$0xff]
        %v1405 = vld [vmem:[%s1065 + $0x6d0] sm:$0xff]
        %v1406 = vld [vmem:[%s1065 + $0x6d8] sm:$0xff]
        %v1407 = vld [vmem:[%s1065 + $0x6e0] sm:$0xff]
        %v1408 = vld [vmem:[%s1065 + $0x6e8] sm:$0xff]
        %v1409 = vld [vmem:[%s1065 + $0x6f0] sm:$0xff]
        %v1410 = vld [vmem:[%s1065 + $0x6f8] sm:$0xff]
        %v1411 = vld [vmem:[%s1065 + $0x700] sm:$0xff]
        %v1412 = vld [vmem:[%s1065 + $0x708] sm:$0xff]
        %v1413 = vld [vmem:[%s1065 + $0x710] sm:$0xff]
        %v1414 = vld [vmem:[%s1065 + $0x718] sm:$0xff]
        %v1415 = vld [vmem:[%s1065 + $0x720] sm:$0xff]
        %v1416 = vld [vmem:[%s1065 + $0x728] sm:$0xff]
        %v1417 = vld [vmem:[%s1065 + $0x730] sm:$0xff]
        %v1418 = vld [vmem:[%s1065 + $0x738] sm:$0xff]
        %v1419 = vld [vmem:[%s1065 + $0x740] sm:$0xff]
        %v1420 = vld [vmem:[%s1065 + $0x748] sm:$0xff]
        %v1421 = vld [vmem:[%s1065 + $0x750] sm:$0xff]
        %v1422 = vld [vmem:[%s1065 + $0x758] sm:$0xff]
        %v1423 = vld [vmem:[%s1065 + $0x760] sm:$0xff]
        %v1424 = vld [vmem:[%s1065 + $0x768] sm:$0xff]
        %v1425 = vld [vmem:[%s1065 + $0x770] sm:$0xff]
        %v1426 = vld [vmem:[%s1065 + $0x778] sm:$0xff]
        %v1427 = vld [vmem:[%s1065 + $0x780] sm:$0xff]
        %v1428 = vld [vmem:[%s1065 + $0x788] sm:$0xff]
        %v1429 = vld [vmem:[%s1065 + $0x790] sm:$0xff]
        %v1430 = vld [vmem:[%s1065 + $0x798] sm:$0xff]
        %v1431 = vld [vmem:[%s1065 + $0x7a0] sm:$0xff]
        %v1432 = vld [vmem:[%s1065 + $0x7a8] sm:$0xff]
        %v1433 = vld [vmem:[%s1065 + $0x7b0] sm:$0xff]
        %v1434 = vld [vmem:[%s1065 + $0x7b8] sm:$0xff]
        %v1435 = vld [vmem:[%s1065 + $0x7c0] sm:$0xff]
        %v1436 = vld [vmem:[%s1065 + $0x7c8] sm:$0xff]
        %v1437 = vld [vmem:[%s1065 + $0x7d0] sm:$0xff]
        %v1438 = vld [vmem:[%s1065 + $0x7d8] sm:$0xff]
        %v1439 = vld [vmem:[%s1065 + $0x7e0] sm:$0xff]
        %v1440 = vld [vmem:[%s1065 + $0x7e8] sm:$0xff]
        %v1441 = vld [vmem:[%s1065 + $0x7f0] sm:$0xff]
        %v1442 = vld [vmem:[%s1065 + $0x7f8] sm:$0xff]
        %v1443 = vld [vmem:[%s1065 + $0x800] sm:$0xff]
        %v1444 = vld [vmem:[%s1065 + $0x808] sm:$0xff]
        %v1445 = vld [vmem:[%s1065 + $0x810] sm:$0xff]
        %v1446 = vld [vmem:[%s1065 + $0x818] sm:$0xff]
        %v1447 = vld [vmem:[%s1065 + $0x820] sm:$0xff]
        %v1448 = vld [vmem:[%s1065 + $0x828] sm:$0xff]
        %v1449 = vld [vmem:[%s1065 + $0x830] sm:$0xff]
        %v1450 = vld [vmem:[%s1065 + $0x838] sm:$0xff]
        %v1451 = vld [vmem:[%s1065 + $0x840] sm:$0xff]
        %v1452 = vld [vmem:[%s1065 + $0x848] sm:$0xff]
        %v1453 = vld [vmem:[%s1065 + $0x850] sm:$0xff]
        %v1454 = vld [vmem:[%s1065 + $0x858] sm:$0xff]
        %v1455 = vld [vmem:[%s1065 + $0x860] sm:$0xff]
        %v1456 = vld [vmem:[%s1065 + $0x868] sm:$0xff]
        %v1457 = vld [vmem:[%s1065 + $0x870] sm:$0xff]
        %v1458 = vld [vmem:[%s1065 + $0x878] sm:$0xff]
        %v1459 = vld [vmem:[%s1065 + $0x880] sm:$0xff]
        %v1460 = vld [vmem:[%s1065 + $0x888] sm:$0xff]
        %v1461 = vld [vmem:[%s1065 + $0x890] sm:$0xff]
        %v1462 = vld [vmem:[%s1065 + $0x898] sm:$0xff]
        %v1463 = vld [vmem:[%s1065 + $0x8a0] sm:$0xff]
        %v1464 = vld [vmem:[%s1065 + $0x8a8] sm:$0xff]
        %v1465 = vld [vmem:[%s1065 + $0x8b0] sm:$0xff]
        %v1466 = vld [vmem:[%s1065 + $0x8b8] sm:$0xff]
        %v1467 = vld [vmem:[%s1065 + $0x8c0] sm:$0xff]
        %v1468 = vld [vmem:[%s1065 + $0x8c8] sm:$0xff]
        %v1469 = vld [vmem:[%s1065 + $0x8d0] sm:$0xff]
        %v1470 = vld [vmem:[%s1065 + $0x8d8] sm:$0xff]
        %v1471 = vld [vmem:[%s1065 + $0x8e0] sm:$0xff]
        %v1472 = vld [vmem:[%s1065 + $0x8e8] sm:$0xff]
        %v1473 = vld [vmem:[%s1065 + $0x8f0] sm:$0xff]
        %v1474 = vld [vmem:[%s1065 + $0x8f8] sm:$0xff]
        %v1475 = vld [vmem:[%s1065 + $0x900] sm:$0xff]
        %v1476 = vld [vmem:[%s1065 + $0x908] sm:$0xff]
        %v1477 = vld [vmem:[%s1065 + $0x910] sm:$0xff]
        %v1478 = vld [vmem:[%s1065 + $0x918] sm:$0xff]
        %v1479 = vld [vmem:[%s1065 + $0x920] sm:$0xff]
        %v1480 = vld [vmem:[%s1065 + $0x928] sm:$0xff]
        %v1481 = vld [vmem:[%s1065 + $0x930] sm:$0xff]
        %v1482 = vld [vmem:[%s1065 + $0x938] sm:$0xff]
        %v1483 = vld [vmem:[%s1065 + $0x940] sm:$0xff]
        %v1484 = vld [vmem:[%s1065 + $0x948] sm:$0xff]
        %v1485 = vld [vmem:[%s1065 + $0x950] sm:$0xff]
        %v1486 = vld [vmem:[%s1065 + $0x958] sm:$0xff]
        %v1487 = vld [vmem:[%s1065 + $0x960] sm:$0xff]
        %v1488 = vld [vmem:[%s1065 + $0x968] sm:$0xff]
        %v1489 = vld [vmem:[%s1065 + $0x970] sm:$0xff]
        %v1490 = vld [vmem:[%s1065 + $0x978] sm:$0xff]
        %v1491 = vld [vmem:[%s1065 + $0x980] sm:$0xff]
        %v1492 = vld [vmem:[%s1065 + $0x988] sm:$0xff]
        %v1493 = vld [vmem:[%s1065 + $0x990] sm:$0xff]
        %v1494 = vld [vmem:[%s1065 + $0x998] sm:$0xff]
        %v1495 = vld [vmem:[%s1065 + $0x9a0] sm:$0xff]
        %v1496 = vld [vmem:[%s1065 + $0x9a8] sm:$0xff]
        %v1497 = vld [vmem:[%s1065 + $0x9b0] sm:$0xff]
        %v1498 = vld [vmem:[%s1065 + $0x9b8] sm:$0xff]
        %v1499 = vld [vmem:[%s1065 + $0x9c0] sm:$0xff]
        %v1500 = vld [vmem:[%s1065 + $0x9c8] sm:$0xff]
        %v1501 = vld [vmem:[%s1065 + $0x9d0] sm:$0xff]
        %v1502 = vld [vmem:[%s1065 + $0x9d8] sm:$0xff]
        %v1503 = vld [vmem:[%s1065 + $0x9e0] sm:$0xff]
        %v1504 = vld [vmem:[%s1065 + $0x9e8] sm:$0xff]
        %v1505 = vld [vmem:[%s1065 + $0x9f0] sm:$0xff]
        %v1506 = vld [vmem:[%s1065 + $0x9f8] sm:$0xff]
        %v1507 = vld [vmem:[%s1065 + $0xa00] sm:$0xff]
        %v1508 = vld [vmem:[%s1065 + $0xa08] sm:$0xff]
        %v1509 = vld [vmem:[%s1065 + $0xa10] sm:$0xff]
        %v1510 = vld [vmem:[%s1065 + $0xa18] sm:$0xff]
        %v1511 = vld [vmem:[%s1065 + $0xa20] sm:$0xff]
        %v1512 = vld [vmem:[%s1065 + $0xa28] sm:$0xff]
        %v1513 = vld [vmem:[%s1065 + $0xa30] sm:$0xff]
        %v1514 = vld [vmem:[%s1065 + $0xa38] sm:$0xff]
        %v1515 = vld [vmem:[%s1065 + $0xa40] sm:$0xff]
        %v1516 = vld [vmem:[%s1065 + $0xa48] sm:$0xff]
        %v1517 = vld [vmem:[%s1065 + $0xa50] sm:$0xff]
        %v1518 = vld [vmem:[%s1065 + $0xa58] sm:$0xff]
        %v1519 = vld [vmem:[%s1065 + $0xa60] sm:$0xff]
        %v1520 = vld [vmem:[%s1065 + $0xa68] sm:$0xff]
        %v1521 = vld [vmem:[%s1065 + $0xa70] sm:$0xff]
        %v1522 = vld [vmem:[%s1065 + $0xa78] sm:$0xff]
        %v1523 = vld [vmem:[%s1065 + $0xa80] sm:$0xff]
        %v1524 = vld [vmem:[%s1065 + $0xa88] sm:$0xff]
        %v1525 = vld [vmem:[%s1065 + $0xa90] sm:$0xff]
        %v1526 = vld [vmem:[%s1065 + $0xa98] sm:$0xff]
        %v1527 = vld [vmem:[%s1065 + $0xaa0] sm:$0xff]
        %v1528 = vld [vmem:[%s1065 + $0xaa8] sm:$0xff]
        %v1529 = vld [vmem:[%s1065 + $0xab0] sm:$0xff]
        %v1530 = vld [vmem:[%s1065 + $0xab8] sm:$0xff]
        %v1531 = vld [vmem:[%s1065 + $0xac0] sm:$0xff]
        %v1532 = vld [vmem:[%s1065 + $0xac8] sm:$0xff]
        %v1533 = vld [vmem:[%s1065 + $0xad0] sm:$0xff]
        %v1534 = vld [vmem:[%s1065 + $0xad8] sm:$0xff]
        %v1535 = vld [vmem:[%s1065 + $0xae0] sm:$0xff]
        %v1536 = vld [vmem:[%s1065 + $0xae8] sm:$0xff]
        %v1537 = vld [vmem:[%s1065 + $0xaf0] sm:$0xff]
        %v1538 = vld [vmem:[%s1065 + $0xaf8] sm:$0xff]
        %v1539 = vld [vmem:[%s1065 + $0xb00] sm:$0xff]
        %v1540 = vld [vmem:[%s1065 + $0xb08] sm:$0xff]
        %v1541 = vld [vmem:[%s1065 + $0xb10] sm:$0xff]
        %v1542 = vld [vmem:[%s1065 + $0xb18] sm:$0xff]
        %v1543 = vld [vmem:[%s1065 + $0xb20] sm:$0xff]
        %v1544 = vld [vmem:[%s1065 + $0xb28] sm:$0xff]
        %v1545 = vld [vmem:[%s1065 + $0xb30] sm:$0xff]
        %v1546 = vld [vmem:[%s1065 + $0xb38] sm:$0xff]
        %v1547 = vld [vmem:[%s1065 + $0xb40] sm:$0xff]
        %v1548 = vld [vmem:[%s1065 + $0xb48] sm:$0xff]
        %v1549 = vld [vmem:[%s1065 + $0xb50] sm:$0xff]
        %v1550 = vld [vmem:[%s1065 + $0xb58] sm:$0xff]
        %v1551 = vld [vmem:[%s1065 + $0xb60] sm:$0xff]
        %v1552 = vld [vmem:[%s1065 + $0xb68] sm:$0xff]
        %v1553 = vld [vmem:[%s1065 + $0xb70] sm:$0xff]
        %v1554 = vld [vmem:[%s1065 + $0xb78] sm:$0xff]
        %v1555 = vld [vmem:[%s1065 + $0xb80] sm:$0xff]
        %v1556 = vld [vmem:[%s1065 + $0xb88] sm:$0xff]
        %v1557 = vld [vmem:[%s1065 + $0xb90] sm:$0xff]
        %v1558 = vld [vmem:[%s1065 + $0xb98] sm:$0xff]
        %v1559 = vld [vmem:[%s1065 + $0xba0] sm:$0xff]
        %v1560 = vld [vmem:[%s1065 + $0xba8] sm:$0xff]
        %v1561 = vld [vmem:[%s1065 + $0xbb0] sm:$0xff]
        %v1562 = vld [vmem:[%s1065 + $0xbb8] sm:$0xff]
        %v1563 = vld [vmem:[%s1065 + $0xbc0] sm:$0xff]
        %v1564 = vld [vmem:[%s1065 + $0xbc8] sm:$0xff]
        %v1565 = vld [vmem:[%s1065 + $0xbd0] sm:$0xff]
        %v1566 = vld [vmem:[%s1065 + $0xbd8] sm:$0xff]
        %v1567 = vld [vmem:[%s1065 + $0xbe0] sm:$0xff]
        %v1568 = vld [vmem:[%s1065 + $0xbe8] sm:$0xff]
        %v1569 = vld [vmem:[%s1065 + $0xbf0] sm:$0xff]
        %v1570 = vld [vmem:[%s1065 + $0xbf8] sm:$0xff]
        %v1573 = vcombine.high %v1185, %v1185
        %v1575 = vunpack.c.l.s4 1983009808
        %v1576 = vunpack.c.0.s8 %v1575
        %v1577 = vlaneseq
        %v1578 = vshrl.u32 %v1577, 7
        %v1579 = vsub.s32 %v1576, %v1578
        %v1580 = vrot.slane %v1185, %v1579
        %v1582 = vunpack.c.l.s4 1983009808
        %v1583 = vunpack.c.0.s8 %v1582
        %v1584 = vlaneseq
        %v1585 = vshrl.u32 %v1584, 7
        %v1586 = vsub.s32 %v1583, %v1585
        %v1587 = vrot.slane %v1573, %v1586
        %v1588 = vcombine.high %v1580, %v1580
        %v1589 = vcombine.high %v1587, %v1587
        %v1591 = vunpack.c.l.s4 1983009808
        %v1592 = vunpack.c.0.s8 %v1591
        %v1593 = vlaneseq
        %v1594 = vshrl.u32 %v1593, 7
        %v1595 = vsub.s32 %v1592, %v1594
        %v1596 = vrot.slane %v1186, %v1595
        %v1597 = vcombine.high %v1596, %v1596
        %1604 = vmatprep.subr.mxu0 %v1248
        %1605 = vmatpush1.msra.mxu0 %v1247
        %1606 = vmatprep.subr.mxu0 %v1244
        %1607 = vmatpush1.msra.mxu0 %v1243
        %1608 = vmatprep.subr.mxu0 %v1240
        %1609 = vmatpush1.msra.mxu0 %v1239
        %1610 = vmatprep.subr.mxu0 %v1236
        %1611 = vmatpush1.msra.mxu0 %v1235
        %1612 = vmatprep.subr.mxu0 %v1232
        %1613 = vmatpush1.msra.mxu0 %v1231
        %1614 = vmatprep.subr.mxu0 %v1228
        %1615 = vmatpush1.msra.mxu0 %v1227
        %1616 = vmatprep.subr.mxu0 %v1224
        %1617 = vmatpush1.msra.mxu0 %v1223
        %1618 = vmatprep.subr.mxu0 %v1220
        %1619 = vmatpush1.msra.mxu0 %v1219
        %1620 = vmatprep.subr.mxu0 %v1216
        %1621 = vmatpush1.msra.mxu0 %v1215
        %1622 = vmatprep.subr.mxu0 %v1212
        %1623 = vmatpush1.msra.mxu0 %v1211
        %1624 = vmatprep.subr.mxu0 %v1208
        %1625 = vmatpush1.msra.mxu0 %v1207
        %1626 = vmatprep.subr.mxu0 %v1204
        %1627 = vmatpush1.msra.mxu0 %v1203
        %1628 = vmatprep.subr.mxu0 %v1200
        %1629 = vmatpush1.msra.mxu0 %v1199
        %1630 = vmatprep.subr.mxu0 %v1196
        %1631 = vmatpush1.msra.mxu0 %v1195
        %1632 = vmatprep.subr.mxu0 %v1192
        %1633 = vmatpush1.msra.mxu0 %v1191
        %1634 = vmatprep.subr.mxu0 %v1188
        %1635 = vmatpush1.msra.mxu0 %v1187
        %1636 = vmatprep.subr.mxu0 %v1312
        %1637 = vmatpush2.msra.mxu0 %v1311
        %1638 = vmatprep.subr.mxu0 %v1308
        %1639 = vmatpush2.msra.mxu0 %v1307
        %1640 = vmatprep.subr.mxu0 %v1304
        %1641 = vmatpush2.msra.mxu0 %v1303
        %1642 = vmatprep.subr.mxu0 %v1300
        %1643 = vmatpush2.msra.mxu0 %v1299
        %1644 = vmatprep.subr.mxu0 %v1296
        %1645 = vmatpush2.msra.mxu0 %v1295
        %1646 = vmatprep.subr.mxu0 %v1292
        %1647 = vmatpush2.msra.mxu0 %v1291
        %1648 = vmatprep.subr.mxu0 %v1288
        %1649 = vmatpush2.msra.mxu0 %v1287
        %1650 = vmatprep.subr.mxu0 %v1284
        %1651 = vmatpush2.msra.mxu0 %v1283
        %1652 = vmatprep.subr.mxu0 %v1280
        %1653 = vmatpush2.msra.mxu0 %v1279
        %1654 = vmatprep.subr.mxu0 %v1276
        %1655 = vmatpush2.msra.mxu0 %v1275
        %1656 = vmatprep.subr.mxu0 %v1272
        %1657 = vmatpush2.msra.mxu0 %v1271
        %1658 = vmatprep.subr.mxu0 %v1268
        %1659 = vmatpush2.msra.mxu0 %v1267
        %1660 = vmatprep.subr.mxu0 %v1264
        %1661 = vmatpush2.msra.mxu0 %v1263
        %1662 = vmatprep.subr.mxu0 %v1260
        %1663 = vmatpush2.msra.mxu0 %v1259
        %1664 = vmatprep.subr.mxu0 %v1256
        %1665 = vmatpush2.msra.mxu0 %v1255
        %1666 = vmatprep.subr.mxu0 %v1252
        %1667 = vmatpush2.msra.mxu0 %v1251
        %1668 = vmatprep.mubr.f32.mxu0 %v1588
        %1669 = vmatmul.mubr.f32.gmra.mxu0 %v1580
        %v1670 = vpop.f32.mrf.mxu0
        %v1671 = vadd.f32 0.0, %v1670
        %v1672 = vpop.f32.mrf.mxu0
        %v1673 = vadd.f32 0.0, %v1672
        %1674 = vdwg.mxu0
        %1675 = vmatprep.subr.mxu0 %v1376
        %1676 = vmatpush1.msra.mxu0 %v1375
        %1677 = vmatprep.subr.mxu0 %v1372
        %1678 = vmatpush1.msra.mxu0 %v1371
        %1679 = vmatprep.subr.mxu0 %v1368
        %1680 = vmatpush1.msra.mxu0 %v1367
        %1681 = vmatprep.subr.mxu0 %v1364
        %1682 = vmatpush1.msra.mxu0 %v1363
        %1683 = vmatprep.subr.mxu0 %v1360
        %1684 = vmatpush1.msra.mxu0 %v1359
        %1685 = vmatprep.subr.mxu0 %v1356
        %1686 = vmatpush1.msra.mxu0 %v1355
        %1687 = vmatprep.subr.mxu0 %v1352
        %1688 = vmatpush1.msra.mxu0 %v1351
        %1689 = vmatprep.subr.mxu0 %v1348
        %1690 = vmatpush1.msra.mxu0 %v1347
        %1691 = vmatprep.subr.mxu0 %v1344
        %1692 = vmatpush1.msra.mxu0 %v1343
        %1693 = vmatprep.subr.mxu0 %v1340
        %1694 = vmatpush1.msra.mxu0 %v1339
        %1695 = vmatprep.subr.mxu0 %v1336
        %1696 = vmatpush1.msra.mxu0 %v1335
        %1697 = vmatprep.subr.mxu0 %v1332
        %1698 = vmatpush1.msra.mxu0 %v1331
        %1699 = vmatprep.subr.mxu0 %v1328
        %1700 = vmatpush1.msra.mxu0 %v1327
        %1701 = vmatprep.subr.mxu0 %v1324
        %1702 = vmatpush1.msra.mxu0 %v1323
        %1703 = vmatprep.subr.mxu0 %v1320
        %1704 = vmatpush1.msra.mxu0 %v1319
        %1705 = vmatprep.subr.mxu0 %v1316
        %1706 = vmatpush1.msra.mxu0 %v1315
        %1707 = vmatprep.subr.mxu0 %v1440
        %1708 = vmatpush2.msra.mxu0 %v1439
        %1709 = vmatprep.subr.mxu0 %v1436
        %1710 = vmatpush2.msra.mxu0 %v1435
        %1711 = vmatprep.subr.mxu0 %v1432
        %1712 = vmatpush2.msra.mxu0 %v1431
        %1713 = vmatprep.subr.mxu0 %v1428
        %1714 = vmatpush2.msra.mxu0 %v1427
        %1715 = vmatprep.subr.mxu0 %v1424
        %1716 = vmatpush2.msra.mxu0 %v1423
        %1717 = vmatprep.subr.mxu0 %v1420
        %1718 = vmatpush2.msra.mxu0 %v1419
        %1719 = vmatprep.subr.mxu0 %v1416
        %1720 = vmatpush2.msra.mxu0 %v1415
        %1721 = vmatprep.subr.mxu0 %v1412
        %1722 = vmatpush2.msra.mxu0 %v1411
        %1723 = vmatprep.subr.mxu0 %v1408
        %1724 = vmatpush2.msra.mxu0 %v1407
        %1725 = vmatprep.subr.mxu0 %v1404
        %1726 = vmatpush2.msra.mxu0 %v1403
        %1727 = vmatprep.subr.mxu0 %v1400
        %1728 = vmatpush2.msra.mxu0 %v1399
        %1729 = vmatprep.subr.mxu0 %v1396
        %1730 = vmatpush2.msra.mxu0 %v1395
        %1731 = vmatprep.subr.mxu0 %v1392
        %1732 = vmatpush2.msra.mxu0 %v1391
        %1733 = vmatprep.subr.mxu0 %v1388
        %1734 = vmatpush2.msra.mxu0 %v1387
        %1735 = vmatprep.subr.mxu0 %v1384
        %1736 = vmatpush2.msra.mxu0 %v1383
        %1737 = vmatprep.subr.mxu0 %v1380
        %1738 = vmatpush2.msra.mxu0 %v1379
        %1739 = vmatprep.mubr.f32.mxu0 %v1589
        %1740 = vmatmul.mubr.f32.gmra.mxu0 %v1587
        %v1741 = vpop.f32.mrf.mxu0
        %v1742 = vadd.f32 %v1671, %v1741
        %v1743 = vpop.f32.mrf.mxu0
        %v1744 = vadd.f32 %v1673, %v1743
        %1745 = vdwg.mxu0
        %1746 = vmatprep.subr.mxu0 %v1504
        %1747 = vmatpush1.msra.mxu0 %v1503
        %1748 = vmatprep.subr.mxu0 %v1500
        %1749 = vmatpush1.msra.mxu0 %v1499
        %1750 = vmatprep.subr.mxu0 %v1496
        %1751 = vmatpush1.msra.mxu0 %v1495
        %1752 = vmatprep.subr.mxu0 %v1492
        %1753 = vmatpush1.msra.mxu0 %v1491
        %1754 = vmatprep.subr.mxu0 %v1488
        %1755 = vmatpush1.msra.mxu0 %v1487
        %1756 = vmatprep.subr.mxu0 %v1484
        %1757 = vmatpush1.msra.mxu0 %v1483
        %1758 = vmatprep.subr.mxu0 %v1480
        %1759 = vmatpush1.msra.mxu0 %v1479
        %1760 = vmatprep.subr.mxu0 %v1476
        %1761 = vmatpush1.msra.mxu0 %v1475
        %1762 = vmatprep.subr.mxu0 %v1472
        %1763 = vmatpush1.msra.mxu0 %v1471
        %1764 = vmatprep.subr.mxu0 %v1468
        %1765 = vmatpush1.msra.mxu0 %v1467
        %1766 = vmatprep.subr.mxu0 %v1464
        %1767 = vmatpush1.msra.mxu0 %v1463
        %1768 = vmatprep.subr.mxu0 %v1460
        %1769 = vmatpush1.msra.mxu0 %v1459
        %1770 = vmatprep.subr.mxu0 %v1456
        %1771 = vmatpush1.msra.mxu0 %v1455
        %1772 = vmatprep.subr.mxu0 %v1452
        %1773 = vmatpush1.msra.mxu0 %v1451
        %1774 = vmatprep.subr.mxu0 %v1448
        %1775 = vmatpush1.msra.mxu0 %v1447
        %1776 = vmatprep.subr.mxu0 %v1444
        %1777 = vmatpush1.msra.mxu0 %v1443
        %1778 = vmatprep.subr.mxu0 %v1568
        %1779 = vmatpush2.msra.mxu0 %v1567
        %1780 = vmatprep.subr.mxu0 %v1564
        %1781 = vmatpush2.msra.mxu0 %v1563
        %1782 = vmatprep.subr.mxu0 %v1560
        %1783 = vmatpush2.msra.mxu0 %v1559
        %1784 = vmatprep.subr.mxu0 %v1556
        %1785 = vmatpush2.msra.mxu0 %v1555
        %1786 = vmatprep.subr.mxu0 %v1552
        %1787 = vmatpush2.msra.mxu0 %v1551
        %1788 = vmatprep.subr.mxu0 %v1548
        %1789 = vmatpush2.msra.mxu0 %v1547
        %1790 = vmatprep.subr.mxu0 %v1544
        %1791 = vmatpush2.msra.mxu0 %v1543
        %1792 = vmatprep.subr.mxu0 %v1540
        %1793 = vmatpush2.msra.mxu0 %v1539
        %1794 = vmatprep.subr.mxu0 %v1536
        %1795 = vmatpush2.msra.mxu0 %v1535
        %1796 = vmatprep.subr.mxu0 %v1532
        %1797 = vmatpush2.msra.mxu0 %v1531
        %1798 = vmatprep.subr.mxu0 %v1528
        %1799 = vmatpush2.msra.mxu0 %v1527
        %1800 = vmatprep.subr.mxu0 %v1524
        %1801 = vmatpush2.msra.mxu0 %v1523
        %1802 = vmatprep.subr.mxu0 %v1520
        %1803 = vmatpush2.msra.mxu0 %v1519
        %1804 = vmatprep.subr.mxu0 %v1516
        %1805 = vmatpush2.msra.mxu0 %v1515
        %1806 = vmatprep.subr.mxu0 %v1512
        %1807 = vmatpush2.msra.mxu0 %v1511
        %1808 = vmatprep.subr.mxu0 %v1508
        %1809 = vmatpush2.msra.mxu0 %v1507
        %1810 = vmatprep.mubr.f32.mxu0 %v1597
        %1811 = vmatmul.mubr.f32.gmra.mxu0 %v1596
        %v1812 = vpop.f32.mrf.mxu0
        %v1813 = vadd.f32 %v1742, %v1812
        %v1814 = vpop.f32.mrf.mxu0
        %v1815 = vadd.f32 %v1744, %v1814
        %1816 = vdwg.mxu0
        %1817 = vmatprep.subr.mxu0 %v1250
        %1818 = vmatpush1.msra.mxu0 %v1249
        %1819 = vmatprep.subr.mxu0 %v1246
        %1820 = vmatpush1.msra.mxu0 %v1245
        %1821 = vmatprep.subr.mxu0 %v1242
        %1822 = vmatpush1.msra.mxu0 %v1241
        %1823 = vmatprep.subr.mxu0 %v1238
        %1824 = vmatpush1.msra.mxu0 %v1237
        %1825 = vmatprep.subr.mxu0 %v1234
        %1826 = vmatpush1.msra.mxu0 %v1233
        %1827 = vmatprep.subr.mxu0 %v1230
        %1828 = vmatpush1.msra.mxu0 %v1229
        %1829 = vmatprep.subr.mxu0 %v1226
        %1830 = vmatpush1.msra.mxu0 %v1225
        %1831 = vmatprep.subr.mxu0 %v1222
        %1832 = vmatpush1.msra.mxu0 %v1221
        %1833 = vmatprep.subr.mxu0 %v1218
        %1834 = vmatpush1.msra.mxu0 %v1217
        %1835 = vmatprep.subr.mxu0 %v1214
        %1836 = vmatpush1.msra.mxu0 %v1213
        %1837 = vmatprep.subr.mxu0 %v1210
        %1838 = vmatpush1.msra.mxu0 %v1209
        %1839 = vmatprep.subr.mxu0 %v1206
        %1840 = vmatpush1.msra.mxu0 %v1205
        %1841 = vmatprep.subr.mxu0 %v1202
        %1842 = vmatpush1.msra.mxu0 %v1201
        %1843 = vmatprep.subr.mxu0 %v1198
        %1844 = vmatpush1.msra.mxu0 %v1197
        %1845 = vmatprep.subr.mxu0 %v1194
        %1846 = vmatpush1.msra.mxu0 %v1193
        %1847 = vmatprep.subr.mxu0 %v1190
        %1848 = vmatpush1.msra.mxu0 %v1189
        %1849 = vmatprep.subr.mxu0 %v1314
        %1850 = vmatpush2.msra.mxu0 %v1313
        %1851 = vmatprep.subr.mxu0 %v1310
        %1852 = vmatpush2.msra.mxu0 %v1309
        %1853 = vmatprep.subr.mxu0 %v1306
        %1854 = vmatpush2.msra.mxu0 %v1305
        %1855 = vmatprep.subr.mxu0 %v1302
        %1856 = vmatpush2.msra.mxu0 %v1301
        %1857 = vmatprep.subr.mxu0 %v1298
        %1858 = vmatpush2.msra.mxu0 %v1297
        %1859 = vmatprep.subr.mxu0 %v1294
        %1860 = vmatpush2.msra.mxu0 %v1293
        %1861 = vmatprep.subr.mxu0 %v1290
        %1862 = vmatpush2.msra.mxu0 %v1289
        %1863 = vmatprep.subr.mxu0 %v1286
        %1864 = vmatpush2.msra.mxu0 %v1285
        %1865 = vmatprep.subr.mxu0 %v1282
        %1866 = vmatpush2.msra.mxu0 %v1281
        %1867 = vmatprep.subr.mxu0 %v1278
        %1868 = vmatpush2.msra.mxu0 %v1277
        %1869 = vmatprep.subr.mxu0 %v1274
        %1870 = vmatpush2.msra.mxu0 %v1273
        %1871 = vmatprep.subr.mxu0 %v1270
        %1872 = vmatpush2.msra.mxu0 %v1269
        %1873 = vmatprep.subr.mxu0 %v1266
        %1874 = vmatpush2.msra.mxu0 %v1265
        %1875 = vmatprep.subr.mxu0 %v1262
        %1876 = vmatpush2.msra.mxu0 %v1261
        %1877 = vmatprep.subr.mxu0 %v1258
        %1878 = vmatpush2.msra.mxu0 %v1257
        %1879 = vmatprep.subr.mxu0 %v1254
        %1880 = vmatpush2.msra.mxu0 %v1253
        %1881 = vmatprep.mubr.f32.mxu0 %v1588
        %1882 = vmatmul.mubr.f32.gmra.mxu0 %v1580
        %v1883 = vpop.f32.mrf.mxu0
        %v1884 = vadd.f32 0.0, %v1883
        %v1885 = vpop.f32.mrf.mxu0
        %v1886 = vadd.f32 0.0, %v1885
        %1887 = vdwg.mxu0
        %1888 = vmatprep.subr.mxu0 %v1378
        %1889 = vmatpush1.msra.mxu0 %v1377
        %1890 = vmatprep.subr.mxu0 %v1374
        %1891 = vmatpush1.msra.mxu0 %v1373
        %1892 = vmatprep.subr.mxu0 %v1370
        %1893 = vmatpush1.msra.mxu0 %v1369
        %1894 = vmatprep.subr.mxu0 %v1366
        %1895 = vmatpush1.msra.mxu0 %v1365
        %1896 = vmatprep.subr.mxu0 %v1362
        %1897 = vmatpush1.msra.mxu0 %v1361
        %1898 = vmatprep.subr.mxu0 %v1358
        %1899 = vmatpush1.msra.mxu0 %v1357
        %1900 = vmatprep.subr.mxu0 %v1354
        %1901 = vmatpush1.msra.mxu0 %v1353
        %1902 = vmatprep.subr.mxu0 %v1350
        %1903 = vmatpush1.msra.mxu0 %v1349
        %1904 = vmatprep.subr.mxu0 %v1346
        %1905 = vmatpush1.msra.mxu0 %v1345
        %1906 = vmatprep.subr.mxu0 %v1342
        %1907 = vmatpush1.msra.mxu0 %v1341
        %1908 = vmatprep.subr.mxu0 %v1338
        %1909 = vmatpush1.msra.mxu0 %v1337
        %1910 = vmatprep.subr.mxu0 %v1334
        %1911 = vmatpush1.msra.mxu0 %v1333
        %1912 = vmatprep.subr.mxu0 %v1330
        %1913 = vmatpush1.msra.mxu0 %v1329
        %1914 = vmatprep.subr.mxu0 %v1326
        %1915 = vmatpush1.msra.mxu0 %v1325
        %1916 = vmatprep.subr.mxu0 %v1322
        %1917 = vmatpush1.msra.mxu0 %v1321
        %1918 = vmatprep.subr.mxu0 %v1318
        %1919 = vmatpush1.msra.mxu0 %v1317
        %1920 = vmatprep.subr.mxu0 %v1442
        %1921 = vmatpush2.msra.mxu0 %v1441
        %1922 = vmatprep.subr.mxu0 %v1438
        %1923 = vmatpush2.msra.mxu0 %v1437
        %1924 = vmatprep.subr.mxu0 %v1434
        %1925 = vmatpush2.msra.mxu0 %v1433
        %1926 = vmatprep.subr.mxu0 %v1430
        %1927 = vmatpush2.msra.mxu0 %v1429
        %1928 = vmatprep.subr.mxu0 %v1426
        %1929 = vmatpush2.msra.mxu0 %v1425
        %1930 = vmatprep.subr.mxu0 %v1422
        %1931 = vmatpush2.msra.mxu0 %v1421
        %1932 = vmatprep.subr.mxu0 %v1418
        %1933 = vmatpush2.msra.mxu0 %v1417
        %1934 = vmatprep.subr.mxu0 %v1414
        %1935 = vmatpush2.msra.mxu0 %v1413
        %1936 = vmatprep.subr.mxu0 %v1410
        %1937 = vmatpush2.msra.mxu0 %v1409
        %1938 = vmatprep.subr.mxu0 %v1406
        %1939 = vmatpush2.msra.mxu0 %v1405
        %1940 = vmatprep.subr.mxu0 %v1402
        %1941 = vmatpush2.msra.mxu0 %v1401
        %1942 = vmatprep.subr.mxu0 %v1398
        %1943 = vmatpush2.msra.mxu0 %v1397
        %1944 = vmatprep.subr.mxu0 %v1394
        %1945 = vmatpush2.msra.mxu0 %v1393
        %1946 = vmatprep.subr.mxu0 %v1390
        %1947 = vmatpush2.msra.mxu0 %v1389
        %1948 = vmatprep.subr.mxu0 %v1386
        %1949 = vmatpush2.msra.mxu0 %v1385
        %1950 = vmatprep.subr.mxu0 %v1382
        %1951 = vmatpush2.msra.mxu0 %v1381
        %1952 = vmatprep.mubr.f32.mxu0 %v1589
        %1953 = vmatmul.mubr.f32.gmra.mxu0 %v1587
        %v1954 = vpop.f32.mrf.mxu0
        %v1955 = vadd.f32 %v1884, %v1954
        %v1956 = vpop.f32.mrf.mxu0
        %v1957 = vadd.f32 %v1886, %v1956
        %1958 = vdwg.mxu0
        %1959 = vmatprep.subr.mxu0 %v1506
        %1960 = vmatpush1.msra.mxu0 %v1505
        %1961 = vmatprep.subr.mxu0 %v1502
        %1962 = vmatpush1.msra.mxu0 %v1501
        %1963 = vmatprep.subr.mxu0 %v1498
        %1964 = vmatpush1.msra.mxu0 %v1497
        %1965 = vmatprep.subr.mxu0 %v1494
        %1966 = vmatpush1.msra.mxu0 %v1493
        %1967 = vmatprep.subr.mxu0 %v1490
        %1968 = vmatpush1.msra.mxu0 %v1489
        %1969 = vmatprep.subr.mxu0 %v1486
        %1970 = vmatpush1.msra.mxu0 %v1485
        %1971 = vmatprep.subr.mxu0 %v1482
        %1972 = vmatpush1.msra.mxu0 %v1481
        %1973 = vmatprep.subr.mxu0 %v1478
        %1974 = vmatpush1.msra.mxu0 %v1477
        %1975 = vmatprep.subr.mxu0 %v1474
        %1976 = vmatpush1.msra.mxu0 %v1473
        %1977 = vmatprep.subr.mxu0 %v1470
        %1978 = vmatpush1.msra.mxu0 %v1469
        %1979 = vmatprep.subr.mxu0 %v1466
        %1980 = vmatpush1.msra.mxu0 %v1465
        %1981 = vmatprep.subr.mxu0 %v1462
        %1982 = vmatpush1.msra.mxu0 %v1461
        %1983 = vmatprep.subr.mxu0 %v1458
        %1984 = vmatpush1.msra.mxu0 %v1457
        %1985 = vmatprep.subr.mxu0 %v1454
        %1986 = vmatpush1.msra.mxu0 %v1453
        %1987 = vmatprep.subr.mxu0 %v1450
        %1988 = vmatpush1.msra.mxu0 %v1449
        %1989 = vmatprep.subr.mxu0 %v1446
        %1990 = vmatpush1.msra.mxu0 %v1445
        %1991 = vmatprep.subr.mxu0 %v1570
        %1992 = vmatpush2.msra.mxu0 %v1569
        %1993 = vmatprep.subr.mxu0 %v1566
        %1994 = vmatpush2.msra.mxu0 %v1565
        %1995 = vmatprep.subr.mxu0 %v1562
        %1996 = vmatpush2.msra.mxu0 %v1561
        %1997 = vmatprep.subr.mxu0 %v1558
        %1998 = vmatpush2.msra.mxu0 %v1557
        %1999 = vmatprep.subr.mxu0 %v1554
        %2000 = vmatpush2.msra.mxu0 %v1553
        %2001 = vmatprep.subr.mxu0 %v1550
        %2002 = vmatpush2.msra.mxu0 %v1549
        %2003 = vmatprep.subr.mxu0 %v1546
        %2004 = vmatpush2.msra.mxu0 %v1545
        %2005 = vmatprep.subr.mxu0 %v1542
        %2006 = vmatpush2.msra.mxu0 %v1541
        %2007 = vmatprep.subr.mxu0 %v1538
        %2008 = vmatpush2.msra.mxu0 %v1537
        %2009 = vmatprep.subr.mxu0 %v1534
        %2010 = vmatpush2.msra.mxu0 %v1533
        %2011 = vmatprep.subr.mxu0 %v1530
        %2012 = vmatpush2.msra.mxu0 %v1529
        %2013 = vmatprep.subr.mxu0 %v1526
        %2014 = vmatpush2.msra.mxu0 %v1525
        %2015 = vmatprep.subr.mxu0 %v1522
        %2016 = vmatpush2.msra.mxu0 %v1521
        %2017 = vmatprep.subr.mxu0 %v1518
        %2018 = vmatpush2.msra.mxu0 %v1517
        %2019 = vmatprep.subr.mxu0 %v1514
        %2020 = vmatpush2.msra.mxu0 %v1513
        %2021 = vmatprep.subr.mxu0 %v1510
        %2022 = vmatpush2.msra.mxu0 %v1509
        %2023 = vmatprep.mubr.f32.mxu0 %v1597
        %2024 = vmatmul.mubr.f32.gmra.mxu0 %v1596
        %v2025 = vpop.f32.mrf.mxu0
        %v2026 = vadd.f32 %v1955, %v2025
        %v2027 = vpop.f32.mrf.mxu0
        %v2028 = vadd.f32 %v1957, %v2027
        %2029 = vdwg.mxu0
        %v2034 = vcombine.low %v1813, %v1815
        %v2035 = vcombine.low %v2026, %v2028
        %v2037 = vunpack.c.l.s4 1983009808
        %v2038 = vunpack.c.0.s8 %v2037
        %v2039 = vlaneseq
        %v2040 = vshrl.u32 %v2039, 7
        %v2041 = vsub.s32 %v2038, %v2040
        %v2042 = vrot.slane %v2034, %v2041
        %v2044 = vunpack.c.l.s4 1983009808
        %v2045 = vunpack.c.0.s8 %v2044
        %v2046 = vlaneseq
        %v2047 = vshrl.u32 %v2046, 7
        %v2048 = vsub.s32 %v2045, %v2047
        %v2049 = vrot.slane %v2035, %v2048
        %v2050 = vcombine.low %v2042, %v2049
        %v2052 = vadd.f32 %v1184, %v2050
        %2053 = vst [vmem:[%s1138] sm:$0xff] %v2052
        // Predicated region
        $region68: #{net4ht_forward.9} parent=58 // pred_check
          %p2054 = pneg %p1143
        $region69: #{net4ht_forward.9} parent=58 // pred_check_branch
          %2056 = sbr.rel (%p2054) target = $region71
        $region70: #{net4ht_forward.9} parent=58 // pred_region
          %v2057 = vld [vmem:[%s1138] sm:$0xff]
          %v2058 = vld [vmem:[%s1130] sm:$0xff]
          %v2059 = vld [vmem:[%s1130 + $0x8] sm:$0xff]
          %v2060 = vld [vmem:[%s1130 + $0x10] sm:$0xff]
          %v2061 = vld [vmem:[%s1130 + $0x18] sm:$0xff]
          %v2062 = vld [vmem:[%s1130 + $0x20] sm:$0xff]
          %v2063 = vld [vmem:[%s1130 + $0x28] sm:$0xff]
          %v2064 = vld [vmem:[%s1130 + $0x30] sm:$0xff]
          %v2065 = vld [vmem:[%s1130 + $0x38] sm:$0xff]
          %v2066 = vld [vmem:[%s1130 + $0x40] sm:$0xff]
          %v2067 = vld [vmem:[%s1130 + $0x48] sm:$0xff]
          %v2068 = vld [vmem:[%s1130 + $0x50] sm:$0xff]
          %v2069 = vld [vmem:[%s1130 + $0x58] sm:$0xff]
          %v2070 = vld [vmem:[%s1130 + $0x60] sm:$0xff]
          %v2071 = vld [vmem:[%s1130 + $0x68] sm:$0xff]
          %v2072 = vld [vmem:[%s1130 + $0x70] sm:$0xff]
          %v2073 = vld [vmem:[%s1130 + $0x78] sm:$0xff]
          %v2074 = vld [vmem:[%s1130 + $0x80] sm:$0xff]
          %v2075 = vld [vmem:[%s1130 + $0x88] sm:$0xff]
          %v2076 = vld [vmem:[%s1130 + $0x90] sm:$0xff]
          %v2077 = vld [vmem:[%s1130 + $0x98] sm:$0xff]
          %v2078 = vld [vmem:[%s1130 + $0xa0] sm:$0xff]
          %v2079 = vld [vmem:[%s1130 + $0xa8] sm:$0xff]
          %v2080 = vld [vmem:[%s1130 + $0xb0] sm:$0xff]
          %v2081 = vld [vmem:[%s1130 + $0xb8] sm:$0xff]
          %v2082 = vld [vmem:[%s1130 + $0xc0] sm:$0xff]
          %v2083 = vld [vmem:[%s1130 + $0xc8] sm:$0xff]
          %v2084 = vld [vmem:[%s1130 + $0xd0] sm:$0xff]
          %v2085 = vld [vmem:[%s1130 + $0xd8] sm:$0xff]
          %v2086 = vld [vmem:[%s1130 + $0xe0] sm:$0xff]
          %v2087 = vld [vmem:[%s1130 + $0xe8] sm:$0xff]
          %v2088 = vld [vmem:[%s1130 + $0xf0] sm:$0xff]
          %v2089 = vld [vmem:[%s1130 + $0xf8] sm:$0xff]
          %v2090 = vld [vmem:[%s1130 + $0x100] sm:$0xff]
          %v2091 = vld [vmem:[%s1130 + $0x108] sm:$0xff]
          %v2092 = vld [vmem:[%s1130 + $0x110] sm:$0xff]
          %v2093 = vld [vmem:[%s1130 + $0x118] sm:$0xff]
          %v2094 = vld [vmem:[%s1130 + $0x120] sm:$0xff]
          %v2095 = vld [vmem:[%s1130 + $0x128] sm:$0xff]
          %v2096 = vld [vmem:[%s1130 + $0x130] sm:$0xff]
          %v2097 = vld [vmem:[%s1130 + $0x138] sm:$0xff]
          %v2098 = vld [vmem:[%s1130 + $0x140] sm:$0xff]
          %v2099 = vld [vmem:[%s1130 + $0x148] sm:$0xff]
          %v2100 = vld [vmem:[%s1130 + $0x150] sm:$0xff]
          %v2101 = vld [vmem:[%s1130 + $0x158] sm:$0xff]
          %v2102 = vld [vmem:[%s1130 + $0x160] sm:$0xff]
          %v2103 = vld [vmem:[%s1130 + $0x168] sm:$0xff]
          %v2104 = vld [vmem:[%s1130 + $0x170] sm:$0xff]
          %v2105 = vld [vmem:[%s1130 + $0x178] sm:$0xff]
          %v2106 = vld [vmem:[%s1130 + $0x180] sm:$0xff]
          %v2107 = vld [vmem:[%s1130 + $0x188] sm:$0xff]
          %v2108 = vld [vmem:[%s1130 + $0x190] sm:$0xff]
          %v2109 = vld [vmem:[%s1130 + $0x198] sm:$0xff]
          %v2110 = vld [vmem:[%s1130 + $0x1a0] sm:$0xff]
          %v2111 = vld [vmem:[%s1130 + $0x1a8] sm:$0xff]
          %v2112 = vld [vmem:[%s1130 + $0x1b0] sm:$0xff]
          %v2113 = vld [vmem:[%s1130 + $0x1b8] sm:$0xff]
          %v2114 = vld [vmem:[%s1130 + $0x1c0] sm:$0xff]
          %v2115 = vld [vmem:[%s1130 + $0x1c8] sm:$0xff]
          %v2116 = vld [vmem:[%s1130 + $0x1d0] sm:$0xff]
          %v2117 = vld [vmem:[%s1130 + $0x1d8] sm:$0xff]
          %v2118 = vld [vmem:[%s1130 + $0x1e0] sm:$0xff]
          %v2119 = vld [vmem:[%s1130 + $0x1e8] sm:$0xff]
          %v2120 = vld [vmem:[%s1130 + $0x1f0] sm:$0xff]
          %v2121 = vld [vmem:[%s1130 + $0x1f8] sm:$0xff]
          %v2122 = vld [vmem:[%s1133] sm:$0x1]
          %v2124 = vlaneseq
          %v2125 = vshrl.u32 %v2124, 7
          %v2126 = vsub.s32 0, %v2125
          %v2127 = vrot.slane %v2122, %v2126
          %v2130 = vcombine.high %v2057, %v2057
          %v2132 = vunpack.c.l.s4 1983009808
          %v2133 = vunpack.c.0.s8 %v2132
          %v2134 = vlaneseq
          %v2135 = vshrl.u32 %v2134, 7
          %v2136 = vsub.s32 %v2133, %v2135
          %v2137 = vrot.slane %v2057, %v2136
          %v2139 = vunpack.c.l.s4 1983009808
          %v2140 = vunpack.c.0.s8 %v2139
          %v2141 = vlaneseq
          %v2142 = vshrl.u32 %v2141, 7
          %v2143 = vsub.s32 %v2140, %v2142
          %v2144 = vrot.slane %v2130, %v2143
          %v2145 = vcombine.high %v2137, %v2137
          %v2146 = vcombine.high %v2144, %v2144
          %2151 = vmatprep.subr.mxu0 0.0
          %2152 = vmatpush1.msra.mxu0 %v2073
          %2153 = vmatprep.subr.mxu0 0.0
          %2154 = vmatpush1.msra.mxu0 %v2072
          %2155 = vmatprep.subr.mxu0 0.0
          %2156 = vmatpush1.msra.mxu0 %v2071
          %2157 = vmatprep.subr.mxu0 0.0
          %2158 = vmatpush1.msra.mxu0 %v2070
          %2159 = vmatprep.subr.mxu0 0.0
          %2160 = vmatpush1.msra.mxu0 %v2069
          %2161 = vmatprep.subr.mxu0 0.0
          %2162 = vmatpush1.msra.mxu0 %v2068
          %2163 = vmatprep.subr.mxu0 0.0
          %2164 = vmatpush1.msra.mxu0 %v2067
          %2165 = vmatprep.subr.mxu0 0.0
          %2166 = vmatpush1.msra.mxu0 %v2066
          %2167 = vmatprep.subr.mxu0 0.0
          %2168 = vmatpush1.msra.mxu0 %v2065
          %2169 = vmatprep.subr.mxu0 0.0
          %2170 = vmatpush1.msra.mxu0 %v2064
          %2171 = vmatprep.subr.mxu0 0.0
          %2172 = vmatpush1.msra.mxu0 %v2063
          %2173 = vmatprep.subr.mxu0 0.0
          %2174 = vmatpush1.msra.mxu0 %v2062
          %2175 = vmatprep.subr.mxu0 0.0
          %2176 = vmatpush1.msra.mxu0 %v2061
          %2177 = vmatprep.subr.mxu0 0.0
          %2178 = vmatpush1.msra.mxu0 %v2060
          %2179 = vmatprep.subr.mxu0 0.0
          %2180 = vmatpush1.msra.mxu0 %v2059
          %2181 = vmatprep.subr.mxu0 0.0
          %2182 = vmatpush1.msra.mxu0 %v2058
          %2183 = vmatprep.subr.mxu0 0.0
          %2184 = vmatpush2.msra.mxu0 %v2089
          %2185 = vmatprep.subr.mxu0 0.0
          %2186 = vmatpush2.msra.mxu0 %v2088
          %2187 = vmatprep.subr.mxu0 0.0
          %2188 = vmatpush2.msra.mxu0 %v2087
          %2189 = vmatprep.subr.mxu0 0.0
          %2190 = vmatpush2.msra.mxu0 %v2086
          %2191 = vmatprep.subr.mxu0 0.0
          %2192 = vmatpush2.msra.mxu0 %v2085
          %2193 = vmatprep.subr.mxu0 0.0
          %2194 = vmatpush2.msra.mxu0 %v2084
          %2195 = vmatprep.subr.mxu0 0.0
          %2196 = vmatpush2.msra.mxu0 %v2083
          %2197 = vmatprep.subr.mxu0 0.0
          %2198 = vmatpush2.msra.mxu0 %v2082
          %2199 = vmatprep.subr.mxu0 0.0
          %2200 = vmatpush2.msra.mxu0 %v2081
          %2201 = vmatprep.subr.mxu0 0.0
          %2202 = vmatpush2.msra.mxu0 %v2080
          %2203 = vmatprep.subr.mxu0 0.0
          %2204 = vmatpush2.msra.mxu0 %v2079
          %2205 = vmatprep.subr.mxu0 0.0
          %2206 = vmatpush2.msra.mxu0 %v2078
          %2207 = vmatprep.subr.mxu0 0.0
          %2208 = vmatpush2.msra.mxu0 %v2077
          %2209 = vmatprep.subr.mxu0 0.0
          %2210 = vmatpush2.msra.mxu0 %v2076
          %2211 = vmatprep.subr.mxu0 0.0
          %2212 = vmatpush2.msra.mxu0 %v2075
          %2213 = vmatprep.subr.mxu0 0.0
          %2214 = vmatpush2.msra.mxu0 %v2074
          %2215 = vmatprep.mubr.f32.mxu0 %v2145
          %2216 = vmatmul.mubr.f32.gmra.mxu0 %v2137
          %v2217 = vpop.f32.mrf.mxu0
          %v2218 = vadd.f32 %v2127, %v2217
          %v2219 = vpop.f32.mrf.mxu0
          %2220 = vdwg.mxu0
          %2221 = vmatprep.subr.mxu0 0.0
          %2222 = vmatpush1.msra.mxu0 %v2105
          %2223 = vmatprep.subr.mxu0 0.0
          %2224 = vmatpush1.msra.mxu0 %v2104
          %2225 = vmatprep.subr.mxu0 0.0
          %2226 = vmatpush1.msra.mxu0 %v2103
          %2227 = vmatprep.subr.mxu0 0.0
          %2228 = vmatpush1.msra.mxu0 %v2102
          %2229 = vmatprep.subr.mxu0 0.0
          %2230 = vmatpush1.msra.mxu0 %v2101
          %2231 = vmatprep.subr.mxu0 0.0
          %2232 = vmatpush1.msra.mxu0 %v2100
          %2233 = vmatprep.subr.mxu0 0.0
          %2234 = vmatpush1.msra.mxu0 %v2099
          %2235 = vmatprep.subr.mxu0 0.0
          %2236 = vmatpush1.msra.mxu0 %v2098
          %2237 = vmatprep.subr.mxu0 0.0
          %2238 = vmatpush1.msra.mxu0 %v2097
          %2239 = vmatprep.subr.mxu0 0.0
          %2240 = vmatpush1.msra.mxu0 %v2096
          %2241 = vmatprep.subr.mxu0 0.0
          %2242 = vmatpush1.msra.mxu0 %v2095
          %2243 = vmatprep.subr.mxu0 0.0
          %2244 = vmatpush1.msra.mxu0 %v2094
          %2245 = vmatprep.subr.mxu0 0.0
          %2246 = vmatpush1.msra.mxu0 %v2093
          %2247 = vmatprep.subr.mxu0 0.0
          %2248 = vmatpush1.msra.mxu0 %v2092
          %2249 = vmatprep.subr.mxu0 0.0
          %2250 = vmatpush1.msra.mxu0 %v2091
          %2251 = vmatprep.subr.mxu0 0.0
          %2252 = vmatpush1.msra.mxu0 %v2090
          %2253 = vmatprep.subr.mxu0 0.0
          %2254 = vmatpush2.msra.mxu0 %v2121
          %2255 = vmatprep.subr.mxu0 0.0
          %2256 = vmatpush2.msra.mxu0 %v2120
          %2257 = vmatprep.subr.mxu0 0.0
          %2258 = vmatpush2.msra.mxu0 %v2119
          %2259 = vmatprep.subr.mxu0 0.0
          %2260 = vmatpush2.msra.mxu0 %v2118
          %2261 = vmatprep.subr.mxu0 0.0
          %2262 = vmatpush2.msra.mxu0 %v2117
          %2263 = vmatprep.subr.mxu0 0.0
          %2264 = vmatpush2.msra.mxu0 %v2116
          %2265 = vmatprep.subr.mxu0 0.0
          %2266 = vmatpush2.msra.mxu0 %v2115
          %2267 = vmatprep.subr.mxu0 0.0
          %2268 = vmatpush2.msra.mxu0 %v2114
          %2269 = vmatprep.subr.mxu0 0.0
          %2270 = vmatpush2.msra.mxu0 %v2113
          %2271 = vmatprep.subr.mxu0 0.0
          %2272 = vmatpush2.msra.mxu0 %v2112
          %2273 = vmatprep.subr.mxu0 0.0
          %2274 = vmatpush2.msra.mxu0 %v2111
          %2275 = vmatprep.subr.mxu0 0.0
          %2276 = vmatpush2.msra.mxu0 %v2110
          %2277 = vmatprep.subr.mxu0 0.0
          %2278 = vmatpush2.msra.mxu0 %v2109
          %2279 = vmatprep.subr.mxu0 0.0
          %2280 = vmatpush2.msra.mxu0 %v2108
          %2281 = vmatprep.subr.mxu0 0.0
          %2282 = vmatpush2.msra.mxu0 %v2107
          %2283 = vmatprep.subr.mxu0 0.0
          %2284 = vmatpush2.msra.mxu0 %v2106
          %2285 = vmatprep.mubr.f32.mxu0 %v2146
          %2286 = vmatmul.mubr.f32.gmra.mxu0 %v2144
          %v2287 = vpop.f32.mrf.mxu0
          %v2288 = vadd.f32 %v2218, %v2287
          %v2289 = vpop.f32.mrf.mxu0
          %2290 = vdwg.mxu0
          %vm2291 = vcmask 1041408
          %v2292 = vsel %vm2291, %v2288, -inf
          %2293 = vmax.xlane.f32.xlu0 %v2292
          %v2294 = vpop.xlane.xlu0 %2293
          %v2295 = vsub.f32 %v2288, %v2294
          %v2296 = vmul.f32 %v2295, 1.442695
          %v2297 = vpow.pop %v2296
          %v2298 = vsel %vm2291, %v2297, 0.0
          %2299 = vadd.xlane.f32.xlu0 %v2298
          %v2300 = vpop.xlane.xlu0 %2299
          %v2301 = vrcp.pop %v2300
          %v2302 = vmul.f32 %v2297, %v2301
          %2303 = vst [vmem:[%s1142] sm:$0x3] %v2302
        $region71: #{net4ht_forward.9} parent=58 // pred_fallthru
          _
        %p2304 = scmp.lt.s32.totalorder %s22, 1
        %s2305 = scalar_select %p2304, %s22, 1
        %s2306 = smul.addr %s2305, 4
        %s2307 = smul.addr %s2306, 2
        %s2308 = scalar_lea.vmem %s5, %s2307
        %p2309 = scmp.lt.s32.totalorder %s22, 1
        %s2310 = scalar_select %p2309, %s22, 1
        %s2311 = smul.addr %s2310, 2
        %s2312 = scalar_lea.vmem %s6, %s2311
        // Predicated region
        $region72: #{net4ht_forward.9} parent=58 // pred_check
          %p2313 = pneg %p180
        $region73: #{net4ht_forward.9} parent=58 // pred_check_branch
          %2315 = sbr.rel (%p2313) target = $region75
        $region74: #{net4ht_forward.9} parent=58 // pred_region
          _
        $region75: #{net4ht_forward.9} parent=58 // pred_fallthru
          _
        // Predicated region
        $region76: #{net4ht_forward.9} parent=58 // pred_check
          %p2316 = pneg %p206
        $region77: #{net4ht_forward.9} parent=58 // pred_check_branch
          %2318 = sbr.rel (%p2316) target = $region79
        $region78: #{net4ht_forward.9} parent=58 // pred_region
          _
        $region79: #{net4ht_forward.9} parent=58 // pred_fallthru
          _
      $region59: #{net4ht_forward.9} parent=5 // pred_fallthru
        _
      %p2319 = scmp.le.s32.totalorder 2, %s13
      // Predicated region
      $region80: #{net4ht_forward.9} parent=5 // pred_check
        %p2320 = pneg %p2319
      $region81: #{net4ht_forward.9} parent=5 // pred_check_branch
        %2322 = sbr.rel (%p2320) target = $region83
      $region82: #{net4ht_forward.9} parent=5 // pred_region
        %s2323 = ssub.s32 %s13, 2
        // Predicated region
        $region84: #{net4ht_forward.9} parent=82 // pred_check
          %p2324 = pneg %p186
        $region85: #{net4ht_forward.9} parent=82 // pred_check_branch
          %2326 = sbr.rel (%p2324) target = $region87
        $region86: #{net4ht_forward.9} parent=82 // pred_region
          %p2327 = scmp.lt.s32.totalorder %s24, 1
          %s2328 = scalar_select %p2327, %s24, 1
          %s2329 = smul.addr %s2328, 4
          %s2330 = smul.addr %s2329, 2
          %s2331 = scalar_lea.vmem %s5, %s2330
        $region87: #{net4ht_forward.9} parent=82 // pred_fallthru
          _
        // Predicated region
        $region88: #{net4ht_forward.9} parent=82 // pred_check
          %p2332 = pneg %p212
        $region89: #{net4ht_forward.9} parent=82 // pred_check_branch
          %2334 = sbr.rel (%p2332) target = $region91
        $region90: #{net4ht_forward.9} parent=82 // pred_region
          %p2335 = scmp.lt.s32.totalorder %s24, 1
          %s2336 = scalar_select %p2335, %s24, 1
          %s2337 = smul.addr %s2336, 2
          %s2338 = scalar_lea.vmem %s6, %s2337
        $region91: #{net4ht_forward.9} parent=82 // pred_fallthru
          _
      $region83: #{net4ht_forward.9} parent=5 // pred_fallthru
        _
    $region6: #{net4ht_forward.9} parent=1 // loop_footer
      %s17 = sadd.s32 1, %s13
    $region7: #{net4ht_forward.9} parent=1 // loop_footer_branch
      %12 = sbr.rel target = $region3
    $region8: #{net4ht_forward.9} parent=1 // loop_exit
      _

</llo_original>
